<compile_context>
chip_gen: v6e
topology: v6e:2x2x1
jax: 0.10.0
libtpu: 0.0.40
codegen_flags: <defaults>
</compile_context>

<pallas_src>
import functools

import jax
import jax.numpy as jnp
from jax.experimental import pallas as pl
from jax.experimental.pallas import tpu as pltpu

_VMEM = pl.BlockSpec(memory_space=pltpu.MemorySpace.VMEM)
_LANE = 128


def _round_up(v, m):
    return (v + m - 1) // m * m


# ------------------------------------------------------------------ kernels --

def _conv_gemm_kernel(p_ref, w_ref, s_ref, b_ref, o_ref, acc_ref, *, leaky):
    """One (tm, tn) tile of the im2col GEMM, accumulated over the K grid axis.

    p: (tm, tk) bf16 patches; w: (tk, tn) bf16 weights; s,b: (1, tn) f32
    folded BN / conv-bias affine.  f32 accumulation in VMEM scratch; the
    affine + LeakyReLU epilogue runs once on the last K step (f32 math).
    """
    @pl.when(pl.program_id(2) == 0)
    def _():
        acc_ref[...] = jnp.zeros_like(acc_ref)

    acc_ref[...] += jnp.dot(p_ref[...], w_ref[...],
                            preferred_element_type=jnp.float32)

    @pl.when(pl.program_id(2) == pl.num_programs(2) - 1)
    def _():
        y = acc_ref[...] * s_ref[...] + b_ref[...]
        if leaky:
            y = jnp.where(y > 0, y, 0.1 * y)          # LeakyReLU(0.1)
        o_ref[...] = y.astype(o_ref.dtype)


def _maxpool_kernel(x_ref, o_ref):
    # x: (4, rows, 128) -- axis 0 is the 2x2 window; lane-dense last dim.
    o_ref[...] = jnp.max(x_ref[...], axis=0)


def _add_kernel(a_ref, b_ref, o_ref):
    # flat (rows, 128) lane-dense elementwise add (shortcut layer)
    o_ref[...] = a_ref[...] + b_ref[...]


def _yolo_head_kernel(p_ref, aux_ref, o_ref, *, stride, use_angle, angle_range):
    # p: (attrs, R) raw predictions ; aux: (4, R) = [grid_x, grid_y, a_w, a_h]
    p = p_ref[...]
    aux = aux_ref[...]
    s = jax.nn.sigmoid(p)                              # one whole-block EUP pass
    o_ref[0:2, :] = (s[0:2, :] + aux[0:2, :]) * stride         # bx, by
    o_ref[2:4, :] = jnp.exp(p[2:4, :]) * aux[2:4, :] * stride  # bw, bh
    if use_angle:
        o_ref[4:5, :] = s[4:5, :] * angle_range - angle_range / 2.0
    else:
        o_ref[4:5, :] = jnp.zeros_like(p[4:5, :])
    o_ref[5:, :] = s[5:, :]                            # conf + class scores


# ----------------------------------------------------------------- wrappers --

def conv2d_affine_act(x, w, scale, bias, *, stride=1, leaky=True):
    """Conv2d (+ folded BN or bias) (+ optional LeakyReLU).  x: NHWC f32."""
    N, H, W_, Cin = x.shape
    Cout, _, k, _ = w.shape
    pad = (k - 1) // 2
    Hout = (H + 2 * pad - k) // stride + 1
    Wout = (W_ + 2 * pad - k) // stride + 1
    M, K = N * Hout * Wout, Cin * k * k

    # im2col in bf16 (halves GEMM-input HBM bytes vs f32).
    # TODO(synk): build the k*k shifted patches inside the kernel from a halo
    # tile to remove the k*k activation blow-up in HBM at large resolutions.
    xb = jnp.pad(x.astype(jnp.bfloat16),
                 ((0, 0), (pad, pad), (pad, pad), (0, 0)))
    cols = []
    for dy in range(k):
        for dx in range(k):
            cols.append(xb[:, dy:dy + (Hout - 1) * stride + 1:stride,
                               dx:dx + (Wout - 1) * stride + 1:stride, :])
    patches = jnp.stack(cols, axis=0)                  # (k*k, N, Ho, Wo, Cin)
    patches = patches.transpose(1, 2, 3, 4, 0)         # (N, Ho, Wo, Cin, k*k)
    patches = patches.reshape(M, K)                    # K order = (cin, kh, kw)

    # Lane-dense padding + MXU-friendly tile sizes.
    tm = min(256, _round_up(M, 8))
    tk = min(512, _round_up(K, _LANE))
    cn_pad = _round_up(Cout, _LANE)
    tn = 256 if cn_pad % 256 == 0 else _LANE
    m_pad = _round_up(M, tm)
    k_pad = _round_up(K, tk)

    patches = jnp.pad(patches, ((0, m_pad - M), (0, k_pad - K)))
    w2 = w.reshape(Cout, K).T.astype(jnp.bfloat16)     # (K, Cout)
    w2 = jnp.pad(w2, ((0, k_pad - K), (0, cn_pad - Cout)))
    s2 = jnp.pad(scale.astype(jnp.float32), (0, cn_pad - Cout)).reshape(1, cn_pad)
    b2 = jnp.pad(bias.astype(jnp.float32), (0, cn_pad - Cout)).reshape(1, cn_pad)

    grid = (m_pad // tm, cn_pad // tn, k_pad // tk)
    out = pl.pallas_call(
        functools.partial(_conv_gemm_kernel, leaky=leaky),
        out_shape=jax.ShapeDtypeStruct((m_pad, cn_pad), jnp.float32),
        grid_spec=pltpu.PrefetchScalarGridSpec(
            num_scalar_prefetch=0,
            grid=grid,
            in_specs=[
                pl.BlockSpec((tm, tk), lambda i, j, kb: (i, kb)),
                pl.BlockSpec((tk, tn), lambda i, j, kb: (kb, j)),
                pl.BlockSpec((1, tn), lambda i, j, kb: (0, j)),
                pl.BlockSpec((1, tn), lambda i, j, kb: (0, j)),
            ],
            out_specs=pl.BlockSpec((tm, tn), lambda i, j, kb: (i, j)),
            scratch_shapes=[pltpu.VMEM((tm, tn), jnp.float32)],
        ),
        compiler_params=pltpu.CompilerParams(
            dimension_semantics=("parallel", "parallel", "arbitrary"),
            vmem_limit_bytes=32 * 1024 * 1024),
    )(patches, w2, s2, b2)
    return out[:M, :Cout].reshape(N, Hout, Wout, Cout)


def maxpool2x2(x):
    """MaxPool2d(kernel=2, stride=2, padding=0).  x: NHWC, H/W even."""
    # TODO(synk): other Darknet cfg maxpool variants (size=2/stride=1 + pad)
    # are not needed by this config and are not implemented.
    N, H, W_, C = x.shape
    Ho, Wo = H // 2, W_ // 2
    L = N * Ho * Wo * C
    assert L % _LANE == 0
    xr = x.reshape(N, Ho, 2, Wo, 2, C).transpose(2, 4, 0, 1, 3, 5)
    xr = xr.reshape(4, L // _LANE, _LANE)
    out = pl.pallas_call(
        _maxpool_kernel,
        out_shape=jax.ShapeDtypeStruct((L // _LANE, _LANE), jnp.float32),
        in_specs=[_VMEM],
        out_specs=_VMEM,
    )(xr)
    return out.reshape(N, Ho, Wo, C)


def shortcut_add(a, b):
    shape = a.shape
    L = a.size
    assert L % _LANE == 0
    a2 = a.reshape(L // _LANE, _LANE)
    b2 = b.reshape(L // _LANE, _LANE)
    out = pl.pallas_call(
        _add_kernel,
        out_shape=jax.ShapeDtypeStruct(a2.shape, jnp.float32),
        in_specs=[_VMEM, _VMEM],
        out_specs=_VMEM,
    )(a2, b2)
    return out.reshape(shape)


def upsample_nearest(x, scale=2):
    # Pure data movement (nearest-neighbor repeat) -- kept as JAX glue. NHWC.
    return jnp.repeat(jnp.repeat(x, scale, axis=1), scale, axis=2)


def yolo_head(feat, anchors, num_classes, img_dim, *, use_angle=False,
              angle_range=360.0):
    """Mirrors YOLOLayer.forward with targets=None, uda_method=None. feat: NHWC."""
    N, g, _, _ = feat.shape
    A = len(anchors)
    attrs = num_classes + 6
    stride = float(img_dim) / float(g)
    # (N, g, g, A*attrs) -> (N, g, g, A, attrs) -> (N, A, g, g, attrs)
    pred = feat.reshape(N, g, g, A, attrs).transpose(0, 3, 1, 2, 4)
    R = N * A * g * g
    pred_t = pred.reshape(R, attrs).T                  # (attrs, R), R lane-dense

    gy, gx = jnp.meshgrid(jnp.arange(g, dtype=jnp.float32),
                          jnp.arange(g, dtype=jnp.float32), indexing="ij")
    grid_x = jnp.broadcast_to(gx[None, None], (N, A, g, g)).reshape(R)
    grid_y = jnp.broadcast_to(gy[None, None], (N, A, g, g)).reshape(R)
    anch = jnp.asarray(anchors, dtype=jnp.float32) / stride   # scaled anchors
    aw = jnp.broadcast_to(anch[:, 0][None, :, None, None], (N, A, g, g)).reshape(R)
    ah = jnp.broadcast_to(anch[:, 1][None, :, None, None], (N, A, g, g)).reshape(R)
    aux = jnp.stack([grid_x, grid_y, aw, ah], axis=0)          # (4, R)

    out = pl.pallas_call(
        functools.partial(_yolo_head_kernel, stride=stride,
                          use_angle=use_angle, angle_range=float(angle_range)),
        out_shape=jax.ShapeDtypeStruct((attrs, R), jnp.float32),
        in_specs=[_VMEM, _VMEM],
        out_specs=_VMEM,
    )(pred_t, aux)
    return out.T.reshape(N, A * g * g, attrs)


# ------------------------------------------------------------ model (glue) --

# A small synthetic YOLOv3-style config, equivalent to parse_model_config output.
# TODO(synk): the original reads the cfg from disk; we inline a mini config.
MODULE_DEFS = [
    {"type": "net", "channels": "4", "height": "32"},
    {"type": "convolutional", "batch_normalize": "1", "filters": "8",
     "size": "3", "stride": "1", "activation": "leaky"},
    {"type": "maxpool", "size": "2", "stride": "2"},
    {"type": "convolutional", "batch_normalize": "1", "filters": "16",
     "size": "3", "stride": "1", "activation": "leaky"},
    {"type": "maxpool", "size": "2", "stride": "2"},
    {"type": "convolutional", "batch_normalize": "1", "filters": "16",
     "size": "1", "stride": "1", "activation": "leaky"},
    {"type": "convolutional", "batch_normalize": "1", "filters": "16",
     "size": "3", "stride": "1", "activation": "leaky"},
    {"type": "shortcut", "from": "-2", "activation": "linear"},
    {"type": "convolutional", "batch_normalize": "0", "filters": "24",
     "size": "1", "stride": "1", "activation": "linear"},
    {"type": "yolo", "mask": "3,4,5",
     "anchors": "10,13, 16,30, 33,23, 30,61, 62,45, 59,119", "classes": "2"},
    {"type": "route", "layers": "-3"},
    {"type": "upsample", "stride": "2"},
    {"type": "route", "layers": "-1, 2"},
    {"type": "convolutional", "batch_normalize": "0", "filters": "24",
     "size": "1", "stride": "1", "activation": "linear"},
    {"type": "yolo", "mask": "0,1,2",
     "anchors": "10,13, 16,30, 33,23, 30,61, 62,45, 59,119", "classes": "2"},
]


def init_params(module_defs, key):
    """Deterministic synthetic params; BN folded into (scale, bias)."""
    params = {}
    out_filters = [int(module_defs[0]["channels"])]
    for i, mdef in enumerate(module_defs[1:]):
        filters = out_filters[-1]
        t = mdef["type"]
        if t == "convolutional":
            bn = int(mdef["batch_normalize"])
            cout = int(mdef["filters"])
            k = int(mdef["size"])
            cin = out_filters[-1]
            key, k1, k2, k3 = jax.random.split(key, 4)
            fan_in = cin * k * k
            w = jax.random.normal(k1, (cout, cin, k, k), jnp.float32) / jnp.sqrt(
                jnp.float32(fan_in))
            if bn:
                gamma = 1.0 + 0.1 * jax.random.normal(k2, (cout,), jnp.float32)
                beta = 0.1 * jax.random.normal(k3, (cout,), jnp.float32)
                running_mean = jnp.zeros((cout,), jnp.float32)
                running_var = jnp.ones((cout,), jnp.float32)
                eps = 1e-5
                scale = gamma / jnp.sqrt(running_var + eps)
                bias = beta - running_mean * scale
            else:
                scale = jnp.ones((cout,), jnp.float32)
                bias = 0.1 * jax.random.normal(k2, (cout,), jnp.float32)
            params[i] = {"w": w, "scale": scale, "bias": bias}
            filters = cout
        elif t == "route":
            layers = [int(l) for l in mdef["layers"].split(",")]
            filters = sum(out_filters[1:][l] for l in layers)
        elif t == "shortcut":
            filters = out_filters[1:][int(mdef["from"])]
        out_filters.append(filters)
    return params


def darknet_forward(params, module_defs, x, use_angle=False):
    """Mirrors Darknet.forward with targets=None, uda_method=None.  x: NCHW."""
    img_dim = x.shape[2]
    x = x.transpose(0, 2, 3, 1)            # channels-last internally (lane-dense)
    layer_outputs, yolo_outputs = [], []
    for i, mdef in enumerate(module_defs[1:]):
        t = mdef["type"]
        if t == "convolutional":
            p = params[i]
            x = conv2d_affine_act(x, p["w"], p["scale"], p["bias"],
                                  stride=int(mdef["stride"]),
                                  leaky=(mdef["activation"] == "leaky"))
        elif t == "maxpool":
            x = maxpool2x2(x)
        elif t == "upsample":
            x = upsample_nearest(x, int(mdef["stride"]))
        elif t == "route":
            idxs = [int(l) for l in mdef["layers"].split(",")]
            x = jnp.concatenate([layer_outputs[l] for l in idxs], axis=-1)
        elif t == "shortcut":
            li = int(mdef["from"])
            x = shortcut_add(layer_outputs[-1], layer_outputs[li])
        elif t == "yolo":
            anchor_idxs = [int(a) for a in mdef["mask"].split(",")]
            flat = [int(a) for a in mdef["anchors"].split(",")]
            anchors = [(flat[j], flat[j + 1]) for j in range(0, len(flat), 2)]
            anchors = [anchors[j] for j in anchor_idxs]
            # Matches the torch code: the angle branch only fires for the
            # *string* 'True' (boolean True -> angle column stays 0).
            x = yolo_head(x, anchors, int(mdef["classes"]), img_dim,
                          use_angle=(use_angle == "True"))
            yolo_outputs.append(x)
        layer_outputs.append(x)
    return jnp.concatenate(yolo_outputs, axis=1)


# --------------------------------------------------------------------- main --

if __name__ == "__main__":
    key = jax.random.PRNGKey(0)
    pkey, xkey = jax.random.split(key)
    params = init_params(MODULE_DEFS, pkey)
    x = jax.random.normal(xkey, (2, 4, 32, 32), jnp.float32)

    fwd = jax.jit(lambda p, xx: darknet_forward(p, MODULE_DEFS, xx))
    out = fwd(params, x)
    out = jax.block_until_ready(out)

    # two YOLO scales: 3 anchors * 8*8 + 3 anchors * 16*16 boxes, 6+2 attrs each
    assert out.shape == (2, 3 * 8 * 8 + 3 * 16 * 16, 8), out.shape
    assert bool(jnp.all(jnp.isfinite(out)))
    print("KERNEL_OK")
</pallas_src>

<mosaic_0001>
module attributes {stable_mosaic.version = 11 : i64} {
  func.func @_conv_gemm_kernel(%arg0: i32, %arg1: i32, %arg2: i32, %arg3: memref<256x128xbf16, #tpu.memory_space<vmem>>, %arg4: memref<128x128xbf16, #tpu.memory_space<vmem>>, %arg5: memref<1x128xf32, #tpu.memory_space<vmem>>, %arg6: memref<1x128xf32, #tpu.memory_space<vmem>>, %arg7: memref<256x128xf32, #tpu.memory_space<vmem>>, %arg8: memref<256x128xf32, #tpu.memory_space<vmem>>) attributes {dimension_semantics = [#tpu.dimension_semantics<parallel>, #tpu.dimension_semantics<parallel>, #tpu.dimension_semantics<arbitrary>], iteration_bounds = array<i64: 8, 1, 1>, scalar_prefetch = 0 : i64, scratch_operands = 1 : i64, tpu.core_type = #tpu.core_type<tc>, window_params = [{transform_indices = @transform_0, window_bounds = array<i64: 256, 128>}, {transform_indices = @transform_1, window_bounds = array<i64: 128, 128>}, {transform_indices = @transform_2, window_bounds = array<i64: 1, 128>}, {transform_indices = @transform_3, window_bounds = array<i64: 1, 128>}, {transform_indices = @transform_4, window_bounds = array<i64: 256, 128>}]} {
    %c0_i32 = arith.constant 0 : i32
    %0 = arith.cmpi eq, %arg2, %c0_i32 : i32
    %1 = arith.extui %0 : i1 to i32
    %c0_i32_0 = arith.constant 0 : i32
    %2 = arith.cmpi ne, %1, %c0_i32_0 : i32
    scf.if %2 {
      %cst_10 = arith.constant 0.000000e+00 : f32
      %12 = vector.broadcast %cst_10 : f32 to vector<256x128xf32>
      %c0_11 = arith.constant 0 : index
      %c0_12 = arith.constant 0 : index
      %13 = vector.load %arg8[%c0_11, %c0_12] : memref<256x128xf32, #tpu.memory_space<vmem>>, vector<256x128xf32>
      tpu.vector_store %arg8[%c0_11, %c0_12], %12 {strides = array<i32>} : memref<256x128xf32, #tpu.memory_space<vmem>>, vector<256x128xf32>,
    } else {
    }
    %c0 = arith.constant 0 : index
    %c0_1 = arith.constant 0 : index
    %3 = vector.load %arg8[%c0, %c0_1] : memref<256x128xf32, #tpu.memory_space<vmem>>, vector<256x128xf32>
    %c0_2 = arith.constant 0 : index
    %c0_3 = arith.constant 0 : index
    %4 = vector.load %arg3[%c0_2, %c0_3] : memref<256x128xbf16, #tpu.memory_space<vmem>>, vector<256x128xbf16>
    %c0_4 = arith.constant 0 : index
    %c0_5 = arith.constant 0 : index
    %5 = vector.load %arg4[%c0_4, %c0_5] : memref<128x128xbf16, #tpu.memory_space<vmem>>, vector<128x128xbf16>
    %cst = arith.constant dense<0.000000e+00> : vector<256x128xf32>
    %6 = tpu.matmul %4, %5, %cst {dimension_numbers = #tpu.dot_dimension_numbers<[1], [0], [0], [1], [0, 0, 1, 1], [], []>} : vector<256x128xbf16>, vector<128x128xbf16>, vector<256x128xf32> -> vector<256x128xf32>
    %7 = arith.addf %3, %6 : vector<256x128xf32>
    %c0_6 = arith.constant 0 : index
    %c0_7 = arith.constant 0 : index
    %8 = vector.load %arg8[%c0_6, %c0_7] : memref<256x128xf32, #tpu.memory_space<vmem>>, vector<256x128xf32>
    tpu.vector_store %arg8[%c0_6, %c0_7], %7 {strides = array<i32>} : memref<256x128xf32, #tpu.memory_space<vmem>>, vector<256x128xf32>,
    %c0_i32_8 = arith.constant 0 : i32
    %9 = arith.cmpi eq, %arg2, %c0_i32_8 : i32
    %10 = arith.extui %9 : i1 to i32
    %c0_i32_9 = arith.constant 0 : i32
    %11 = arith.cmpi ne, %10, %c0_i32_9 : i32
    scf.if %11 {
      %c0_10 = arith.constant 0 : index
      %c0_11 = arith.constant 0 : index
      %12 = vector.load %arg8[%c0_10, %c0_11] : memref<256x128xf32, #tpu.memory_space<vmem>>, vector<256x128xf32>
      %c0_12 = arith.constant 0 : index
      %c0_13 = arith.constant 0 : index
      %13 = vector.load %arg5[%c0_12, %c0_13] : memref<1x128xf32, #tpu.memory_space<vmem>>, vector<1x128xf32>
      %14 = vector.broadcast %13 : vector<1x128xf32> to vector<256x128xf32>
      %15 = arith.mulf %12, %14 : vector<256x128xf32>
      %c0_14 = arith.constant 0 : index
      %c0_15 = arith.constant 0 : index
      %16 = vector.load %arg6[%c0_14, %c0_15] : memref<1x128xf32, #tpu.memory_space<vmem>>, vector<1x128xf32>
      %17 = vector.broadcast %16 : vector<1x128xf32> to vector<256x128xf32>
      %18 = arith.addf %15, %17 : vector<256x128xf32>
      %cst_16 = arith.constant 0.000000e+00 : f32
      %19 = vector.broadcast %cst_16 : f32 to vector<256x128xf32>
      %20 = arith.cmpf ogt, %18, %19 : vector<256x128xf32>
      %cst_17 = arith.constant 1.000000e-01 : f32
      %21 = vector.broadcast %cst_17 : f32 to vector<256x128xf32>
      %22 = arith.mulf %21, %18 : vector<256x128xf32>
      %23 = arith.select %20, %18, %22 : vector<256x128xi1>, vector<256x128xf32>
      %c0_18 = arith.constant 0 : index
      %c0_19 = arith.constant 0 : index
      %24 = vector.load %arg7[%c0_18, %c0_19] : memref<256x128xf32, #tpu.memory_space<vmem>>, vector<256x128xf32>
      tpu.vector_store %arg7[%c0_18, %c0_19], %23 {strides = array<i32>} : memref<256x128xf32, #tpu.memory_space<vmem>>, vector<256x128xf32>,
    } else {
    }
    return
  }
  func.func @transform_0(%arg0: i32, %arg1: i32, %arg2: i32) -> (i32, i32) {
    %c0_i32 = arith.constant 0 : i32
    return %arg0, %arg2 : i32, i32
  }
  func.func @transform_1(%arg0: i32, %arg1: i32, %arg2: i32) -> (i32, i32) {
    %c0_i32 = arith.constant 0 : i32
    return %arg2, %arg1 : i32, i32
  }
  func.func @transform_2(%arg0: i32, %arg1: i32, %arg2: i32) -> (i32, i32) {
    %c0_i32 = arith.constant 0 : i32
    %c0_i32_0 = arith.constant 0 : i32
    return %c0_i32, %arg1 : i32, i32
  }
  func.func @transform_3(%arg0: i32, %arg1: i32, %arg2: i32) -> (i32, i32) {
    %c0_i32 = arith.constant 0 : i32
    %c0_i32_0 = arith.constant 0 : i32
    return %c0_i32, %arg1 : i32, i32
  }
  func.func @transform_4(%arg0: i32, %arg1: i32, %arg2: i32) -> (i32, i32) {
    %c0_i32 = arith.constant 0 : i32
    return %arg0, %arg1 : i32, i32
  }
}

module attributes {stable_mosaic.version = 11 : i64} {
  func.func @_maxpool_kernel(%arg0: memref<4x32x128xf32, #tpu.memory_space<vmem>>, %arg1: memref<32x128xf32, #tpu.memory_space<vmem>>) attributes {dimension_semantics = [], scalar_prefetch = 0 : i64, scratch_operands = 0 : i64, tpu.core_type = #tpu.core_type<tc>} {
    %c0 = arith.constant 0 : index
    %c0_0 = arith.constant 0 : index
    %c0_1 = arith.constant 0 : index
    %0 = vector.load %arg0[%c0, %c0_0, %c0_1] : memref<4x32x128xf32, #tpu.memory_space<vmem>>, vector<4x32x128xf32>
    %cst = arith.constant dense<0xFF800000> : vector<32x128xf32>
    %1 = vector.multi_reduction <maximumf>, %0, %cst [0] : vector<4x32x128xf32> to vector<32x128xf32>
    %c0_2 = arith.constant 0 : index
    %c0_3 = arith.constant 0 : index
    %2 = vector.load %arg1[%c0_2, %c0_3] : memref<32x128xf32, #tpu.memory_space<vmem>>, vector<32x128xf32>
    tpu.vector_store %arg1[%c0_2, %c0_3], %1 {strides = array<i32>} : memref<32x128xf32, #tpu.memory_space<vmem>>, vector<32x128xf32>,
    return
  }
}

module attributes {stable_mosaic.version = 11 : i64} {
  func.func @_conv_gemm_kernel(%arg0: i32, %arg1: i32, %arg2: i32, %arg3: memref<256x128xbf16, #tpu.memory_space<vmem>>, %arg4: memref<128x128xbf16, #tpu.memory_space<vmem>>, %arg5: memref<1x128xf32, #tpu.memory_space<vmem>>, %arg6: memref<1x128xf32, #tpu.memory_space<vmem>>, %arg7: memref<256x128xf32, #tpu.memory_space<vmem>>, %arg8: memref<256x128xf32, #tpu.memory_space<vmem>>) attributes {dimension_semantics = [#tpu.dimension_semantics<parallel>, #tpu.dimension_semantics<parallel>, #tpu.dimension_semantics<arbitrary>], iteration_bounds = array<i64: 2, 1, 1>, scalar_prefetch = 0 : i64, scratch_operands = 1 : i64, tpu.core_type = #tpu.core_type<tc>, window_params = [{transform_indices = @transform_0, window_bounds = array<i64: 256, 128>}, {transform_indices = @transform_1, window_bounds = array<i64: 128, 128>}, {transform_indices = @transform_2, window_bounds = array<i64: 1, 128>}, {transform_indices = @transform_3, window_bounds = array<i64: 1, 128>}, {transform_indices = @transform_4, window_bounds = array<i64: 256, 128>}]} {
    %c0_i32 = arith.constant 0 : i32
    %0 = arith.cmpi eq, %arg2, %c0_i32 : i32
    %1 = arith.extui %0 : i1 to i32
    %c0_i32_0 = arith.constant 0 : i32
    %2 = arith.cmpi ne, %1, %c0_i32_0 : i32
    scf.if %2 {
      %cst_10 = arith.constant 0.000000e+00 : f32
      %12 = vector.broadcast %cst_10 : f32 to vector<256x128xf32>
      %c0_11 = arith.constant 0 : index
      %c0_12 = arith.constant 0 : index
      %13 = vector.load %arg8[%c0_11, %c0_12] : memref<256x128xf32, #tpu.memory_space<vmem>>, vector<256x128xf32>
      tpu.vector_store %arg8[%c0_11, %c0_12], %12 {strides = array<i32>} : memref<256x128xf32, #tpu.memory_space<vmem>>, vector<256x128xf32>,
    } else {
    }
    %c0 = arith.constant 0 : index
    %c0_1 = arith.constant 0 : index
    %3 = vector.load %arg8[%c0, %c0_1] : memref<256x128xf32, #tpu.memory_space<vmem>>, vector<256x128xf32>
    %c0_2 = arith.constant 0 : index
    %c0_3 = arith.constant 0 : index
    %4 = vector.load %arg3[%c0_2, %c0_3] : memref<256x128xbf16, #tpu.memory_space<vmem>>, vector<256x128xbf16>
    %c0_4 = arith.constant 0 : index
    %c0_5 = arith.constant 0 : index
    %5 = vector.load %arg4[%c0_4, %c0_5] : memref<128x128xbf16, #tpu.memory_space<vmem>>, vector<128x128xbf16>
    %cst = arith.constant dense<0.000000e+00> : vector<256x128xf32>
    %6 = tpu.matmul %4, %5, %cst {dimension_numbers = #tpu.dot_dimension_numbers<[1], [0], [0], [1], [0, 0, 1, 1], [], []>} : vector<256x128xbf16>, vector<128x128xbf16>, vector<256x128xf32> -> vector<256x128xf32>
    %7 = arith.addf %3, %6 : vector<256x128xf32>
    %c0_6 = arith.constant 0 : index
    %c0_7 = arith.constant 0 : index
    %8 = vector.load %arg8[%c0_6, %c0_7] : memref<256x128xf32, #tpu.memory_space<vmem>>, vector<256x128xf32>
    tpu.vector_store %arg8[%c0_6, %c0_7], %7 {strides = array<i32>} : memref<256x128xf32, #tpu.memory_space<vmem>>, vector<256x128xf32>,
    %c0_i32_8 = arith.constant 0 : i32
    %9 = arith.cmpi eq, %arg2, %c0_i32_8 : i32
    %10 = arith.extui %9 : i1 to i32
    %c0_i32_9 = arith.constant 0 : i32
    %11 = arith.cmpi ne, %10, %c0_i32_9 : i32
    scf.if %11 {
      %c0_10 = arith.constant 0 : index
      %c0_11 = arith.constant 0 : index
      %12 = vector.load %arg8[%c0_10, %c0_11] : memref<256x128xf32, #tpu.memory_space<vmem>>, vector<256x128xf32>
      %c0_12 = arith.constant 0 : index
      %c0_13 = arith.constant 0 : index
      %13 = vector.load %arg5[%c0_12, %c0_13] : memref<1x128xf32, #tpu.memory_space<vmem>>, vector<1x128xf32>
      %14 = vector.broadcast %13 : vector<1x128xf32> to vector<256x128xf32>
      %15 = arith.mulf %12, %14 : vector<256x128xf32>
      %c0_14 = arith.constant 0 : index
      %c0_15 = arith.constant 0 : index
      %16 = vector.load %arg6[%c0_14, %c0_15] : memref<1x128xf32, #tpu.memory_space<vmem>>, vector<1x128xf32>
      %17 = vector.broadcast %16 : vector<1x128xf32> to vector<256x128xf32>
      %18 = arith.addf %15, %17 : vector<256x128xf32>
      %cst_16 = arith.constant 0.000000e+00 : f32
      %19 = vector.broadcast %cst_16 : f32 to vector<256x128xf32>
      %20 = arith.cmpf ogt, %18, %19 : vector<256x128xf32>
      %cst_17 = arith.constant 1.000000e-01 : f32
      %21 = vector.broadcast %cst_17 : f32 to vector<256x128xf32>
      %22 = arith.mulf %21, %18 : vector<256x128xf32>
      %23 = arith.select %20, %18, %22 : vector<256x128xi1>, vector<256x128xf32>
      %c0_18 = arith.constant 0 : index
      %c0_19 = arith.constant 0 : index
      %24 = vector.load %arg7[%c0_18, %c0_19] : memref<256x128xf32, #tpu.memory_space<vmem>>, vector<256x128xf32>
      tpu.vector_store %arg7[%c0_18, %c0_19], %23 {strides = array<i32>} : memref<256x128xf32, #tpu.memory_space<vmem>>, vector<256x128xf32>,
    } else {
    }
    return
  }
  func.func @transform_0(%arg0: i32, %arg1: i32, %arg2: i32) -> (i32, i32) {
    %c0_i32 = arith.constant 0 : i32
    return %arg0, %arg2 : i32, i32
  }
  func.func @transform_1(%arg0: i32, %arg1: i32, %arg2: i32) -> (i32, i32) {
    %c0_i32 = arith.constant 0 : i32
    return %arg2, %arg1 : i32, i32
  }
  func.func @transform_2(%arg0: i32, %arg1: i32, %arg2: i32) -> (i32, i32) {
    %c0_i32 = arith.constant 0 : i32
    %c0_i32_0 = arith.constant 0 : i32
    return %c0_i32, %arg1 : i32, i32
  }
  func.func @transform_3(%arg0: i32, %arg1: i32, %arg2: i32) -> (i32, i32) {
    %c0_i32 = arith.constant 0 : i32
    %c0_i32_0 = arith.constant 0 : i32
    return %c0_i32, %arg1 : i32, i32
  }
  func.func @transform_4(%arg0: i32, %arg1: i32, %arg2: i32) -> (i32, i32) {
    %c0_i32 = arith.constant 0 : i32
    return %arg0, %arg1 : i32, i32
  }
}

module attributes {stable_mosaic.version = 11 : i64} {
  func.func @_maxpool_kernel(%arg0: memref<4x16x128xf32, #tpu.memory_space<vmem>>, %arg1: memref<16x128xf32, #tpu.memory_space<vmem>>) attributes {dimension_semantics = [], scalar_prefetch = 0 : i64, scratch_operands = 0 : i64, tpu.core_type = #tpu.core_type<tc>} {
    %c0 = arith.constant 0 : index
    %c0_0 = arith.constant 0 : index
    %c0_1 = arith.constant 0 : index
    %0 = vector.load %arg0[%c0, %c0_0, %c0_1] : memref<4x16x128xf32, #tpu.memory_space<vmem>>, vector<4x16x128xf32>
    %cst = arith.constant dense<0xFF800000> : vector<16x128xf32>
    %1 = vector.multi_reduction <maximumf>, %0, %cst [0] : vector<4x16x128xf32> to vector<16x128xf32>
    %c0_2 = arith.constant 0 : index
    %c0_3 = arith.constant 0 : index
    %2 = vector.load %arg1[%c0_2, %c0_3] : memref<16x128xf32, #tpu.memory_space<vmem>>, vector<16x128xf32>
    tpu.vector_store %arg1[%c0_2, %c0_3], %1 {strides = array<i32>} : memref<16x128xf32, #tpu.memory_space<vmem>>, vector<16x128xf32>,
    return
  }
}

module attributes {stable_mosaic.version = 11 : i64} {
  func.func @_conv_gemm_kernel(%arg0: i32, %arg1: i32, %arg2: i32, %arg3: memref<128x128xbf16, #tpu.memory_space<vmem>>, %arg4: memref<128x128xbf16, #tpu.memory_space<vmem>>, %arg5: memref<1x128xf32, #tpu.memory_space<vmem>>, %arg6: memref<1x128xf32, #tpu.memory_space<vmem>>, %arg7: memref<128x128xf32, #tpu.memory_space<vmem>>, %arg8: memref<128x128xf32, #tpu.memory_space<vmem>>) attributes {dimension_semantics = [#tpu.dimension_semantics<parallel>, #tpu.dimension_semantics<parallel>, #tpu.dimension_semantics<arbitrary>], iteration_bounds = array<i64: 1, 1, 1>, scalar_prefetch = 0 : i64, scratch_operands = 1 : i64, tpu.core_type = #tpu.core_type<tc>, window_params = [{transform_indices = @transform_0, window_bounds = array<i64: 128, 128>}, {transform_indices = @transform_1, window_bounds = array<i64: 128, 128>}, {transform_indices = @transform_2, window_bounds = array<i64: 1, 128>}, {transform_indices = @transform_3, window_bounds = array<i64: 1, 128>}, {transform_indices = @transform_4, window_bounds = array<i64: 128, 128>}]} {
    %c0_i32 = arith.constant 0 : i32
    %0 = arith.cmpi eq, %arg2, %c0_i32 : i32
    %1 = arith.extui %0 : i1 to i32
    %c0_i32_0 = arith.constant 0 : i32
    %2 = arith.cmpi ne, %1, %c0_i32_0 : i32
    scf.if %2 {
      %cst_10 = arith.constant 0.000000e+00 : f32
      %12 = vector.broadcast %cst_10 : f32 to vector<128x128xf32>
      %c0_11 = arith.constant 0 : index
      %c0_12 = arith.constant 0 : index
      %13 = vector.load %arg8[%c0_11, %c0_12] : memref<128x128xf32, #tpu.memory_space<vmem>>, vector<128x128xf32>
      tpu.vector_store %arg8[%c0_11, %c0_12], %12 {strides = array<i32>} : memref<128x128xf32, #tpu.memory_space<vmem>>, vector<128x128xf32>,
    } else {
    }
    %c0 = arith.constant 0 : index
    %c0_1 = arith.constant 0 : index
    %3 = vector.load %arg8[%c0, %c0_1] : memref<128x128xf32, #tpu.memory_space<vmem>>, vector<128x128xf32>
    %c0_2 = arith.constant 0 : index
    %c0_3 = arith.constant 0 : index
    %4 = vector.load %arg3[%c0_2, %c0_3] : memref<128x128xbf16, #tpu.memory_space<vmem>>, vector<128x128xbf16>
    %c0_4 = arith.constant 0 : index
    %c0_5 = arith.constant 0 : index
    %5 = vector.load %arg4[%c0_4, %c0_5] : memref<128x128xbf16, #tpu.memory_space<vmem>>, vector<128x128xbf16>
    %cst = arith.constant dense<0.000000e+00> : vector<128x128xf32>
    %6 = tpu.matmul %4, %5, %cst {dimension_numbers = #tpu.dot_dimension_numbers<[1], [0], [0], [1], [0, 0, 1, 1], [], []>} : vector<128x128xbf16>, vector<128x128xbf16>, vector<128x128xf32> -> vector<128x128xf32>
    %7 = arith.addf %3, %6 : vector<128x128xf32>
    %c0_6 = arith.constant 0 : index
    %c0_7 = arith.constant 0 : index
    %8 = vector.load %arg8[%c0_6, %c0_7] : memref<128x128xf32, #tpu.memory_space<vmem>>, vector<128x128xf32>
    tpu.vector_store %arg8[%c0_6, %c0_7], %7 {strides = array<i32>} : memref<128x128xf32, #tpu.memory_space<vmem>>, vector<128x128xf32>,
    %c0_i32_8 = arith.constant 0 : i32
    %9 = arith.cmpi eq, %arg2, %c0_i32_8 : i32
    %10 = arith.extui %9 : i1 to i32
    %c0_i32_9 = arith.constant 0 : i32
    %11 = arith.cmpi ne, %10, %c0_i32_9 : i32
    scf.if %11 {
      %c0_10 = arith.constant 0 : index
      %c0_11 = arith.constant 0 : index
      %12 = vector.load %arg8[%c0_10, %c0_11] : memref<128x128xf32, #tpu.memory_space<vmem>>, vector<128x128xf32>
      %c0_12 = arith.constant 0 : index
      %c0_13 = arith.constant 0 : index
      %13 = vector.load %arg5[%c0_12, %c0_13] : memref<1x128xf32, #tpu.memory_space<vmem>>, vector<1x128xf32>
      %14 = vector.broadcast %13 : vector<1x128xf32> to vector<128x128xf32>
      %15 = arith.mulf %12, %14 : vector<128x128xf32>
      %c0_14 = arith.constant 0 : index
      %c0_15 = arith.constant 0 : index
      %16 = vector.load %arg6[%c0_14, %c0_15] : memref<1x128xf32, #tpu.memory_space<vmem>>, vector<1x128xf32>
      %17 = vector.broadcast %16 : vector<1x128xf32> to vector<128x128xf32>
      %18 = arith.addf %15, %17 : vector<128x128xf32>
      %cst_16 = arith.constant 0.000000e+00 : f32
      %19 = vector.broadcast %cst_16 : f32 to vector<128x128xf32>
      %20 = arith.cmpf ogt, %18, %19 : vector<128x128xf32>
      %cst_17 = arith.constant 1.000000e-01 : f32
      %21 = vector.broadcast %cst_17 : f32 to vector<128x128xf32>
      %22 = arith.mulf %21, %18 : vector<128x128xf32>
      %23 = arith.select %20, %18, %22 : vector<128x128xi1>, vector<128x128xf32>
      %c0_18 = arith.constant 0 : index
      %c0_19 = arith.constant 0 : index
      %24 = vector.load %arg7[%c0_18, %c0_19] : memref<128x128xf32, #tpu.memory_space<vmem>>, vector<128x128xf32>
      tpu.vector_store %arg7[%c0_18, %c0_19], %23 {strides = array<i32>} : memref<128x128xf32, #tpu.memory_space<vmem>>, vector<128x128xf32>,
    } else {
    }
    return
  }
  func.func @transform_0(%arg0: i32, %arg1: i32, %arg2: i32) -> (i32, i32) {
    %c0_i32 = arith.constant 0 : i32
    return %arg0, %arg2 : i32, i32
  }
  func.func @transform_1(%arg0: i32, %arg1: i32, %arg2: i32) -> (i32, i32) {
    %c0_i32 = arith.constant 0 : i32
    return %arg2, %arg1 : i32, i32
  }
  func.func @transform_2(%arg0: i32, %arg1: i32, %arg2: i32) -> (i32, i32) {
    %c0_i32 = arith.constant 0 : i32
    %c0_i32_0 = arith.constant 0 : i32
    return %c0_i32, %arg1 : i32, i32
  }
  func.func @transform_3(%arg0: i32, %arg1: i32, %arg2: i32) -> (i32, i32) {
    %c0_i32 = arith.constant 0 : i32
    %c0_i32_0 = arith.constant 0 : i32
    return %c0_i32, %arg1 : i32, i32
  }
  func.func @transform_4(%arg0: i32, %arg1: i32, %arg2: i32) -> (i32, i32) {
    %c0_i32 = arith.constant 0 : i32
    return %arg0, %arg1 : i32, i32
  }
}

module attributes {stable_mosaic.version = 11 : i64} {
  func.func @_conv_gemm_kernel(%arg0: i32, %arg1: i32, %arg2: i32, %arg3: memref<128x256xbf16, #tpu.memory_space<vmem>>, %arg4: memref<256x128xbf16, #tpu.memory_space<vmem>>, %arg5: memref<1x128xf32, #tpu.memory_space<vmem>>, %arg6: memref<1x128xf32, #tpu.memory_space<vmem>>, %arg7: memref<128x128xf32, #tpu.memory_space<vmem>>, %arg8: memref<128x128xf32, #tpu.memory_space<vmem>>) attributes {dimension_semantics = [#tpu.dimension_semantics<parallel>, #tpu.dimension_semantics<parallel>, #tpu.dimension_semantics<arbitrary>], iteration_bounds = array<i64: 1, 1, 1>, scalar_prefetch = 0 : i64, scratch_operands = 1 : i64, tpu.core_type = #tpu.core_type<tc>, window_params = [{transform_indices = @transform_0, window_bounds = array<i64: 128, 256>}, {transform_indices = @transform_1, window_bounds = array<i64: 256, 128>}, {transform_indices = @transform_2, window_bounds = array<i64: 1, 128>}, {transform_indices = @transform_3, window_bounds = array<i64: 1, 128>}, {transform_indices = @transform_4, window_bounds = array<i64: 128, 128>}]} {
    %c0_i32 = arith.constant 0 : i32
    %0 = arith.cmpi eq, %arg2, %c0_i32 : i32
    %1 = arith.extui %0 : i1 to i32
    %c0_i32_0 = arith.constant 0 : i32
    %2 = arith.cmpi ne, %1, %c0_i32_0 : i32
    scf.if %2 {
      %cst_10 = arith.constant 0.000000e+00 : f32
      %12 = vector.broadcast %cst_10 : f32 to vector<128x128xf32>
      %c0_11 = arith.constant 0 : index
      %c0_12 = arith.constant 0 : index
      %13 = vector.load %arg8[%c0_11, %c0_12] : memref<128x128xf32, #tpu.memory_space<vmem>>, vector<128x128xf32>
      tpu.vector_store %arg8[%c0_11, %c0_12], %12 {strides = array<i32>} : memref<128x128xf32, #tpu.memory_space<vmem>>, vector<128x128xf32>,
    } else {
    }
    %c0 = arith.constant 0 : index
    %c0_1 = arith.constant 0 : index
    %3 = vector.load %arg8[%c0, %c0_1] : memref<128x128xf32, #tpu.memory_space<vmem>>, vector<128x128xf32>
    %c0_2 = arith.constant 0 : index
    %c0_3 = arith.constant 0 : index
    %4 = vector.load %arg3[%c0_2, %c0_3] : memref<128x256xbf16, #tpu.memory_space<vmem>>, vector<128x256xbf16>
    %c0_4 = arith.constant 0 : index
    %c0_5 = arith.constant 0 : index
    %5 = vector.load %arg4[%c0_4, %c0_5] : memref<256x128xbf16, #tpu.memory_space<vmem>>, vector<256x128xbf16>
    %cst = arith.constant dense<0.000000e+00> : vector<128x128xf32>
    %6 = tpu.matmul %4, %5, %cst {dimension_numbers = #tpu.dot_dimension_numbers<[1], [0], [0], [1], [0, 0, 1, 1], [], []>} : vector<128x256xbf16>, vector<256x128xbf16>, vector<128x128xf32> -> vector<128x128xf32>
    %7 = arith.addf %3, %6 : vector<128x128xf32>
    %c0_6 = arith.constant 0 : index
    %c0_7 = arith.constant 0 : index
    %8 = vector.load %arg8[%c0_6, %c0_7] : memref<128x128xf32, #tpu.memory_space<vmem>>, vector<128x128xf32>
    tpu.vector_store %arg8[%c0_6, %c0_7], %7 {strides = array<i32>} : memref<128x128xf32, #tpu.memory_space<vmem>>, vector<128x128xf32>,
    %c0_i32_8 = arith.constant 0 : i32
    %9 = arith.cmpi eq, %arg2, %c0_i32_8 : i32
    %10 = arith.extui %9 : i1 to i32
    %c0_i32_9 = arith.constant 0 : i32
    %11 = arith.cmpi ne, %10, %c0_i32_9 : i32
    scf.if %11 {
      %c0_10 = arith.constant 0 : index
      %c0_11 = arith.constant 0 : index
      %12 = vector.load %arg8[%c0_10, %c0_11] : memref<128x128xf32, #tpu.memory_space<vmem>>, vector<128x128xf32>
      %c0_12 = arith.constant 0 : index
      %c0_13 = arith.constant 0 : index
      %13 = vector.load %arg5[%c0_12, %c0_13] : memref<1x128xf32, #tpu.memory_space<vmem>>, vector<1x128xf32>
      %14 = vector.broadcast %13 : vector<1x128xf32> to vector<128x128xf32>
      %15 = arith.mulf %12, %14 : vector<128x128xf32>
      %c0_14 = arith.constant 0 : index
      %c0_15 = arith.constant 0 : index
      %16 = vector.load %arg6[%c0_14, %c0_15] : memref<1x128xf32, #tpu.memory_space<vmem>>, vector<1x128xf32>
      %17 = vector.broadcast %16 : vector<1x128xf32> to vector<128x128xf32>
      %18 = arith.addf %15, %17 : vector<128x128xf32>
      %cst_16 = arith.constant 0.000000e+00 : f32
      %19 = vector.broadcast %cst_16 : f32 to vector<128x128xf32>
      %20 = arith.cmpf ogt, %18, %19 : vector<128x128xf32>
      %cst_17 = arith.constant 1.000000e-01 : f32
      %21 = vector.broadcast %cst_17 : f32 to vector<128x128xf32>
      %22 = arith.mulf %21, %18 : vector<128x128xf32>
      %23 = arith.select %20, %18, %22 : vector<128x128xi1>, vector<128x128xf32>
      %c0_18 = arith.constant 0 : index
      %c0_19 = arith.constant 0 : index
      %24 = vector.load %arg7[%c0_18, %c0_19] : memref<128x128xf32, #tpu.memory_space<vmem>>, vector<128x128xf32>
      tpu.vector_store %arg7[%c0_18, %c0_19], %23 {strides = array<i32>} : memref<128x128xf32, #tpu.memory_space<vmem>>, vector<128x128xf32>,
    } else {
    }
    return
  }
  func.func @transform_0(%arg0: i32, %arg1: i32, %arg2: i32) -> (i32, i32) {
    %c0_i32 = arith.constant 0 : i32
    return %arg0, %arg2 : i32, i32
  }
  func.func @transform_1(%arg0: i32, %arg1: i32, %arg2: i32) -> (i32, i32) {
    %c0_i32 = arith.constant 0 : i32
    return %arg2, %arg1 : i32, i32
  }
  func.func @transform_2(%arg0: i32, %arg1: i32, %arg2: i32) -> (i32, i32) {
    %c0_i32 = arith.constant 0 : i32
    %c0_i32_0 = arith.constant 0 : i32
    return %c0_i32, %arg1 : i32, i32
  }
  func.func @transform_3(%arg0: i32, %arg1: i32, %arg2: i32) -> (i32, i32) {
    %c0_i32 = arith.constant 0 : i32
    %c0_i32_0 = arith.constant 0 : i32
    return %c0_i32, %arg1 : i32, i32
  }
  func.func @transform_4(%arg0: i32, %arg1: i32, %arg2: i32) -> (i32, i32) {
    %c0_i32 = arith.constant 0 : i32
    return %arg0, %arg1 : i32, i32
  }
}

module attributes {stable_mosaic.version = 11 : i64} {
  func.func @_add_kernel(%arg0: memref<16x128xf32, #tpu.memory_space<vmem>>, %arg1: memref<16x128xf32, #tpu.memory_space<vmem>>, %arg2: memref<16x128xf32, #tpu.memory_space<vmem>>) attributes {dimension_semantics = [], scalar_prefetch = 0 : i64, scratch_operands = 0 : i64, tpu.core_type = #tpu.core_type<tc>} {
    %c0 = arith.constant 0 : index
    %c0_0 = arith.constant 0 : index
    %0 = vector.load %arg0[%c0, %c0_0] : memref<16x128xf32, #tpu.memory_space<vmem>>, vector<16x128xf32>
    %c0_1 = arith.constant 0 : index
    %c0_2 = arith.constant 0 : index
    %1 = vector.load %arg1[%c0_1, %c0_2] : memref<16x128xf32, #tpu.memory_space<vmem>>, vector<16x128xf32>
    %2 = arith.addf %0, %1 : vector<16x128xf32>
    %c0_3 = arith.constant 0 : index
    %c0_4 = arith.constant 0 : index
    %3 = vector.load %arg2[%c0_3, %c0_4] : memref<16x128xf32, #tpu.memory_space<vmem>>, vector<16x128xf32>
    tpu.vector_store %arg2[%c0_3, %c0_4], %2 {strides = array<i32>} : memref<16x128xf32, #tpu.memory_space<vmem>>, vector<16x128xf32>,
    return
  }
}

module attributes {stable_mosaic.version = 11 : i64} {
  func.func @_conv_gemm_kernel(%arg0: i32, %arg1: i32, %arg2: i32, %arg3: memref<256x128xbf16, #tpu.memory_space<vmem>>, %arg4: memref<128x128xbf16, #tpu.memory_space<vmem>>, %arg5: memref<1x128xf32, #tpu.memory_space<vmem>>, %arg6: memref<1x128xf32, #tpu.memory_space<vmem>>, %arg7: memref<256x128xf32, #tpu.memory_space<vmem>>, %arg8: memref<256x128xf32, #tpu.memory_space<vmem>>) attributes {dimension_semantics = [#tpu.dimension_semantics<parallel>, #tpu.dimension_semantics<parallel>, #tpu.dimension_semantics<arbitrary>], iteration_bounds = array<i64: 2, 1, 1>, scalar_prefetch = 0 : i64, scratch_operands = 1 : i64, tpu.core_type = #tpu.core_type<tc>, window_params = [{transform_indices = @transform_0, window_bounds = array<i64: 256, 128>}, {transform_indices = @transform_1, window_bounds = array<i64: 128, 128>}, {transform_indices = @transform_2, window_bounds = array<i64: 1, 128>}, {transform_indices = @transform_3, window_bounds = array<i64: 1, 128>}, {transform_indices = @transform_4, window_bounds = array<i64: 256, 128>}]} {
    %c0_i32 = arith.constant 0 : i32
    %0 = arith.cmpi eq, %arg2, %c0_i32 : i32
    %1 = arith.extui %0 : i1 to i32
    %c0_i32_0 = arith.constant 0 : i32
    %2 = arith.cmpi ne, %1, %c0_i32_0 : i32
    scf.if %2 {
      %cst_10 = arith.constant 0.000000e+00 : f32
      %12 = vector.broadcast %cst_10 : f32 to vector<256x128xf32>
      %c0_11 = arith.constant 0 : index
      %c0_12 = arith.constant 0 : index
      %13 = vector.load %arg8[%c0_11, %c0_12] : memref<256x128xf32, #tpu.memory_space<vmem>>, vector<256x128xf32>
      tpu.vector_store %arg8[%c0_11, %c0_12], %12 {strides = array<i32>} : memref<256x128xf32, #tpu.memory_space<vmem>>, vector<256x128xf32>,
    } else {
    }
    %c0 = arith.constant 0 : index
    %c0_1 = arith.constant 0 : index
    %3 = vector.load %arg8[%c0, %c0_1] : memref<256x128xf32, #tpu.memory_space<vmem>>, vector<256x128xf32>
    %c0_2 = arith.constant 0 : index
    %c0_3 = arith.constant 0 : index
    %4 = vector.load %arg3[%c0_2, %c0_3] : memref<256x128xbf16, #tpu.memory_space<vmem>>, vector<256x128xbf16>
    %c0_4 = arith.constant 0 : index
    %c0_5 = arith.constant 0 : index
    %5 = vector.load %arg4[%c0_4, %c0_5] : memref<128x128xbf16, #tpu.memory_space<vmem>>, vector<128x128xbf16>
    %cst = arith.constant dense<0.000000e+00> : vector<256x128xf32>
    %6 = tpu.matmul %4, %5, %cst {dimension_numbers = #tpu.dot_dimension_numbers<[1], [0], [0], [1], [0, 0, 1, 1], [], []>} : vector<256x128xbf16>, vector<128x128xbf16>, vector<256x128xf32> -> vector<256x128xf32>
    %7 = arith.addf %3, %6 : vector<256x128xf32>
    %c0_6 = arith.constant 0 : index
    %c0_7 = arith.constant 0 : index
    %8 = vector.load %arg8[%c0_6, %c0_7] : memref<256x128xf32, #tpu.memory_space<vmem>>, vector<256x128xf32>
    tpu.vector_store %arg8[%c0_6, %c0_7], %7 {strides = array<i32>} : memref<256x128xf32, #tpu.memory_space<vmem>>, vector<256x128xf32>,
    %c0_i32_8 = arith.constant 0 : i32
    %9 = arith.cmpi eq, %arg2, %c0_i32_8 : i32
    %10 = arith.extui %9 : i1 to i32
    %c0_i32_9 = arith.constant 0 : i32
    %11 = arith.cmpi ne, %10, %c0_i32_9 : i32
    scf.if %11 {
      %c0_10 = arith.constant 0 : index
      %c0_11 = arith.constant 0 : index
      %12 = vector.load %arg8[%c0_10, %c0_11] : memref<256x128xf32, #tpu.memory_space<vmem>>, vector<256x128xf32>
      %c0_12 = arith.constant 0 : index
      %c0_13 = arith.constant 0 : index
      %13 = vector.load %arg5[%c0_12, %c0_13] : memref<1x128xf32, #tpu.memory_space<vmem>>, vector<1x128xf32>
      %14 = vector.broadcast %13 : vector<1x128xf32> to vector<256x128xf32>
      %15 = arith.mulf %12, %14 : vector<256x128xf32>
      %c0_14 = arith.constant 0 : index
      %c0_15 = arith.constant 0 : index
      %16 = vector.load %arg6[%c0_14, %c0_15] : memref<1x128xf32, #tpu.memory_space<vmem>>, vector<1x128xf32>
      %17 = vector.broadcast %16 : vector<1x128xf32> to vector<256x128xf32>
      %18 = arith.addf %15, %17 : vector<256x128xf32>
      %c0_16 = arith.constant 0 : index
      %c0_17 = arith.constant 0 : index
      %19 = vector.load %arg7[%c0_16, %c0_17] : memref<256x128xf32, #tpu.memory_space<vmem>>, vector<256x128xf32>
      tpu.vector_store %arg7[%c0_16, %c0_17], %18 {strides = array<i32>} : memref<256x128xf32, #tpu.memory_space<vmem>>, vector<256x128xf32>,
    } else {
    }
    return
  }
  func.func @transform_0(%arg0: i32, %arg1: i32, %arg2: i32) -> (i32, i32) {
    %c0_i32 = arith.constant 0 : i32
    return %arg0, %arg2 : i32, i32
  }
  func.func @transform_1(%arg0: i32, %arg1: i32, %arg2: i32) -> (i32, i32) {
    %c0_i32 = arith.constant 0 : i32
    return %arg2, %arg1 : i32, i32
  }
  func.func @transform_2(%arg0: i32, %arg1: i32, %arg2: i32) -> (i32, i32) {
    %c0_i32 = arith.constant 0 : i32
    %c0_i32_0 = arith.constant 0 : i32
    return %c0_i32, %arg1 : i32, i32
  }
  func.func @transform_3(%arg0: i32, %arg1: i32, %arg2: i32) -> (i32, i32) {
    %c0_i32 = arith.constant 0 : i32
    %c0_i32_0 = arith.constant 0 : i32
    return %c0_i32, %arg1 : i32, i32
  }
  func.func @transform_4(%arg0: i32, %arg1: i32, %arg2: i32) -> (i32, i32) {
    %c0_i32 = arith.constant 0 : i32
    return %arg0, %arg1 : i32, i32
  }
}

module attributes {stable_mosaic.version = 11 : i64} {
  func.func @_yolo_head_kernel(%arg0: memref<8x1536xf32, #tpu.memory_space<vmem>>, %arg1: memref<4x1536xf32, #tpu.memory_space<vmem>>, %arg2: memref<8x1536xf32, #tpu.memory_space<vmem>>) attributes {dimension_semantics = [], scalar_prefetch = 0 : i64, scratch_operands = 0 : i64, tpu.core_type = #tpu.core_type<tc>} {
    %c0 = arith.constant 0 : index
    %c0_0 = arith.constant 0 : index
    %0 = vector.load %arg0[%c0, %c0_0] : memref<8x1536xf32, #tpu.memory_space<vmem>>, vector<8x1536xf32>
    %c0_1 = arith.constant 0 : index
    %c0_2 = arith.constant 0 : index
    %1 = vector.load %arg1[%c0_1, %c0_2] : memref<4x1536xf32, #tpu.memory_space<vmem>>, vector<4x1536xf32>
    %2 = arith.negf %0 : vector<8x1536xf32>
    %3 = math.exp %2 : vector<8x1536xf32>
    %cst = arith.constant 1.000000e+00 : f32
    %4 = vector.broadcast %cst : f32 to vector<8x1536xf32>
    %5 = arith.addf %4, %3 : vector<8x1536xf32>
    %6 = arith.divf %4, %5 : vector<8x1536xf32>
    %7 = vector.extract_strided_slice %6 {offsets = [0, 0], sizes = [2, 1536], strides = [1, 1]} : vector<8x1536xf32> to vector<2x1536xf32>
    %8 = vector.extract_strided_slice %1 {offsets = [0, 0], sizes = [2, 1536], strides = [1, 1]} : vector<4x1536xf32> to vector<2x1536xf32>
    %9 = arith.addf %7, %8 : vector<2x1536xf32>
    %cst_3 = arith.constant 2.000000e+00 : f32
    %10 = vector.broadcast %cst_3 : f32 to vector<2x1536xf32>
    %11 = arith.mulf %9, %10 : vector<2x1536xf32>
    %c0_4 = arith.constant 0 : index
    %c0_5 = arith.constant 0 : index
    %12 = vector.load %arg2[%c0_4, %c0_5] : memref<8x1536xf32, #tpu.memory_space<vmem>>, vector<2x1536xf32>
    tpu.vector_store %arg2[%c0_4, %c0_5], %11 {strides = array<i32>} : memref<8x1536xf32, #tpu.memory_space<vmem>>, vector<2x1536xf32>,
    %13 = vector.extract_strided_slice %0 {offsets = [2, 0], sizes = [2, 1536], strides = [1, 1]} : vector<8x1536xf32> to vector<2x1536xf32>
    %14 = math.exp %13 : vector<2x1536xf32>
    %15 = vector.extract_strided_slice %1 {offsets = [2, 0], sizes = [2, 1536], strides = [1, 1]} : vector<4x1536xf32> to vector<2x1536xf32>
    %16 = arith.mulf %14, %15 : vector<2x1536xf32>
    %cst_6 = arith.constant 2.000000e+00 : f32
    %17 = vector.broadcast %cst_6 : f32 to vector<2x1536xf32>
    %18 = arith.mulf %16, %17 : vector<2x1536xf32>
    %c2 = arith.constant 2 : index
    %c0_7 = arith.constant 0 : index
    %19 = vector.load %arg2[%c2, %c0_7] : memref<8x1536xf32, #tpu.memory_space<vmem>>, vector<2x1536xf32>
    tpu.vector_store %arg2[%c2, %c0_7], %18 {strides = array<i32>} : memref<8x1536xf32, #tpu.memory_space<vmem>>, vector<2x1536xf32>,
    %cst_8 = arith.constant 0.000000e+00 : f32
    %20 = vector.broadcast %cst_8 : f32 to vector<1x1536xf32>
    %c4 = arith.constant 4 : index
    %c0_9 = arith.constant 0 : index
    %21 = vector.load %arg2[%c4, %c0_9] : memref<8x1536xf32, #tpu.memory_space<vmem>>, vector<1x1536xf32>
    tpu.vector_store %arg2[%c4, %c0_9], %20 {strides = array<i32>} : memref<8x1536xf32, #tpu.memory_space<vmem>>, vector<1x1536xf32>,
    %22 = vector.extract_strided_slice %6 {offsets = [5, 0], sizes = [3, 1536], strides = [1, 1]} : vector<8x1536xf32> to vector<3x1536xf32>
    %c5 = arith.constant 5 : index
    %c0_10 = arith.constant 0 : index
    %23 = vector.load %arg2[%c5, %c0_10] : memref<8x1536xf32, #tpu.memory_space<vmem>>, vector<3x1536xf32>
    tpu.vector_store %arg2[%c5, %c0_10], %22 {strides = array<i32>} : memref<8x1536xf32, #tpu.memory_space<vmem>>, vector<3x1536xf32>,
    return
  }
}

module attributes {stable_mosaic.version = 11 : i64} {
  func.func @_conv_gemm_kernel(%arg0: i32, %arg1: i32, %arg2: i32, %arg3: memref<128x128xbf16, #tpu.memory_space<vmem>>, %arg4: memref<128x128xbf16, #tpu.memory_space<vmem>>, %arg5: memref<1x128xf32, #tpu.memory_space<vmem>>, %arg6: memref<1x128xf32, #tpu.memory_space<vmem>>, %arg7: memref<128x128xf32, #tpu.memory_space<vmem>>, %arg8: memref<128x128xf32, #tpu.memory_space<vmem>>) attributes {dimension_semantics = [#tpu.dimension_semantics<parallel>, #tpu.dimension_semantics<parallel>, #tpu.dimension_semantics<arbitrary>], iteration_bounds = array<i64: 1, 1, 1>, scalar_prefetch = 0 : i64, scratch_operands = 1 : i64, tpu.core_type = #tpu.core_type<tc>, window_params = [{transform_indices = @transform_0, window_bounds = array<i64: 128, 128>}, {transform_indices = @transform_1, window_bounds = array<i64: 128, 128>}, {transform_indices = @transform_2, window_bounds = array<i64: 1, 128>}, {transform_indices = @transform_3, window_bounds = array<i64: 1, 128>}, {transform_indices = @transform_4, window_bounds = array<i64: 128, 128>}]} {
    %c0_i32 = arith.constant 0 : i32
    %0 = arith.cmpi eq, %arg2, %c0_i32 : i32
    %1 = arith.extui %0 : i1 to i32
    %c0_i32_0 = arith.constant 0 : i32
    %2 = arith.cmpi ne, %1, %c0_i32_0 : i32
    scf.if %2 {
      %cst_10 = arith.constant 0.000000e+00 : f32
      %12 = vector.broadcast %cst_10 : f32 to vector<128x128xf32>
      %c0_11 = arith.constant 0 : index
      %c0_12 = arith.constant 0 : index
      %13 = vector.load %arg8[%c0_11, %c0_12] : memref<128x128xf32, #tpu.memory_space<vmem>>, vector<128x128xf32>
      tpu.vector_store %arg8[%c0_11, %c0_12], %12 {strides = array<i32>} : memref<128x128xf32, #tpu.memory_space<vmem>>, vector<128x128xf32>,
    } else {
    }
    %c0 = arith.constant 0 : index
    %c0_1 = arith.constant 0 : index
    %3 = vector.load %arg8[%c0, %c0_1] : memref<128x128xf32, #tpu.memory_space<vmem>>, vector<128x128xf32>
    %c0_2 = arith.constant 0 : index
    %c0_3 = arith.constant 0 : index
    %4 = vector.load %arg3[%c0_2, %c0_3] : memref<128x128xbf16, #tpu.memory_space<vmem>>, vector<128x128xbf16>
    %c0_4 = arith.constant 0 : index
    %c0_5 = arith.constant 0 : index
    %5 = vector.load %arg4[%c0_4, %c0_5] : memref<128x128xbf16, #tpu.memory_space<vmem>>, vector<128x128xbf16>
    %cst = arith.constant dense<0.000000e+00> : vector<128x128xf32>
    %6 = tpu.matmul %4, %5, %cst {dimension_numbers = #tpu.dot_dimension_numbers<[1], [0], [0], [1], [0, 0, 1, 1], [], []>} : vector<128x128xbf16>, vector<128x128xbf16>, vector<128x128xf32> -> vector<128x128xf32>
    %7 = arith.addf %3, %6 : vector<128x128xf32>
    %c0_6 = arith.constant 0 : index
    %c0_7 = arith.constant 0 : index
    %8 = vector.load %arg8[%c0_6, %c0_7] : memref<128x128xf32, #tpu.memory_space<vmem>>, vector<128x128xf32>
    tpu.vector_store %arg8[%c0_6, %c0_7], %7 {strides = array<i32>} : memref<128x128xf32, #tpu.memory_space<vmem>>, vector<128x128xf32>,
    %c0_i32_8 = arith.constant 0 : i32
    %9 = arith.cmpi eq, %arg2, %c0_i32_8 : i32
    %10 = arith.extui %9 : i1 to i32
    %c0_i32_9 = arith.constant 0 : i32
    %11 = arith.cmpi ne, %10, %c0_i32_9 : i32
    scf.if %11 {
      %c0_10 = arith.constant 0 : index
      %c0_11 = arith.constant 0 : index
      %12 = vector.load %arg8[%c0_10, %c0_11] : memref<128x128xf32, #tpu.memory_space<vmem>>, vector<128x128xf32>
      %c0_12 = arith.constant 0 : index
      %c0_13 = arith.constant 0 : index
      %13 = vector.load %arg5[%c0_12, %c0_13] : memref<1x128xf32, #tpu.memory_space<vmem>>, vector<1x128xf32>
      %14 = vector.broadcast %13 : vector<1x128xf32> to vector<128x128xf32>
      %15 = arith.mulf %12, %14 : vector<128x128xf32>
      %c0_14 = arith.constant 0 : index
      %c0_15 = arith.constant 0 : index
      %16 = vector.load %arg6[%c0_14, %c0_15] : memref<1x128xf32, #tpu.memory_space<vmem>>, vector<1x128xf32>
      %17 = vector.broadcast %16 : vector<1x128xf32> to vector<128x128xf32>
      %18 = arith.addf %15, %17 : vector<128x128xf32>
      %c0_16 = arith.constant 0 : index
      %c0_17 = arith.constant 0 : index
      %19 = vector.load %arg7[%c0_16, %c0_17] : memref<128x128xf32, #tpu.memory_space<vmem>>, vector<128x128xf32>
      tpu.vector_store %arg7[%c0_16, %c0_17], %18 {strides = array<i32>} : memref<128x128xf32, #tpu.memory_space<vmem>>, vector<128x128xf32>,
    } else {
    }
    return
  }
  func.func @transform_0(%arg0: i32, %arg1: i32, %arg2: i32) -> (i32, i32) {
    %c0_i32 = arith.constant 0 : i32
    return %arg0, %arg2 : i32, i32
  }
  func.func @transform_1(%arg0: i32, %arg1: i32, %arg2: i32) -> (i32, i32) {
    %c0_i32 = arith.constant 0 : i32
    return %arg2, %arg1 : i32, i32
  }
  func.func @transform_2(%arg0: i32, %arg1: i32, %arg2: i32) -> (i32, i32) {
    %c0_i32 = arith.constant 0 : i32
    %c0_i32_0 = arith.constant 0 : i32
    return %c0_i32, %arg1 : i32, i32
  }
  func.func @transform_3(%arg0: i32, %arg1: i32, %arg2: i32) -> (i32, i32) {
    %c0_i32 = arith.constant 0 : i32
    %c0_i32_0 = arith.constant 0 : i32
    return %c0_i32, %arg1 : i32, i32
  }
  func.func @transform_4(%arg0: i32, %arg1: i32, %arg2: i32) -> (i32, i32) {
    %c0_i32 = arith.constant 0 : i32
    return %arg0, %arg1 : i32, i32
  }
}

module attributes {stable_mosaic.version = 11 : i64} {
  func.func @_yolo_head_kernel(%arg0: memref<8x384xf32, #tpu.memory_space<vmem>>, %arg1: memref<4x384xf32, #tpu.memory_space<vmem>>, %arg2: memref<8x384xf32, #tpu.memory_space<vmem>>) attributes {dimension_semantics = [], scalar_prefetch = 0 : i64, scratch_operands = 0 : i64, tpu.core_type = #tpu.core_type<tc>} {
    %c0 = arith.constant 0 : index
    %c0_0 = arith.constant 0 : index
    %0 = vector.load %arg0[%c0, %c0_0] : memref<8x384xf32, #tpu.memory_space<vmem>>, vector<8x384xf32>
    %c0_1 = arith.constant 0 : index
    %c0_2 = arith.constant 0 : index
    %1 = vector.load %arg1[%c0_1, %c0_2] : memref<4x384xf32, #tpu.memory_space<vmem>>, vector<4x384xf32>
    %2 = arith.negf %0 : vector<8x384xf32>
    %3 = math.exp %2 : vector<8x384xf32>
    %cst = arith.constant 1.000000e+00 : f32
    %4 = vector.broadcast %cst : f32 to vector<8x384xf32>
    %5 = arith.addf %4, %3 : vector<8x384xf32>
    %6 = arith.divf %4, %5 : vector<8x384xf32>
    %7 = vector.extract_strided_slice %6 {offsets = [0, 0], sizes = [2, 384], strides = [1, 1]} : vector<8x384xf32> to vector<2x384xf32>
    %8 = vector.extract_strided_slice %1 {offsets = [0, 0], sizes = [2, 384], strides = [1, 1]} : vector<4x384xf32> to vector<2x384xf32>
    %9 = arith.addf %7, %8 : vector<2x384xf32>
    %cst_3 = arith.constant 4.000000e+00 : f32
    %10 = vector.broadcast %cst_3 : f32 to vector<2x384xf32>
    %11 = arith.mulf %9, %10 : vector<2x384xf32>
    %c0_4 = arith.constant 0 : index
    %c0_5 = arith.constant 0 : index
    %12 = vector.load %arg2[%c0_4, %c0_5] : memref<8x384xf32, #tpu.memory_space<vmem>>, vector<2x384xf32>
    tpu.vector_store %arg2[%c0_4, %c0_5], %11 {strides = array<i32>} : memref<8x384xf32, #tpu.memory_space<vmem>>, vector<2x384xf32>,
    %13 = vector.extract_strided_slice %0 {offsets = [2, 0], sizes = [2, 384], strides = [1, 1]} : vector<8x384xf32> to vector<2x384xf32>
    %14 = math.exp %13 : vector<2x384xf32>
    %15 = vector.extract_strided_slice %1 {offsets = [2, 0], sizes = [2, 384], strides = [1, 1]} : vector<4x384xf32> to vector<2x384xf32>
    %16 = arith.mulf %14, %15 : vector<2x384xf32>
    %cst_6 = arith.constant 4.000000e+00 : f32
    %17 = vector.broadcast %cst_6 : f32 to vector<2x384xf32>
    %18 = arith.mulf %16, %17 : vector<2x384xf32>
    %c2 = arith.constant 2 : index
    %c0_7 = arith.constant 0 : index
    %19 = vector.load %arg2[%c2, %c0_7] : memref<8x384xf32, #tpu.memory_space<vmem>>, vector<2x384xf32>
    tpu.vector_store %arg2[%c2, %c0_7], %18 {strides = array<i32>} : memref<8x384xf32, #tpu.memory_space<vmem>>, vector<2x384xf32>,
    %cst_8 = arith.constant 0.000000e+00 : f32
    %20 = vector.broadcast %cst_8 : f32 to vector<1x384xf32>
    %c4 = arith.constant 4 : index
    %c0_9 = arith.constant 0 : index
    %21 = vector.load %arg2[%c4, %c0_9] : memref<8x384xf32, #tpu.memory_space<vmem>>, vector<1x384xf32>
    tpu.vector_store %arg2[%c4, %c0_9], %20 {strides = array<i32>} : memref<8x384xf32, #tpu.memory_space<vmem>>, vector<1x384xf32>,
    %22 = vector.extract_strided_slice %6 {offsets = [5, 0], sizes = [3, 384], strides = [1, 1]} : vector<8x384xf32> to vector<3x384xf32>
    %c5 = arith.constant 5 : index
    %c0_10 = arith.constant 0 : index
    %23 = vector.load %arg2[%c5, %c0_10] : memref<8x384xf32, #tpu.memory_space<vmem>>, vector<3x384xf32>
    tpu.vector_store %arg2[%c5, %c0_10], %22 {strides = array<i32>} : memref<8x384xf32, #tpu.memory_space<vmem>>, vector<3x384xf32>,
    return
  }
}

</mosaic_0001>

<llo_original>
// kernel: _lambda_.11
$region0: #{_lambda_.11}
  #allocation0 [shape = 'u32[]', space=smem, size = 0x4, offset = 0x4, fixed_abs, tag = 'smem constant byte address 0x4 - core index']
  #allocation1 [shape = 'u32[144,128]{1,0:T(1,128)}', space=vmem, size = 0x12000, scoped, tag = 'internal scratch']
  #allocation2 [shape = 'f32[256,128]{1,0:T(8,128)}', space=vmem, size = 0x20000, scoped, tag = 'scratch operand']
  %s0 = inlined_call_operand.vmem [shape: bf16[2048,128], index: 0, kind: input, shape index: {}]
  %s1 = inlined_call_operand.vmem [shape: bf16[128,128], index: 1, kind: input, shape index: {}]
  %s2 = inlined_call_operand.vmem [shape: f32[1,128], index: 2, kind: input, shape index: {}]
  %s3 = inlined_call_operand.vmem [shape: f32[1,128], index: 3, kind: input, shape index: {}]
  %s4 = inlined_call_operand.vmem [shape: f32[2048,128], index: 4, kind: output, shape index: {}]
  %s5 = sld [smem:[#allocation0]]
  $region57: #{_lambda_.11} parent=0
    _
  %s7 = ssub.s32 1, %s5
  %s8 = scalar_select 0, %s7, %s5
  loop: start=0, step=1, limit=10
  $region2: #{_lambda_.11} parent=0 // loop_pre_header
    _
  $region3: #{_lambda_.11} parent=0 // loop_header
    %s10 = sphi 0, %s14
    %p11 = scmp.ge.s32.totalorder %s10, 10
    %s17 = sphi 0, %s36
    %s18 = sphi 0, %s32
    %s19 = sphi 0, %s28
    %s20 = sphi 0, %s17
    %s21 = sphi 0, %s18
    %s22 = sphi 0, %s19
    %s23 = sphi 0, %s20
    %s24 = sphi 0, %s21
    %s25 = sphi 0, %s22
    %s41 = sphi 0, %s43
    %s44 = sphi 0, %s41
    %s45 = sphi 0, %s44
    %s61 = sphi 0, %s45
    %s69 = sphi 0, %s71
    %s72 = sphi 0, %s69
    %s73 = sphi 0, %s72
    %s89 = sphi 0, %s73
    %s95 = sphi 0, %s97
    %s98 = sphi 0, %s95
    %s99 = sphi 0, %s98
    %s115 = sphi 0, %s99
    %s121 = sphi 0, %s123
    %s124 = sphi 0, %s121
    %s125 = sphi 0, %s124
    %s141 = sphi 0, %s125
    %s149 = sphi 0, %s151
    %s152 = sphi 0, %s149
    %s153 = sphi 0, %s152
    %s169 = sphi 0, %s153
  $region4: #{_lambda_.11} parent=0 // loop_header_branch
    %13 = sbr.rel (%p11) target = $region8
  $region5: #{_lambda_.11} parent=0 // loop_body
    %s15 = ssub.s32 %s10, 1
    %s16 = ssub.s32 %s10, 2
    %s26 = sadd.s32 1, %s19
    %p27 = scmp.ge.s32.totalorder %s26, 1
    %s28 = scalar_select %p27, 0, %s26
    %s29 = sadd.s32 1, %s18
    %s30 = scalar_select %p27, %s29, %s18
    %p31 = scmp.ge.s32.totalorder %s30, 1
    %s32 = scalar_select %p31, 0, %s30
    %s33 = sadd.s32 1, %s17
    %s34 = scalar_select %p31, %s33, %s17
    %p35 = scmp.ge.s32.totalorder %s34, 8
    %s36 = scalar_select %p35, 0, %s34
    %s37 = ssub.s32 %s17, %s36
    %s38 = ssub.s32 %s19, %s28
    %s39 = sor.u32 %s37, %s38
    %p40 = scmp.eq.s32.totalorder %s39, 0
    %s42 = sadd.s32 %s41, 1
    %s43 = scalar_select %p40, %s41, %s42
    %p46 = pneg %p40
    %p47 = scmp.eq.s32.totalorder %s10, 7
    %p48 = por %p46, %p47
    %p49 = scmp.ne.s32.totalorder %s41, %s44
    %p50 = scmp.eq.s32.totalorder %s10, 0
    %p51 = por %p49, %p50
    %p52 = scmp.ne.s32.totalorder %s41, %s44
    %p53 = scmp.eq.s32.totalorder %s15, 7
    %p54 = por %p52, %p53
    %p55 = scmp.ne.s32.totalorder %s44, %s45
    %p56 = scmp.eq.s32.totalorder %s15, 0
    %p57 = por %p55, %p56
    %p58 = scmp.ne.s32.totalorder %s44, %s45
    %p59 = scmp.eq.s32.totalorder %s16, 7
    %p60 = por %p58, %p59
    %p62 = scmp.ne.s32.totalorder %s45, %s61
    %p63 = scmp.eq.s32.totalorder %s16, 0
    %p64 = por %p62, %p63
    %s65 = ssub.s32 %s19, %s28
    %s66 = ssub.s32 %s18, %s32
    %s67 = sor.u32 %s65, %s66
    %p68 = scmp.eq.s32.totalorder %s67, 0
    %s70 = sadd.s32 %s69, 1
    %s71 = scalar_select %p68, %s69, %s70
    %p74 = pneg %p68
    %p75 = scmp.eq.s32.totalorder %s10, 7
    %p76 = por %p74, %p75
    %p77 = scmp.ne.s32.totalorder %s69, %s72
    %p78 = scmp.eq.s32.totalorder %s10, 0
    %p79 = por %p77, %p78
    %p80 = scmp.ne.s32.totalorder %s69, %s72
    %p81 = scmp.eq.s32.totalorder %s15, 7
    %p82 = por %p80, %p81
    %p83 = scmp.ne.s32.totalorder %s72, %s73
    %p84 = scmp.eq.s32.totalorder %s15, 0
    %p85 = por %p83, %p84
    %p86 = scmp.ne.s32.totalorder %s72, %s73
    %p87 = scmp.eq.s32.totalorder %s16, 7
    %p88 = por %p86, %p87
    %p90 = scmp.ne.s32.totalorder %s73, %s89
    %p91 = scmp.eq.s32.totalorder %s16, 0
    %p92 = por %p90, %p91
    %s93 = ssub.s32 %s18, %s32
    %p94 = scmp.eq.s32.totalorder %s93, 0
    %s96 = sadd.s32 %s95, 1
    %s97 = scalar_select %p94, %s95, %s96
    %p100 = pneg %p94
    %p101 = scmp.eq.s32.totalorder %s10, 7
    %p102 = por %p100, %p101
    %p103 = scmp.ne.s32.totalorder %s95, %s98
    %p104 = scmp.eq.s32.totalorder %s10, 0
    %p105 = por %p103, %p104
    %p106 = scmp.ne.s32.totalorder %s95, %s98
    %p107 = scmp.eq.s32.totalorder %s15, 7
    %p108 = por %p106, %p107
    %p109 = scmp.ne.s32.totalorder %s98, %s99
    %p110 = scmp.eq.s32.totalorder %s15, 0
    %p111 = por %p109, %p110
    %p112 = scmp.ne.s32.totalorder %s98, %s99
    %p113 = scmp.eq.s32.totalorder %s16, 7
    %p114 = por %p112, %p113
    %p116 = scmp.ne.s32.totalorder %s99, %s115
    %p117 = scmp.eq.s32.totalorder %s16, 0
    %p118 = por %p116, %p117
    %s119 = ssub.s32 %s18, %s32
    %p120 = scmp.eq.s32.totalorder %s119, 0
    %s122 = sadd.s32 %s121, 1
    %s123 = scalar_select %p120, %s121, %s122
    %p126 = pneg %p120
    %p127 = scmp.eq.s32.totalorder %s10, 7
    %p128 = por %p126, %p127
    %p129 = scmp.ne.s32.totalorder %s121, %s124
    %p130 = scmp.eq.s32.totalorder %s10, 0
    %p131 = por %p129, %p130
    %p132 = scmp.ne.s32.totalorder %s121, %s124
    %p133 = scmp.eq.s32.totalorder %s15, 7
    %p134 = por %p132, %p133
    %p135 = scmp.ne.s32.totalorder %s124, %s125
    %p136 = scmp.eq.s32.totalorder %s15, 0
    %p137 = por %p135, %p136
    %p138 = scmp.ne.s32.totalorder %s124, %s125
    %p139 = scmp.eq.s32.totalorder %s16, 7
    %p140 = por %p138, %p139
    %p142 = scmp.ne.s32.totalorder %s125, %s141
    %p143 = scmp.eq.s32.totalorder %s16, 0
    %p144 = por %p142, %p143
    %s145 = ssub.s32 %s17, %s36
    %s146 = ssub.s32 %s18, %s32
    %s147 = sor.u32 %s145, %s146
    %p148 = scmp.eq.s32.totalorder %s147, 0
    %s150 = sadd.s32 %s149, 1
    %s151 = scalar_select %p148, %s149, %s150
    %p154 = pneg %p148
    %p155 = scmp.eq.s32.totalorder %s10, 7
    %p156 = por %p154, %p155
    %p157 = scmp.ne.s32.totalorder %s149, %s152
    %p158 = scmp.eq.s32.totalorder %s10, 0
    %p159 = por %p157, %p158
    %p160 = scmp.ne.s32.totalorder %s149, %s152
    %p161 = scmp.eq.s32.totalorder %s15, 7
    %p162 = por %p160, %p161
    %p163 = scmp.ne.s32.totalorder %s152, %s153
    %p164 = scmp.eq.s32.totalorder %s15, 0
    %p165 = por %p163, %p164
    %p166 = scmp.ne.s32.totalorder %s152, %s153
    %p167 = scmp.eq.s32.totalorder %s16, 7
    %p168 = por %p166, %p167
    %p170 = scmp.ne.s32.totalorder %s153, %s169
    %p171 = scmp.eq.s32.totalorder %s16, 0
    %p172 = por %p170, %p171
    %p173 = scmp.le.s32.totalorder 1, %s10
    %p174 = scmp.lt.s32.totalorder %s10, 9
    %p175 = pnand %p173, %p174
    %p176 = pneg %p175
    // Predicated region
    $region9: #{_lambda_.11} parent=5 // pred_check
      _
    $region10: #{_lambda_.11} parent=5 // pred_check_branch
      %178 = sbr.rel (%p175) target = $region12
    $region11: #{_lambda_.11} parent=5 // pred_region
      %s179 = ssub.s32 %s10, 1
      // Predicated region
      $region13: #{_lambda_.11} parent=11 // pred_check
        %p180 = pneg %p85
      $region14: #{_lambda_.11} parent=11 // pred_check_branch
        %182 = sbr.rel (%p180) target = $region16
      $region15: #{_lambda_.11} parent=11 // pred_region
        %s183 = smul.u32 16, %s22
        %p184 = scmp.lt.s32.totalorder %s183, 15
        %s185 = scalar_select %p184, %s183, 15
        %p186 = scmp.lt.s32.totalorder %s21, 0
        %s187 = scalar_select %p186, %s21, 0
        %s188 = sadd.s32 %s187, %s185
        %s189 = smul.addr %s188, 4
        %s190 = scalar_lea.vmem %s1, %s189
        %s191 = smul.u32 16, %s22
      $region16: #{_lambda_.11} parent=11 // pred_fallthru
        _
      // Predicated region
      $region17: #{_lambda_.11} parent=11 // pred_check
        %p192 = pneg %p111
      $region18: #{_lambda_.11} parent=11 // pred_check_branch
        %194 = sbr.rel (%p192) target = $region20
      $region19: #{_lambda_.11} parent=11 // pred_region
        %p195 = scmp.lt.s32.totalorder %s21, 0
        %s196 = scalar_select %p195, %s21, 0
        %s197 = scalar_lea.vmem %s2, %s196
      $region20: #{_lambda_.11} parent=11 // pred_fallthru
        _
      // Predicated region
      $region21: #{_lambda_.11} parent=11 // pred_check
        %p198 = pneg %p137
      $region22: #{_lambda_.11} parent=11 // pred_check_branch
        %200 = sbr.rel (%p198) target = $region24
      $region23: #{_lambda_.11} parent=11 // pred_region
        %p201 = scmp.lt.s32.totalorder %s21, 0
        %s202 = scalar_select %p201, %s21, 0
        %s203 = scalar_lea.vmem %s3, %s202
      $region24: #{_lambda_.11} parent=11 // pred_fallthru
        _
    $region12: #{_lambda_.11} parent=5 // pred_fallthru
      _
    %p204 = scmp.lt.s32.totalorder %s10, 8
    // Predicated region
    $region25: #{_lambda_.11} parent=5 // pred_check
      %p205 = pneg %p204
    $region26: #{_lambda_.11} parent=5 // pred_check_branch
      %207 = sbr.rel (%p205) target = $region28
    $region27: #{_lambda_.11} parent=5 // pred_region
      // Predicated region
      $region29: #{_lambda_.11} parent=27 // pred_check
        %p208 = pneg %p51
      $region30: #{_lambda_.11} parent=27 // pred_check_branch
        %210 = sbr.rel (%p208) target = $region32
      $region31: #{_lambda_.11} parent=27 // pred_region
        %s211 = smul.u32 32, %s17
        %p212 = scmp.lt.s32.totalorder %s211, 255
        %s213 = scalar_select %p212, %s211, 255
        %p214 = scmp.lt.s32.totalorder %s19, 0
        %s215 = scalar_select %p214, %s19, 0
        %s216 = sadd.s32 %s215, %s213
        %s217 = smul.addr %s216, 4
        %s218 = scalar_lea.vmem %s0, %s217
        %s219 = smul.u32 32, %s17
      $region32: #{_lambda_.11} parent=27 // pred_fallthru
        _
    $region28: #{_lambda_.11} parent=5 // pred_fallthru
      _
    %p220 = scmp.le.s32.totalorder 1, %s10
    %p221 = scmp.lt.s32.totalorder %s10, 9
    %p222 = pnand %p220, %p221
    %p223 = pneg %p222
    // Predicated region
    $region33: #{_lambda_.11} parent=5 // pred_check
      _
    $region34: #{_lambda_.11} parent=5 // pred_check_branch
      %225 = sbr.rel (%p222) target = $region36
    $region35: #{_lambda_.11} parent=5 // pred_region
      %s226 = ssub.s32 %s10, 1
      %s227 = smul.u32 32, %s20
      %p228 = scmp.lt.s32.totalorder %s227, 255
      %s229 = scalar_select %p228, %s227, 255
      %p230 = scmp.lt.s32.totalorder %s22, 0
      %s231 = scalar_select %p230, %s22, 0
      %s232 = sadd.s32 %s231, %s229
      %s233 = smul.addr %s232, 4
      %s234 = scalar_lea.vmem %s0, %s233
      %p235 = pneg %p57
      %p236 = pneg %p54
      %s237 = smul.u32 16, %s22
      %p238 = scmp.lt.s32.totalorder %s237, 15
      %s239 = scalar_select %p238, %s237, 15
      %p240 = scmp.lt.s32.totalorder %s21, 0
      %s241 = scalar_select %p240, %s21, 0
      %s242 = sadd.s32 %s241, %s239
      %s243 = smul.addr %s242, 4
      %s244 = scalar_lea.vmem %s1, %s243
      %p245 = pneg %p85
      %p246 = pneg %p82
      %p247 = scmp.lt.s32.totalorder %s21, 0
      %s248 = scalar_select %p247, %s21, 0
      %s249 = scalar_lea.vmem %s2, %s248
      %p250 = pneg %p111
      %p251 = pneg %p108
      %p252 = scmp.lt.s32.totalorder %s21, 0
      %s253 = scalar_select %p252, %s21, 0
      %s254 = scalar_lea.vmem %s3, %s253
      %p255 = pneg %p137
      %p256 = pneg %p134
      %p257 = pneg %p165
      %p258 = pneg %p162
      %s259 = smul.u32 32, %s20
      %p260 = scmp.lt.s32.totalorder %s259, 255
      %s261 = scalar_select %p260, %s259, 255
      %p262 = scmp.lt.s32.totalorder %s21, 0
      %s263 = scalar_select %p262, %s21, 0
      %s264 = sadd.s32 %s263, %s261
      %s265 = smul.addr %s264, 8
      %s266 = scalar_lea.vmem %s4, %s265
      %s267 = smul.u32 32, %s20
      %p268 = scmp.lt.s32.totalorder %s267, 255
      %s269 = scalar_select %p268, %s267, 255
      %p270 = scmp.lt.s32.totalorder %s22, 0
      %s271 = scalar_select %p270, %s22, 0
      %s272 = sadd.s32 %s271, %s269
      %s273 = smul.addr %s272, 4
      %s274 = scalar_lea.vmem %s0, %s273
      %s275 = smul.u32 32, %s20
      %s276 = smul.u32 16, %s22
      %p277 = scmp.lt.s32.totalorder %s276, 15
      %s278 = scalar_select %p277, %s276, 15
      %p279 = scmp.lt.s32.totalorder %s21, 0
      %s280 = scalar_select %p279, %s21, 0
      %s281 = sadd.s32 %s280, %s278
      %s282 = smul.addr %s281, 4
      %s283 = scalar_lea.vmem %s1, %s282
      %s284 = smul.u32 16, %s22
      %p285 = scmp.lt.s32.totalorder %s21, 0
      %s286 = scalar_select %p285, %s21, 0
      %s287 = scalar_lea.vmem %s2, %s286
      %p288 = scmp.lt.s32.totalorder %s21, 0
      %s289 = scalar_select %p288, %s21, 0
      %s290 = scalar_lea.vmem %s3, %s289
      %s291 = smul.u32 32, %s20
      %p292 = scmp.lt.s32.totalorder %s291, 255
      %s293 = scalar_select %p292, %s291, 255
      %p294 = scmp.lt.s32.totalorder %s21, 0
      %s295 = scalar_select %p294, %s21, 0
      %s296 = sadd.s32 %s295, %s293
      %s297 = smul.addr %s296, 8
      %s298 = scalar_lea.vmem %s4, %s297
      %s299 = smul.u32 32, %s20
      %p301 = scmp.eq.s32.totalorder %s22, 0
      // Predicated region
      $region37: #{_lambda_.11} parent=35 // pred_check
        %p302 = pneg %p301
      $region38: #{_lambda_.11} parent=35 // pred_check_branch
        %304 = sbr.rel (%p302) target = $region40
      $region39: #{_lambda_.11} parent=35 // pred_region
        %305 = vst [vmem:[#allocation2] sm:$0xff] 0.0
        %306 = vst [vmem:[#allocation2 + $0x8] sm:$0xff] 0.0
        %307 = vst [vmem:[#allocation2 + $0x10] sm:$0xff] 0.0
        %308 = vst [vmem:[#allocation2 + $0x18] sm:$0xff] 0.0
        %309 = vst [vmem:[#allocation2 + $0x20] sm:$0xff] 0.0
        %310 = vst [vmem:[#allocation2 + $0x28] sm:$0xff] 0.0
        %311 = vst [vmem:[#allocation2 + $0x30] sm:$0xff] 0.0
        %312 = vst [vmem:[#allocation2 + $0x38] sm:$0xff] 0.0
        %313 = vst [vmem:[#allocation2 + $0x40] sm:$0xff] 0.0
        %314 = vst [vmem:[#allocation2 + $0x48] sm:$0xff] 0.0
        %315 = vst [vmem:[#allocation2 + $0x50] sm:$0xff] 0.0
        %316 = vst [vmem:[#allocation2 + $0x58] sm:$0xff] 0.0
        %317 = vst [vmem:[#allocation2 + $0x60] sm:$0xff] 0.0
        %318 = vst [vmem:[#allocation2 + $0x68] sm:$0xff] 0.0
        %319 = vst [vmem:[#allocation2 + $0x70] sm:$0xff] 0.0
        %320 = vst [vmem:[#allocation2 + $0x78] sm:$0xff] 0.0
        %321 = vst [vmem:[#allocation2 + $0x80] sm:$0xff] 0.0
        %322 = vst [vmem:[#allocation2 + $0x88] sm:$0xff] 0.0
        %323 = vst [vmem:[#allocation2 + $0x90] sm:$0xff] 0.0
        %324 = vst [vmem:[#allocation2 + $0x98] sm:$0xff] 0.0
        %325 = vst [vmem:[#allocation2 + $0xa0] sm:$0xff] 0.0
        %326 = vst [vmem:[#allocation2 + $0xa8] sm:$0xff] 0.0
        %327 = vst [vmem:[#allocation2 + $0xb0] sm:$0xff] 0.0
        %328 = vst [vmem:[#allocation2 + $0xb8] sm:$0xff] 0.0
        %329 = vst [vmem:[#allocation2 + $0xc0] sm:$0xff] 0.0
        %330 = vst [vmem:[#allocation2 + $0xc8] sm:$0xff] 0.0
        %331 = vst [vmem:[#allocation2 + $0xd0] sm:$0xff] 0.0
        %332 = vst [vmem:[#allocation2 + $0xd8] sm:$0xff] 0.0
        %333 = vst [vmem:[#allocation2 + $0xe0] sm:$0xff] 0.0
        %334 = vst [vmem:[#allocation2 + $0xe8] sm:$0xff] 0.0
        %335 = vst [vmem:[#allocation2 + $0xf0] sm:$0xff] 0.0
        %336 = vst [vmem:[#allocation2 + $0xf8] sm:$0xff] 0.0
      $region40: #{_lambda_.11} parent=35 // pred_fallthru
        _
      %v337 = vld [vmem:[#allocation2] sm:$0xff]
      %v338 = vld [vmem:[#allocation2 + $0x8] sm:$0xff]
      %v339 = vld [vmem:[#allocation2 + $0x10] sm:$0xff]
      %v340 = vld [vmem:[#allocation2 + $0x18] sm:$0xff]
      %v341 = vld [vmem:[#allocation2 + $0x20] sm:$0xff]
      %v342 = vld [vmem:[#allocation2 + $0x28] sm:$0xff]
      %v343 = vld [vmem:[#allocation2 + $0x30] sm:$0xff]
      %v344 = vld [vmem:[#allocation2 + $0x38] sm:$0xff]
      %v345 = vld [vmem:[#allocation2 + $0x40] sm:$0xff]
      %v346 = vld [vmem:[#allocation2 + $0x48] sm:$0xff]
      %v347 = vld [vmem:[#allocation2 + $0x50] sm:$0xff]
      %v348 = vld [vmem:[#allocation2 + $0x58] sm:$0xff]
      %v349 = vld [vmem:[#allocation2 + $0x60] sm:$0xff]
      %v350 = vld [vmem:[#allocation2 + $0x68] sm:$0xff]
      %v351 = vld [vmem:[#allocation2 + $0x70] sm:$0xff]
      %v352 = vld [vmem:[#allocation2 + $0x78] sm:$0xff]
      %v353 = vld [vmem:[#allocation2 + $0x80] sm:$0xff]
      %v354 = vld [vmem:[#allocation2 + $0x88] sm:$0xff]
      %v355 = vld [vmem:[#allocation2 + $0x90] sm:$0xff]
      %v356 = vld [vmem:[#allocation2 + $0x98] sm:$0xff]
      %v357 = vld [vmem:[#allocation2 + $0xa0] sm:$0xff]
      %v358 = vld [vmem:[#allocation2 + $0xa8] sm:$0xff]
      %v359 = vld [vmem:[#allocation2 + $0xb0] sm:$0xff]
      %v360 = vld [vmem:[#allocation2 + $0xb8] sm:$0xff]
      %v361 = vld [vmem:[#allocation2 + $0xc0] sm:$0xff]
      %v362 = vld [vmem:[#allocation2 + $0xc8] sm:$0xff]
      %v363 = vld [vmem:[#allocation2 + $0xd0] sm:$0xff]
      %v364 = vld [vmem:[#allocation2 + $0xd8] sm:$0xff]
      %v365 = vld [vmem:[#allocation2 + $0xe0] sm:$0xff]
      %v366 = vld [vmem:[#allocation2 + $0xe8] sm:$0xff]
      %v367 = vld [vmem:[#allocation2 + $0xf0] sm:$0xff]
      %v368 = vld [vmem:[#allocation2 + $0xf8] sm:$0xff]
      %v369 = vld [vmem:[%s274] sm:$0xf]
      %v370 = vld [vmem:[%s274 + $0x4] sm:$0xf]
      %v371 = vld [vmem:[%s274 + $0x8] sm:$0xf]
      %v372 = vld [vmem:[%s274 + $0xc] sm:$0xf]
      %v373 = vld [vmem:[%s274 + $0x10] sm:$0xf]
      %v374 = vld [vmem:[%s274 + $0x14] sm:$0xf]
      %v375 = vld [vmem:[%s274 + $0x18] sm:$0xf]
      %v376 = vld [vmem:[%s274 + $0x1c] sm:$0xf]
      %v377 = vld [vmem:[%s274 + $0x20] sm:$0xf]
      %v378 = vld [vmem:[%s274 + $0x24] sm:$0xf]
      %v379 = vld [vmem:[%s274 + $0x28] sm:$0xf]
      %v380 = vld [vmem:[%s274 + $0x2c] sm:$0xf]
      %v381 = vld [vmem:[%s274 + $0x30] sm:$0xf]
      %v382 = vld [vmem:[%s274 + $0x34] sm:$0xf]
      %v383 = vld [vmem:[%s274 + $0x38] sm:$0xf]
      %v384 = vld [vmem:[%s274 + $0x3c] sm:$0xf]
      %v385 = vld [vmem:[%s274 + $0x40] sm:$0xf]
      %v386 = vld [vmem:[%s274 + $0x44] sm:$0xf]
      %v387 = vld [vmem:[%s274 + $0x48] sm:$0xf]
      %v388 = vld [vmem:[%s274 + $0x4c] sm:$0xf]
      %v389 = vld [vmem:[%s274 + $0x50] sm:$0xf]
      %v390 = vld [vmem:[%s274 + $0x54] sm:$0xf]
      %v391 = vld [vmem:[%s274 + $0x58] sm:$0xf]
      %v392 = vld [vmem:[%s274 + $0x5c] sm:$0xf]
      %v393 = vld [vmem:[%s274 + $0x60] sm:$0xf]
      %v394 = vld [vmem:[%s274 + $0x64] sm:$0xf]
      %v395 = vld [vmem:[%s274 + $0x68] sm:$0xf]
      %v396 = vld [vmem:[%s274 + $0x6c] sm:$0xf]
      %v397 = vld [vmem:[%s274 + $0x70] sm:$0xf]
      %v398 = vld [vmem:[%s274 + $0x74] sm:$0xf]
      %v399 = vld [vmem:[%s274 + $0x78] sm:$0xf]
      %v400 = vld [vmem:[%s274 + $0x7c] sm:$0xf]
      %v401 = vld [vmem:[%s283] sm:$0xf]
      %v402 = vld [vmem:[%s283 + $0x4] sm:$0xf]
      %v403 = vld [vmem:[%s283 + $0x8] sm:$0xf]
      %v404 = vld [vmem:[%s283 + $0xc] sm:$0xf]
      %v405 = vld [vmem:[%s283 + $0x10] sm:$0xf]
      %v406 = vld [vmem:[%s283 + $0x14] sm:$0xf]
      %v407 = vld [vmem:[%s283 + $0x18] sm:$0xf]
      %v408 = vld [vmem:[%s283 + $0x1c] sm:$0xf]
      %v409 = vld [vmem:[%s283 + $0x20] sm:$0xf]
      %v410 = vld [vmem:[%s283 + $0x24] sm:$0xf]
      %v411 = vld [vmem:[%s283 + $0x28] sm:$0xf]
      %v412 = vld [vmem:[%s283 + $0x2c] sm:$0xf]
      %v413 = vld [vmem:[%s283 + $0x30] sm:$0xf]
      %v414 = vld [vmem:[%s283 + $0x34] sm:$0xf]
      %v415 = vld [vmem:[%s283 + $0x38] sm:$0xf]
      %v416 = vld [vmem:[%s283 + $0x3c] sm:$0xf]
      %v449 = vunpack.c.l.b16 %v369
      %v450 = vunpack.c.l.b16 %v370
      %v451 = vunpack.c.l.b16 %v371
      %v452 = vunpack.c.l.b16 %v372
      %v453 = vunpack.c.l.b16 %v373
      %v454 = vunpack.c.l.b16 %v374
      %v455 = vunpack.c.l.b16 %v375
      %v456 = vunpack.c.l.b16 %v376
      %v457 = vunpack.c.l.b16 %v377
      %v458 = vunpack.c.l.b16 %v378
      %v459 = vunpack.c.l.b16 %v379
      %v460 = vunpack.c.l.b16 %v380
      %v461 = vunpack.c.l.b16 %v381
      %v462 = vunpack.c.l.b16 %v382
      %v463 = vunpack.c.l.b16 %v383
      %v464 = vunpack.c.l.b16 %v384
      %v465 = vunpack.c.l.b16 %v385
      %v466 = vunpack.c.l.b16 %v386
      %v467 = vunpack.c.l.b16 %v387
      %v468 = vunpack.c.l.b16 %v388
      %v469 = vunpack.c.l.b16 %v389
      %v470 = vunpack.c.l.b16 %v390
      %v471 = vunpack.c.l.b16 %v391
      %v472 = vunpack.c.l.b16 %v392
      %v473 = vunpack.c.l.b16 %v393
      %v474 = vunpack.c.l.b16 %v394
      %v475 = vunpack.c.l.b16 %v395
      %v476 = vunpack.c.l.b16 %v396
      %v477 = vunpack.c.l.b16 %v397
      %v478 = vunpack.c.l.b16 %v398
      %v479 = vunpack.c.l.b16 %v399
      %v480 = vunpack.c.l.b16 %v400
      %v481 = vpack.c.b16 %v450, %v449
      %v482 = vpack.c.b16 %v452, %v451
      %v483 = vpack.c.b16 %v454, %v453
      %v484 = vpack.c.b16 %v456, %v455
      %v485 = vpack.c.b16 %v458, %v457
      %v486 = vpack.c.b16 %v460, %v459
      %v487 = vpack.c.b16 %v462, %v461
      %v488 = vpack.c.b16 %v464, %v463
      %v489 = vpack.c.b16 %v466, %v465
      %v490 = vpack.c.b16 %v468, %v467
      %v491 = vpack.c.b16 %v470, %v469
      %v492 = vpack.c.b16 %v472, %v471
      %v493 = vpack.c.b16 %v474, %v473
      %v494 = vpack.c.b16 %v476, %v475
      %v495 = vpack.c.b16 %v478, %v477
      %v496 = vpack.c.b16 %v480, %v479
      %v529 = vunpack.c.l.b16 %v401
      %v530 = vunpack.c.l.b16 %v402
      %v531 = vunpack.c.l.b16 %v403
      %v532 = vunpack.c.l.b16 %v404
      %v533 = vunpack.c.l.b16 %v405
      %v534 = vunpack.c.l.b16 %v406
      %v535 = vunpack.c.l.b16 %v407
      %v536 = vunpack.c.l.b16 %v408
      %v537 = vunpack.c.l.b16 %v409
      %v538 = vunpack.c.l.b16 %v410
      %v539 = vunpack.c.l.b16 %v411
      %v540 = vunpack.c.l.b16 %v412
      %v541 = vunpack.c.l.b16 %v413
      %v542 = vunpack.c.l.b16 %v414
      %v543 = vunpack.c.l.b16 %v415
      %v544 = vunpack.c.l.b16 %v416
      %v545 = vpack.c.b16 %v530, %v529
      %v546 = vpack.c.b16 %v532, %v531
      %v547 = vpack.c.b16 %v534, %v533
      %v548 = vpack.c.b16 %v536, %v535
      %v549 = vpack.c.b16 %v538, %v537
      %v550 = vpack.c.b16 %v540, %v539
      %v551 = vpack.c.b16 %v542, %v541
      %v552 = vpack.c.b16 %v544, %v543
      %561 = vmatprep.subr.bf16.mxu0 0
      %562 = vmatpush1.bf16.msra.mxu0 %v552
      %563 = vmatprep.subr.bf16.mxu0 0
      %564 = vmatpush1.bf16.msra.mxu0 %v551
      %565 = vmatprep.subr.bf16.mxu0 0
      %566 = vmatpush1.bf16.msra.mxu0 %v550
      %567 = vmatprep.subr.bf16.mxu0 0
      %568 = vmatpush1.bf16.msra.mxu0 %v549
      %569 = vmatprep.subr.bf16.mxu0 0
      %570 = vmatpush1.bf16.msra.mxu0 %v548
      %571 = vmatprep.subr.bf16.mxu0 0
      %572 = vmatpush1.bf16.msra.mxu0 %v547
      %573 = vmatprep.subr.bf16.mxu0 0
      %574 = vmatpush1.bf16.msra.mxu0 %v546
      %575 = vmatprep.subr.bf16.mxu0 0
      %576 = vmatpush1.bf16.msra.mxu0 %v545
      %577 = vmatprep.subr.bf16.mxu0 0
      %578 = vmatpush2.bf16.msra.mxu0 0
      %579 = vmatprep.subr.bf16.mxu0 0
      %580 = vmatpush2.bf16.msra.mxu0 0
      %581 = vmatprep.subr.bf16.mxu0 0
      %582 = vmatpush2.bf16.msra.mxu0 0
      %583 = vmatprep.subr.bf16.mxu0 0
      %584 = vmatpush2.bf16.msra.mxu0 0
      %585 = vmatprep.subr.bf16.mxu0 0
      %586 = vmatpush2.bf16.msra.mxu0 0
      %587 = vmatprep.subr.bf16.mxu0 0
      %588 = vmatpush2.bf16.msra.mxu0 0
      %589 = vmatprep.subr.bf16.mxu0 0
      %590 = vmatpush2.bf16.msra.mxu0 0
      %591 = vmatprep.subr.bf16.mxu0 0
      %592 = vmatpush2.bf16.msra.mxu0 0
      %593 = vmatprep.mubr.bf16.mxu0 0
      %594 = vmatmul.mubr.bf16.gmra.mxu0 %v481
      %v595 = vpop.f32.mrf.mxu0
      %v596 = vadd.f32 0.0, %v595
      %v597 = vpop.f32.mrf.mxu0
      %v598 = vpop.f32.mrf.mxu0
      %v599 = vadd.f32 0.0, %v598
      %v600 = vpop.f32.mrf.mxu0
      %601 = vmatprep.mubr.bf16.mxu0 0
      %602 = vmatmul.mubr.bf16.gmra.mxu0 %v482
      %v603 = vpop.f32.mrf.mxu0
      %v604 = vadd.f32 0.0, %v603
      %v605 = vpop.f32.mrf.mxu0
      %v606 = vpop.f32.mrf.mxu0
      %v607 = vadd.f32 0.0, %v606
      %v608 = vpop.f32.mrf.mxu0
      %609 = vmatprep.mubr.bf16.mxu0 0
      %610 = vmatmul.mubr.bf16.gmra.mxu0 %v483
      %v611 = vpop.f32.mrf.mxu0
      %v612 = vadd.f32 0.0, %v611
      %v613 = vpop.f32.mrf.mxu0
      %v614 = vpop.f32.mrf.mxu0
      %v615 = vadd.f32 0.0, %v614
      %v616 = vpop.f32.mrf.mxu0
      %617 = vmatprep.mubr.bf16.mxu0 0
      %618 = vmatmul.mubr.bf16.gmra.mxu0 %v484
      %v619 = vpop.f32.mrf.mxu0
      %v620 = vadd.f32 0.0, %v619
      %v621 = vpop.f32.mrf.mxu0
      %v622 = vpop.f32.mrf.mxu0
      %v623 = vadd.f32 0.0, %v622
      %v624 = vpop.f32.mrf.mxu0
      %625 = vmatprep.mubr.bf16.mxu0 0
      %626 = vmatmul.mubr.bf16.gmra.mxu0 %v485
      %v627 = vpop.f32.mrf.mxu0
      %v628 = vadd.f32 0.0, %v627
      %v629 = vpop.f32.mrf.mxu0
      %v630 = vpop.f32.mrf.mxu0
      %v631 = vadd.f32 0.0, %v630
      %v632 = vpop.f32.mrf.mxu0
      %633 = vmatprep.mubr.bf16.mxu0 0
      %634 = vmatmul.mubr.bf16.gmra.mxu0 %v486
      %v635 = vpop.f32.mrf.mxu0
      %v636 = vadd.f32 0.0, %v635
      %v637 = vpop.f32.mrf.mxu0
      %v638 = vpop.f32.mrf.mxu0
      %v639 = vadd.f32 0.0, %v638
      %v640 = vpop.f32.mrf.mxu0
      %641 = vmatprep.mubr.bf16.mxu0 0
      %642 = vmatmul.mubr.bf16.gmra.mxu0 %v487
      %v643 = vpop.f32.mrf.mxu0
      %v644 = vadd.f32 0.0, %v643
      %v645 = vpop.f32.mrf.mxu0
      %v646 = vpop.f32.mrf.mxu0
      %v647 = vadd.f32 0.0, %v646
      %v648 = vpop.f32.mrf.mxu0
      %649 = vmatprep.mubr.bf16.mxu0 0
      %650 = vmatmul.mubr.bf16.gmra.mxu0 %v488
      %v651 = vpop.f32.mrf.mxu0
      %v652 = vadd.f32 0.0, %v651
      %v653 = vpop.f32.mrf.mxu0
      %v654 = vpop.f32.mrf.mxu0
      %v655 = vadd.f32 0.0, %v654
      %v656 = vpop.f32.mrf.mxu0
      %657 = vmatprep.mubr.bf16.mxu0 0
      %658 = vmatmul.mubr.bf16.gmra.mxu0 %v489
      %v659 = vpop.f32.mrf.mxu0
      %v660 = vadd.f32 0.0, %v659
      %v661 = vpop.f32.mrf.mxu0
      %v662 = vpop.f32.mrf.mxu0
      %v663 = vadd.f32 0.0, %v662
      %v664 = vpop.f32.mrf.mxu0
      %665 = vmatprep.mubr.bf16.mxu0 0
      %666 = vmatmul.mubr.bf16.gmra.mxu0 %v490
      %v667 = vpop.f32.mrf.mxu0
      %v668 = vadd.f32 0.0, %v667
      %v669 = vpop.f32.mrf.mxu0
      %v670 = vpop.f32.mrf.mxu0
      %v671 = vadd.f32 0.0, %v670
      %v672 = vpop.f32.mrf.mxu0
      %673 = vmatprep.mubr.bf16.mxu0 0
      %674 = vmatmul.mubr.bf16.gmra.mxu0 %v491
      %v675 = vpop.f32.mrf.mxu0
      %v676 = vadd.f32 0.0, %v675
      %v677 = vpop.f32.mrf.mxu0
      %v678 = vpop.f32.mrf.mxu0
      %v679 = vadd.f32 0.0, %v678
      %v680 = vpop.f32.mrf.mxu0
      %681 = vmatprep.mubr.bf16.mxu0 0
      %682 = vmatmul.mubr.bf16.gmra.mxu0 %v492
      %v683 = vpop.f32.mrf.mxu0
      %v684 = vadd.f32 0.0, %v683
      %v685 = vpop.f32.mrf.mxu0
      %v686 = vpop.f32.mrf.mxu0
      %v687 = vadd.f32 0.0, %v686
      %v688 = vpop.f32.mrf.mxu0
      %689 = vmatprep.mubr.bf16.mxu0 0
      %690 = vmatmul.mubr.bf16.gmra.mxu0 %v493
      %v691 = vpop.f32.mrf.mxu0
      %v692 = vadd.f32 0.0, %v691
      %v693 = vpop.f32.mrf.mxu0
      %v694 = vpop.f32.mrf.mxu0
      %v695 = vadd.f32 0.0, %v694
      %v696 = vpop.f32.mrf.mxu0
      %697 = vmatprep.mubr.bf16.mxu0 0
      %698 = vmatmul.mubr.bf16.gmra.mxu0 %v494
      %v699 = vpop.f32.mrf.mxu0
      %v700 = vadd.f32 0.0, %v699
      %v701 = vpop.f32.mrf.mxu0
      %v702 = vpop.f32.mrf.mxu0
      %v703 = vadd.f32 0.0, %v702
      %v704 = vpop.f32.mrf.mxu0
      %705 = vmatprep.mubr.bf16.mxu0 0
      %706 = vmatmul.mubr.bf16.gmra.mxu0 %v495
      %v707 = vpop.f32.mrf.mxu0
      %v708 = vadd.f32 0.0, %v707
      %v709 = vpop.f32.mrf.mxu0
      %v710 = vpop.f32.mrf.mxu0
      %v711 = vadd.f32 0.0, %v710
      %v712 = vpop.f32.mrf.mxu0
      %713 = vmatprep.mubr.bf16.mxu0 0
      %714 = vmatmul.mubr.bf16.gmra.mxu0 %v496
      %v715 = vpop.f32.mrf.mxu0
      %v716 = vadd.f32 0.0, %v715
      %v717 = vpop.f32.mrf.mxu0
      %v718 = vpop.f32.mrf.mxu0
      %v719 = vadd.f32 0.0, %v718
      %v720 = vpop.f32.mrf.mxu0
      %721 = vdwg.mxu0
      %v722 = vadd.f32 %v337, %v596
      %v723 = vadd.f32 %v338, %v599
      %v724 = vadd.f32 %v339, %v604
      %v725 = vadd.f32 %v340, %v607
      %v726 = vadd.f32 %v341, %v612
      %v727 = vadd.f32 %v342, %v615
      %v728 = vadd.f32 %v343, %v620
      %v729 = vadd.f32 %v344, %v623
      %v730 = vadd.f32 %v345, %v628
      %v731 = vadd.f32 %v346, %v631
      %v732 = vadd.f32 %v347, %v636
      %v733 = vadd.f32 %v348, %v639
      %v734 = vadd.f32 %v349, %v644
      %v735 = vadd.f32 %v350, %v647
      %v736 = vadd.f32 %v351, %v652
      %v737 = vadd.f32 %v352, %v655
      %v738 = vadd.f32 %v353, %v660
      %v739 = vadd.f32 %v354, %v663
      %v740 = vadd.f32 %v355, %v668
      %v741 = vadd.f32 %v356, %v671
      %v742 = vadd.f32 %v357, %v676
      %v743 = vadd.f32 %v358, %v679
      %v744 = vadd.f32 %v359, %v684
      %v745 = vadd.f32 %v360, %v687
      %v746 = vadd.f32 %v361, %v692
      %v747 = vadd.f32 %v362, %v695
      %v748 = vadd.f32 %v363, %v700
      %v749 = vadd.f32 %v364, %v703
      %v750 = vadd.f32 %v365, %v708
      %v751 = vadd.f32 %v366, %v711
      %v752 = vadd.f32 %v367, %v716
      %v753 = vadd.f32 %v368, %v719
      %754 = vst [vmem:[#allocation2] sm:$0xff] %v722
      %755 = vst [vmem:[#allocation2 + $0x8] sm:$0xff] %v723
      %756 = vst [vmem:[#allocation2 + $0x10] sm:$0xff] %v724
      %757 = vst [vmem:[#allocation2 + $0x18] sm:$0xff] %v725
      %758 = vst [vmem:[#allocation2 + $0x20] sm:$0xff] %v726
      %759 = vst [vmem:[#allocation2 + $0x28] sm:$0xff] %v727
      %760 = vst [vmem:[#allocation2 + $0x30] sm:$0xff] %v728
      %761 = vst [vmem:[#allocation2 + $0x38] sm:$0xff] %v729
      %762 = vst [vmem:[#allocation2 + $0x40] sm:$0xff] %v730
      %763 = vst [vmem:[#allocation2 + $0x48] sm:$0xff] %v731
      %764 = vst [vmem:[#allocation2 + $0x50] sm:$0xff] %v732
      %765 = vst [vmem:[#allocation2 + $0x58] sm:$0xff] %v733
      %766 = vst [vmem:[#allocation2 + $0x60] sm:$0xff] %v734
      %767 = vst [vmem:[#allocation2 + $0x68] sm:$0xff] %v735
      %768 = vst [vmem:[#allocation2 + $0x70] sm:$0xff] %v736
      %769 = vst [vmem:[#allocation2 + $0x78] sm:$0xff] %v737
      %770 = vst [vmem:[#allocation2 + $0x80] sm:$0xff] %v738
      %771 = vst [vmem:[#allocation2 + $0x88] sm:$0xff] %v739
      %772 = vst [vmem:[#allocation2 + $0x90] sm:$0xff] %v740
      %773 = vst [vmem:[#allocation2 + $0x98] sm:$0xff] %v741
      %774 = vst [vmem:[#allocation2 + $0xa0] sm:$0xff] %v742
      %775 = vst [vmem:[#allocation2 + $0xa8] sm:$0xff] %v743
      %776 = vst [vmem:[#allocation2 + $0xb0] sm:$0xff] %v744
      %777 = vst [vmem:[#allocation2 + $0xb8] sm:$0xff] %v745
      %778 = vst [vmem:[#allocation2 + $0xc0] sm:$0xff] %v746
      %779 = vst [vmem:[#allocation2 + $0xc8] sm:$0xff] %v747
      %780 = vst [vmem:[#allocation2 + $0xd0] sm:$0xff] %v748
      %781 = vst [vmem:[#allocation2 + $0xd8] sm:$0xff] %v749
      %782 = vst [vmem:[#allocation2 + $0xe0] sm:$0xff] %v750
      %783 = vst [vmem:[#allocation2 + $0xe8] sm:$0xff] %v751
      %784 = vst [vmem:[#allocation2 + $0xf0] sm:$0xff] %v752
      %785 = vst [vmem:[#allocation2 + $0xf8] sm:$0xff] %v753
      // Predicated region
      $region41: #{_lambda_.11} parent=35 // pred_check
        %p786 = pneg %p301
      $region42: #{_lambda_.11} parent=35 // pred_check_branch
        %788 = sbr.rel (%p786) target = $region44
      $region43: #{_lambda_.11} parent=35 // pred_region
        %v789 = vld [vmem:[#allocation2] sm:$0xff]
        %v790 = vld [vmem:[#allocation2 + $0x8] sm:$0xff]
        %v791 = vld [vmem:[#allocation2 + $0x10] sm:$0xff]
        %v792 = vld [vmem:[#allocation2 + $0x18] sm:$0xff]
        %v793 = vld [vmem:[#allocation2 + $0x20] sm:$0xff]
        %v794 = vld [vmem:[#allocation2 + $0x28] sm:$0xff]
        %v795 = vld [vmem:[#allocation2 + $0x30] sm:$0xff]
        %v796 = vld [vmem:[#allocation2 + $0x38] sm:$0xff]
        %v797 = vld [vmem:[#allocation2 + $0x40] sm:$0xff]
        %v798 = vld [vmem:[#allocation2 + $0x48] sm:$0xff]
        %v799 = vld [vmem:[#allocation2 + $0x50] sm:$0xff]
        %v800 = vld [vmem:[#allocation2 + $0x58] sm:$0xff]
        %v801 = vld [vmem:[#allocation2 + $0x60] sm:$0xff]
        %v802 = vld [vmem:[#allocation2 + $0x68] sm:$0xff]
        %v803 = vld [vmem:[#allocation2 + $0x70] sm:$0xff]
        %v804 = vld [vmem:[#allocation2 + $0x78] sm:$0xff]
        %v805 = vld [vmem:[#allocation2 + $0x80] sm:$0xff]
        %v806 = vld [vmem:[#allocation2 + $0x88] sm:$0xff]
        %v807 = vld [vmem:[#allocation2 + $0x90] sm:$0xff]
        %v808 = vld [vmem:[#allocation2 + $0x98] sm:$0xff]
        %v809 = vld [vmem:[#allocation2 + $0xa0] sm:$0xff]
        %v810 = vld [vmem:[#allocation2 + $0xa8] sm:$0xff]
        %v811 = vld [vmem:[#allocation2 + $0xb0] sm:$0xff]
        %v812 = vld [vmem:[#allocation2 + $0xb8] sm:$0xff]
        %v813 = vld [vmem:[#allocation2 + $0xc0] sm:$0xff]
        %v814 = vld [vmem:[#allocation2 + $0xc8] sm:$0xff]
        %v815 = vld [vmem:[#allocation2 + $0xd0] sm:$0xff]
        %v816 = vld [vmem:[#allocation2 + $0xd8] sm:$0xff]
        %v817 = vld [vmem:[#allocation2 + $0xe0] sm:$0xff]
        %v818 = vld [vmem:[#allocation2 + $0xe8] sm:$0xff]
        %v819 = vld [vmem:[#allocation2 + $0xf0] sm:$0xff]
        %v820 = vld [vmem:[#allocation2 + $0xf8] sm:$0xff]
        %v821 = vld [vmem:[%s287] sm:$0x1]
        %v823 = vlaneseq
        %v824 = vshrl.u32 %v823, 7
        %v825 = vsub.s32 0, %v824
        %v826 = vrot.slane %v821, %v825
        %v828 = vmul.f32 %v789, %v826
        %v829 = vmul.f32 %v790, %v826
        %v830 = vmul.f32 %v791, %v826
        %v831 = vmul.f32 %v792, %v826
        %v832 = vmul.f32 %v793, %v826
        %v833 = vmul.f32 %v794, %v826
        %v834 = vmul.f32 %v795, %v826
        %v835 = vmul.f32 %v796, %v826
        %v836 = vmul.f32 %v797, %v826
        %v837 = vmul.f32 %v798, %v826
        %v838 = vmul.f32 %v799, %v826
        %v839 = vmul.f32 %v800, %v826
        %v840 = vmul.f32 %v801, %v826
        %v841 = vmul.f32 %v802, %v826
        %v842 = vmul.f32 %v803, %v826
        %v843 = vmul.f32 %v804, %v826
        %v844 = vmul.f32 %v805, %v826
        %v845 = vmul.f32 %v806, %v826
        %v846 = vmul.f32 %v807, %v826
        %v847 = vmul.f32 %v808, %v826
        %v848 = vmul.f32 %v809, %v826
        %v849 = vmul.f32 %v810, %v826
        %v850 = vmul.f32 %v811, %v826
        %v851 = vmul.f32 %v812, %v826
        %v852 = vmul.f32 %v813, %v826
        %v853 = vmul.f32 %v814, %v826
        %v854 = vmul.f32 %v815, %v826
        %v855 = vmul.f32 %v816, %v826
        %v856 = vmul.f32 %v817, %v826
        %v857 = vmul.f32 %v818, %v826
        %v858 = vmul.f32 %v819, %v826
        %v859 = vmul.f32 %v820, %v826
        %v860 = vld [vmem:[%s290] sm:$0x1]
        %v862 = vlaneseq
        %v863 = vshrl.u32 %v862, 7
        %v864 = vsub.s32 0, %v863
        %v865 = vrot.slane %v860, %v864
        %v867 = vadd.f32 %v828, %v865
        %v868 = vadd.f32 %v829, %v865
        %v869 = vadd.f32 %v830, %v865
        %v870 = vadd.f32 %v831, %v865
        %v871 = vadd.f32 %v832, %v865
        %v872 = vadd.f32 %v833, %v865
        %v873 = vadd.f32 %v834, %v865
        %v874 = vadd.f32 %v835, %v865
        %v875 = vadd.f32 %v836, %v865
        %v876 = vadd.f32 %v837, %v865
        %v877 = vadd.f32 %v838, %v865
        %v878 = vadd.f32 %v839, %v865
        %v879 = vadd.f32 %v840, %v865
        %v880 = vadd.f32 %v841, %v865
        %v881 = vadd.f32 %v842, %v865
        %v882 = vadd.f32 %v843, %v865
        %v883 = vadd.f32 %v844, %v865
        %v884 = vadd.f32 %v845, %v865
        %v885 = vadd.f32 %v846, %v865
        %v886 = vadd.f32 %v847, %v865
        %v887 = vadd.f32 %v848, %v865
        %v888 = vadd.f32 %v849, %v865
        %v889 = vadd.f32 %v850, %v865
        %v890 = vadd.f32 %v851, %v865
        %v891 = vadd.f32 %v852, %v865
        %v892 = vadd.f32 %v853, %v865
        %v893 = vadd.f32 %v854, %v865
        %v894 = vadd.f32 %v855, %v865
        %v895 = vadd.f32 %v856, %v865
        %v896 = vadd.f32 %v857, %v865
        %v897 = vadd.f32 %v858, %v865
        %v898 = vadd.f32 %v859, %v865
        %vm899 = vcmp.gt.f32.partialorder %v867, 0.0
        %vm900 = vcmp.gt.f32.partialorder %v868, 0.0
        %vm901 = vcmp.gt.f32.partialorder %v869, 0.0
        %vm902 = vcmp.gt.f32.partialorder %v870, 0.0
        %vm903 = vcmp.gt.f32.partialorder %v871, 0.0
        %vm904 = vcmp.gt.f32.partialorder %v872, 0.0
        %vm905 = vcmp.gt.f32.partialorder %v873, 0.0
        %vm906 = vcmp.gt.f32.partialorder %v874, 0.0
        %vm907 = vcmp.gt.f32.partialorder %v875, 0.0
        %vm908 = vcmp.gt.f32.partialorder %v876, 0.0
        %vm909 = vcmp.gt.f32.partialorder %v877, 0.0
        %vm910 = vcmp.gt.f32.partialorder %v878, 0.0
        %vm911 = vcmp.gt.f32.partialorder %v879, 0.0
        %vm912 = vcmp.gt.f32.partialorder %v880, 0.0
        %vm913 = vcmp.gt.f32.partialorder %v881, 0.0
        %vm914 = vcmp.gt.f32.partialorder %v882, 0.0
        %vm915 = vcmp.gt.f32.partialorder %v883, 0.0
        %vm916 = vcmp.gt.f32.partialorder %v884, 0.0
        %vm917 = vcmp.gt.f32.partialorder %v885, 0.0
        %vm918 = vcmp.gt.f32.partialorder %v886, 0.0
        %vm919 = vcmp.gt.f32.partialorder %v887, 0.0
        %vm920 = vcmp.gt.f32.partialorder %v888, 0.0
        %vm921 = vcmp.gt.f32.partialorder %v889, 0.0
        %vm922 = vcmp.gt.f32.partialorder %v890, 0.0
        %vm923 = vcmp.gt.f32.partialorder %v891, 0.0
        %vm924 = vcmp.gt.f32.partialorder %v892, 0.0
        %vm925 = vcmp.gt.f32.partialorder %v893, 0.0
        %vm926 = vcmp.gt.f32.partialorder %v894, 0.0
        %vm927 = vcmp.gt.f32.partialorder %v895, 0.0
        %vm928 = vcmp.gt.f32.partialorder %v896, 0.0
        %vm929 = vcmp.gt.f32.partialorder %v897, 0.0
        %vm930 = vcmp.gt.f32.partialorder %v898, 0.0
        %v931 = vmul.f32 %v867, 0.1
        %v932 = vmul.f32 %v868, 0.1
        %v933 = vmul.f32 %v869, 0.1
        %v934 = vmul.f32 %v870, 0.1
        %v935 = vmul.f32 %v871, 0.1
        %v936 = vmul.f32 %v872, 0.1
        %v937 = vmul.f32 %v873, 0.1
        %v938 = vmul.f32 %v874, 0.1
        %v939 = vmul.f32 %v875, 0.1
        %v940 = vmul.f32 %v876, 0.1
        %v941 = vmul.f32 %v877, 0.1
        %v942 = vmul.f32 %v878, 0.1
        %v943 = vmul.f32 %v879, 0.1
        %v944 = vmul.f32 %v880, 0.1
        %v945 = vmul.f32 %v881, 0.1
        %v946 = vmul.f32 %v882, 0.1
        %v947 = vmul.f32 %v883, 0.1
        %v948 = vmul.f32 %v884, 0.1
        %v949 = vmul.f32 %v885, 0.1
        %v950 = vmul.f32 %v886, 0.1
        %v951 = vmul.f32 %v887, 0.1
        %v952 = vmul.f32 %v888, 0.1
        %v953 = vmul.f32 %v889, 0.1
        %v954 = vmul.f32 %v890, 0.1
        %v955 = vmul.f32 %v891, 0.1
        %v956 = vmul.f32 %v892, 0.1
        %v957 = vmul.f32 %v893, 0.1
        %v958 = vmul.f32 %v894, 0.1
        %v959 = vmul.f32 %v895, 0.1
        %v960 = vmul.f32 %v896, 0.1
        %v961 = vmul.f32 %v897, 0.1
        %v962 = vmul.f32 %v898, 0.1
        %v963 = vsel %vm899, %v867, %v931
        %v964 = vsel %vm900, %v868, %v932
        %v965 = vsel %vm901, %v869, %v933
        %v966 = vsel %vm902, %v870, %v934
        %v967 = vsel %vm903, %v871, %v935
        %v968 = vsel %vm904, %v872, %v936
        %v969 = vsel %vm905, %v873, %v937
        %v970 = vsel %vm906, %v874, %v938
        %v971 = vsel %vm907, %v875, %v939
        %v972 = vsel %vm908, %v876, %v940
        %v973 = vsel %vm909, %v877, %v941
        %v974 = vsel %vm910, %v878, %v942
        %v975 = vsel %vm911, %v879, %v943
        %v976 = vsel %vm912, %v880, %v944
        %v977 = vsel %vm913, %v881, %v945
        %v978 = vsel %vm914, %v882, %v946
        %v979 = vsel %vm915, %v883, %v947
        %v980 = vsel %vm916, %v884, %v948
        %v981 = vsel %vm917, %v885, %v949
        %v982 = vsel %vm918, %v886, %v950
        %v983 = vsel %vm919, %v887, %v951
        %v984 = vsel %vm920, %v888, %v952
        %v985 = vsel %vm921, %v889, %v953
        %v986 = vsel %vm922, %v890, %v954
        %v987 = vsel %vm923, %v891, %v955
        %v988 = vsel %vm924, %v892, %v956
        %v989 = vsel %vm925, %v893, %v957
        %v990 = vsel %vm926, %v894, %v958
        %v991 = vsel %vm927, %v895, %v959
        %v992 = vsel %vm928, %v896, %v960
        %v993 = vsel %vm929, %v897, %v961
        %v994 = vsel %vm930, %v898, %v962
        %995 = vst [vmem:[%s298] sm:$0xff] %v963
        %996 = vst [vmem:[%s298 + $0x8] sm:$0xff] %v964
        %997 = vst [vmem:[%s298 + $0x10] sm:$0xff] %v965
        %998 = vst [vmem:[%s298 + $0x18] sm:$0xff] %v966
        %999 = vst [vmem:[%s298 + $0x20] sm:$0xff] %v967
        %1000 = vst [vmem:[%s298 + $0x28] sm:$0xff] %v968
        %1001 = vst [vmem:[%s298 + $0x30] sm:$0xff] %v969
        %1002 = vst [vmem:[%s298 + $0x38] sm:$0xff] %v970
        %1003 = vst [vmem:[%s298 + $0x40] sm:$0xff] %v971
        %1004 = vst [vmem:[%s298 + $0x48] sm:$0xff] %v972
        %1005 = vst [vmem:[%s298 + $0x50] sm:$0xff] %v973
        %1006 = vst [vmem:[%s298 + $0x58] sm:$0xff] %v974
        %1007 = vst [vmem:[%s298 + $0x60] sm:$0xff] %v975
        %1008 = vst [vmem:[%s298 + $0x68] sm:$0xff] %v976
        %1009 = vst [vmem:[%s298 + $0x70] sm:$0xff] %v977
        %1010 = vst [vmem:[%s298 + $0x78] sm:$0xff] %v978
        %1011 = vst [vmem:[%s298 + $0x80] sm:$0xff] %v979
        %1012 = vst [vmem:[%s298 + $0x88] sm:$0xff] %v980
        %1013 = vst [vmem:[%s298 + $0x90] sm:$0xff] %v981
        %1014 = vst [vmem:[%s298 + $0x98] sm:$0xff] %v982
        %1015 = vst [vmem:[%s298 + $0xa0] sm:$0xff] %v983
        %1016 = vst [vmem:[%s298 + $0xa8] sm:$0xff] %v984
        %1017 = vst [vmem:[%s298 + $0xb0] sm:$0xff] %v985
        %1018 = vst [vmem:[%s298 + $0xb8] sm:$0xff] %v986
        %1019 = vst [vmem:[%s298 + $0xc0] sm:$0xff] %v987
        %1020 = vst [vmem:[%s298 + $0xc8] sm:$0xff] %v988
        %1021 = vst [vmem:[%s298 + $0xd0] sm:$0xff] %v989
        %1022 = vst [vmem:[%s298 + $0xd8] sm:$0xff] %v990
        %1023 = vst [vmem:[%s298 + $0xe0] sm:$0xff] %v991
        %1024 = vst [vmem:[%s298 + $0xe8] sm:$0xff] %v992
        %1025 = vst [vmem:[%s298 + $0xf0] sm:$0xff] %v993
        %1026 = vst [vmem:[%s298 + $0xf8] sm:$0xff] %v994
      $region44: #{_lambda_.11} parent=35 // pred_fallthru
        _
      %s1027 = smul.u32 32, %s20
      %p1028 = scmp.lt.s32.totalorder %s1027, 255
      %s1029 = scalar_select %p1028, %s1027, 255
      %p1030 = scmp.lt.s32.totalorder %s21, 0
      %s1031 = scalar_select %p1030, %s21, 0
      %s1032 = sadd.s32 %s1031, %s1029
      %s1033 = smul.addr %s1032, 8
      %s1034 = scalar_lea.vmem %s4, %s1033
      // Predicated region
      $region45: #{_lambda_.11} parent=35 // pred_check
        %p1035 = pneg %p162
      $region46: #{_lambda_.11} parent=35 // pred_check_branch
        %1037 = sbr.rel (%p1035) target = $region48
      $region47: #{_lambda_.11} parent=35 // pred_region
        %s1038 = smul.u32 32, %s20
      $region48: #{_lambda_.11} parent=35 // pred_fallthru
        _
    $region36: #{_lambda_.11} parent=5 // pred_fallthru
      _
    %p1039 = scmp.le.s32.totalorder 2, %s10
    // Predicated region
    $region49: #{_lambda_.11} parent=5 // pred_check
      %p1040 = pneg %p1039
    $region50: #{_lambda_.11} parent=5 // pred_check_branch
      %1042 = sbr.rel (%p1040) target = $region52
    $region51: #{_lambda_.11} parent=5 // pred_region
      %s1043 = ssub.s32 %s10, 2
      // Predicated region
      $region53: #{_lambda_.11} parent=51 // pred_check
        %p1044 = pneg %p168
      $region54: #{_lambda_.11} parent=51 // pred_check_branch
        %1046 = sbr.rel (%p1044) target = $region56
      $region55: #{_lambda_.11} parent=51 // pred_region
        %s1047 = smul.u32 32, %s23
        %p1048 = scmp.lt.s32.totalorder %s1047, 255
        %s1049 = scalar_select %p1048, %s1047, 255
        %p1050 = scmp.lt.s32.totalorder %s24, 0
        %s1051 = scalar_select %p1050, %s24, 0
        %s1052 = sadd.s32 %s1051, %s1049
        %s1053 = smul.addr %s1052, 8
        %s1054 = scalar_lea.vmem %s4, %s1053
      $region56: #{_lambda_.11} parent=51 // pred_fallthru
        _
    $region52: #{_lambda_.11} parent=5 // pred_fallthru
      _
  $region6: #{_lambda_.11} parent=0 // loop_footer
    %s14 = sadd.s32 1, %s10
  $region7: #{_lambda_.11} parent=0 // loop_footer_branch
    %9 = sbr.rel target = $region3
  $region8: #{_lambda_.11} parent=0 // loop_exit
    _

// kernel: _lambda_.12
$region0: #{_lambda_.12}
  #allocation0 [shape = 'u32[]', space=smem, size = 0x4, offset = 0x4, fixed_abs, tag = 'smem constant byte address 0x4 - core index']
  #allocation1 [shape = 'u32[144,128]{1,0:T(1,128)}', space=vmem, size = 0x12000, scoped, tag = 'internal scratch']
  %s0 = inlined_call_operand.vmem [shape: f32[4,32,128], index: 0, kind: input, shape index: {}]
  %s1 = inlined_call_operand.vmem [shape: f32[32,128], index: 1, kind: output, shape index: {}]
  %s2 = sld [smem:[#allocation0]]
  $region14: #{_lambda_.12} parent=0
    _
  %s4 = ssub.s32 1, %s2
  %s5 = scalar_select 0, %s4, %s2
  // Predicated region
  $region2: #{_lambda_.12} parent=0 // pred_check
    _
  $region3: #{_lambda_.12} parent=0 // pred_check_branch
    %7 = sbr.rel (0) target = $region5
  $region4: #{_lambda_.12} parent=0 // pred_region
    _
  $region5: #{_lambda_.12} parent=0 // pred_fallthru
    _
  %v8 = vld [vmem:[%s0] sm:$0xff]
  %v9 = vld [vmem:[%s0 + $0x8] sm:$0xff]
  %v10 = vld [vmem:[%s0 + $0x10] sm:$0xff]
  %v11 = vld [vmem:[%s0 + $0x18] sm:$0xff]
  %v12 = vld [vmem:[%s0 + $0x20] sm:$0xff]
  %v13 = vld [vmem:[%s0 + $0x28] sm:$0xff]
  %v14 = vld [vmem:[%s0 + $0x30] sm:$0xff]
  %v15 = vld [vmem:[%s0 + $0x38] sm:$0xff]
  %v16 = vld [vmem:[%s0 + $0x40] sm:$0xff]
  %v17 = vld [vmem:[%s0 + $0x48] sm:$0xff]
  %v18 = vld [vmem:[%s0 + $0x50] sm:$0xff]
  %v19 = vld [vmem:[%s0 + $0x58] sm:$0xff]
  %v20 = vld [vmem:[%s0 + $0x60] sm:$0xff]
  %v21 = vld [vmem:[%s0 + $0x68] sm:$0xff]
  %v22 = vld [vmem:[%s0 + $0x70] sm:$0xff]
  %v23 = vld [vmem:[%s0 + $0x78] sm:$0xff]
  %v24 = vmax.f32 %v8, %v12
  %v25 = vmax.f32 %v24, %v16
  %v26 = vmax.f32 %v25, %v20
  %v27 = vmax.f32 %v9, %v13
  %v28 = vmax.f32 %v27, %v17
  %v29 = vmax.f32 %v28, %v21
  %v30 = vmax.f32 %v10, %v14
  %v31 = vmax.f32 %v30, %v18
  %v32 = vmax.f32 %v31, %v22
  %v33 = vmax.f32 %v11, %v15
  %v34 = vmax.f32 %v33, %v19
  %v35 = vmax.f32 %v34, %v23
  %36 = vst [vmem:[%s1] sm:$0xff] %v26
  %37 = vst [vmem:[%s1 + $0x8] sm:$0xff] %v29
  %38 = vst [vmem:[%s1 + $0x10] sm:$0xff] %v32
  %39 = vst [vmem:[%s1 + $0x18] sm:$0xff] %v35
  // Predicated region
  $region6: #{_lambda_.12} parent=0 // pred_check
    _
  $region7: #{_lambda_.12} parent=0 // pred_check_branch
    %41 = sbr.rel (0) target = $region9
  $region8: #{_lambda_.12} parent=0 // pred_region
    _
  $region9: #{_lambda_.12} parent=0 // pred_fallthru
    _
  // Predicated region
  $region10: #{_lambda_.12} parent=0 // pred_check
    _
  $region11: #{_lambda_.12} parent=0 // pred_check_branch
    %43 = sbr.rel (0) target = $region13
  $region12: #{_lambda_.12} parent=0 // pred_region
    _
  $region13: #{_lambda_.12} parent=0 // pred_fallthru
    _

// kernel: _lambda_.14
$region0: #{_lambda_.14}
  #allocation0 [shape = 'u32[]', space=smem, size = 0x4, offset = 0x4, fixed_abs, tag = 'smem constant byte address 0x4 - core index']
  #allocation1 [shape = 'u32[144,128]{1,0:T(1,128)}', space=vmem, size = 0x12000, scoped, tag = 'internal scratch']
  %s0 = inlined_call_operand.vmem [shape: f32[4,16,128], index: 0, kind: input, shape index: {}]
  %s1 = inlined_call_operand.vmem [shape: f32[16,128], index: 1, kind: output, shape index: {}]
  %s2 = sld [smem:[#allocation0]]
  $region14: #{_lambda_.14} parent=0
    _
  %s4 = ssub.s32 1, %s2
  %s5 = scalar_select 0, %s4, %s2
  // Predicated region
  $region2: #{_lambda_.14} parent=0 // pred_check
    _
  $region3: #{_lambda_.14} parent=0 // pred_check_branch
    %7 = sbr.rel (0) target = $region5
  $region4: #{_lambda_.14} parent=0 // pred_region
    _
  $region5: #{_lambda_.14} parent=0 // pred_fallthru
    _
  %v8 = vld [vmem:[%s0] sm:$0xff]
  %v9 = vld [vmem:[%s0 + $0x8] sm:$0xff]
  %v10 = vld [vmem:[%s0 + $0x10] sm:$0xff]
  %v11 = vld [vmem:[%s0 + $0x18] sm:$0xff]
  %v12 = vld [vmem:[%s0 + $0x20] sm:$0xff]
  %v13 = vld [vmem:[%s0 + $0x28] sm:$0xff]
  %v14 = vld [vmem:[%s0 + $0x30] sm:$0xff]
  %v15 = vld [vmem:[%s0 + $0x38] sm:$0xff]
  %v16 = vmax.f32 %v8, %v12
  %v17 = vmax.f32 %v10, %v14
  %v18 = vmax.f32 %v16, %v17
  %v19 = vmax.f32 %v9, %v13
  %v20 = vmax.f32 %v11, %v15
  %v21 = vmax.f32 %v19, %v20
  %22 = vst [vmem:[%s1] sm:$0xff] %v18
  %23 = vst [vmem:[%s1 + $0x8] sm:$0xff] %v21
  // Predicated region
  $region6: #{_lambda_.14} parent=0 // pred_check
    _
  $region7: #{_lambda_.14} parent=0 // pred_check_branch
    %25 = sbr.rel (0) target = $region9
  $region8: #{_lambda_.14} parent=0 // pred_region
    _
  $region9: #{_lambda_.14} parent=0 // pred_fallthru
    _
  // Predicated region
  $region10: #{_lambda_.14} parent=0 // pred_check
    _
  $region11: #{_lambda_.14} parent=0 // pred_check_branch
    %27 = sbr.rel (0) target = $region13
  $region12: #{_lambda_.14} parent=0 // pred_region
    _
  $region13: #{_lambda_.14} parent=0 // pred_fallthru
    _

// kernel: _lambda_.13
$region0: #{_lambda_.13}
  #allocation0 [shape = 'u32[]', space=smem, size = 0x4, offset = 0x4, fixed_abs, tag = 'smem constant byte address 0x4 - core index']
  #allocation1 [shape = 'u32[144,128]{1,0:T(1,128)}', space=vmem, size = 0x12000, scoped, tag = 'internal scratch']
  #allocation2 [shape = 'f32[256,128]{1,0:T(8,128)}', space=vmem, size = 0x20000, scoped, tag = 'scratch operand']
  %s0 = inlined_call_operand.vmem [shape: bf16[512,128], index: 0, kind: input, shape index: {}]
  %s1 = inlined_call_operand.vmem [shape: bf16[128,128], index: 1, kind: input, shape index: {}]
  %s2 = inlined_call_operand.vmem [shape: f32[1,128], index: 2, kind: input, shape index: {}]
  %s3 = inlined_call_operand.vmem [shape: f32[1,128], index: 3, kind: input, shape index: {}]
  %s4 = inlined_call_operand.vmem [shape: f32[512,128], index: 4, kind: output, shape index: {}]
  %s5 = sld [smem:[#allocation0]]
  $region57: #{_lambda_.13} parent=0
    _
  %s7 = ssub.s32 1, %s5
  %s8 = scalar_select 0, %s7, %s5
  loop: start=0, step=1, limit=4
  $region2: #{_lambda_.13} parent=0 // loop_pre_header
    _
  $region3: #{_lambda_.13} parent=0 // loop_header
    %s10 = sphi 0, %s14
    %p11 = scmp.ge.s32.totalorder %s10, 4
    %s17 = sphi 0, %s36
    %s18 = sphi 0, %s32
    %s19 = sphi 0, %s28
    %s20 = sphi 0, %s17
    %s21 = sphi 0, %s18
    %s22 = sphi 0, %s19
    %s23 = sphi 0, %s20
    %s24 = sphi 0, %s21
    %s25 = sphi 0, %s22
    %s41 = sphi 0, %s43
    %s44 = sphi 0, %s41
    %s45 = sphi 0, %s44
    %s61 = sphi 0, %s45
    %s69 = sphi 0, %s71
    %s72 = sphi 0, %s69
    %s73 = sphi 0, %s72
    %s89 = sphi 0, %s73
    %s95 = sphi 0, %s97
    %s98 = sphi 0, %s95
    %s99 = sphi 0, %s98
    %s115 = sphi 0, %s99
    %s121 = sphi 0, %s123
    %s124 = sphi 0, %s121
    %s125 = sphi 0, %s124
    %s141 = sphi 0, %s125
    %s149 = sphi 0, %s151
    %s152 = sphi 0, %s149
    %s153 = sphi 0, %s152
    %s169 = sphi 0, %s153
  $region4: #{_lambda_.13} parent=0 // loop_header_branch
    %13 = sbr.rel (%p11) target = $region8
  $region5: #{_lambda_.13} parent=0 // loop_body
    %s15 = ssub.s32 %s10, 1
    %s16 = ssub.s32 %s10, 2
    %s26 = sadd.s32 1, %s19
    %p27 = scmp.ge.s32.totalorder %s26, 1
    %s28 = scalar_select %p27, 0, %s26
    %s29 = sadd.s32 1, %s18
    %s30 = scalar_select %p27, %s29, %s18
    %p31 = scmp.ge.s32.totalorder %s30, 1
    %s32 = scalar_select %p31, 0, %s30
    %s33 = sadd.s32 1, %s17
    %s34 = scalar_select %p31, %s33, %s17
    %p35 = scmp.ge.s32.totalorder %s34, 2
    %s36 = scalar_select %p35, 0, %s34
    %s37 = ssub.s32 %s17, %s36
    %s38 = ssub.s32 %s19, %s28
    %s39 = sor.u32 %s37, %s38
    %p40 = scmp.eq.s32.totalorder %s39, 0
    %s42 = sadd.s32 %s41, 1
    %s43 = scalar_select %p40, %s41, %s42
    %p46 = pneg %p40
    %p47 = scmp.eq.s32.totalorder %s10, 1
    %p48 = por %p46, %p47
    %p49 = scmp.ne.s32.totalorder %s41, %s44
    %p50 = scmp.eq.s32.totalorder %s10, 0
    %p51 = por %p49, %p50
    %p52 = scmp.ne.s32.totalorder %s41, %s44
    %p53 = scmp.eq.s32.totalorder %s15, 1
    %p54 = por %p52, %p53
    %p55 = scmp.ne.s32.totalorder %s44, %s45
    %p56 = scmp.eq.s32.totalorder %s15, 0
    %p57 = por %p55, %p56
    %p58 = scmp.ne.s32.totalorder %s44, %s45
    %p59 = scmp.eq.s32.totalorder %s16, 1
    %p60 = por %p58, %p59
    %p62 = scmp.ne.s32.totalorder %s45, %s61
    %p63 = scmp.eq.s32.totalorder %s16, 0
    %p64 = por %p62, %p63
    %s65 = ssub.s32 %s19, %s28
    %s66 = ssub.s32 %s18, %s32
    %s67 = sor.u32 %s65, %s66
    %p68 = scmp.eq.s32.totalorder %s67, 0
    %s70 = sadd.s32 %s69, 1
    %s71 = scalar_select %p68, %s69, %s70
    %p74 = pneg %p68
    %p75 = scmp.eq.s32.totalorder %s10, 1
    %p76 = por %p74, %p75
    %p77 = scmp.ne.s32.totalorder %s69, %s72
    %p78 = scmp.eq.s32.totalorder %s10, 0
    %p79 = por %p77, %p78
    %p80 = scmp.ne.s32.totalorder %s69, %s72
    %p81 = scmp.eq.s32.totalorder %s15, 1
    %p82 = por %p80, %p81
    %p83 = scmp.ne.s32.totalorder %s72, %s73
    %p84 = scmp.eq.s32.totalorder %s15, 0
    %p85 = por %p83, %p84
    %p86 = scmp.ne.s32.totalorder %s72, %s73
    %p87 = scmp.eq.s32.totalorder %s16, 1
    %p88 = por %p86, %p87
    %p90 = scmp.ne.s32.totalorder %s73, %s89
    %p91 = scmp.eq.s32.totalorder %s16, 0
    %p92 = por %p90, %p91
    %s93 = ssub.s32 %s18, %s32
    %p94 = scmp.eq.s32.totalorder %s93, 0
    %s96 = sadd.s32 %s95, 1
    %s97 = scalar_select %p94, %s95, %s96
    %p100 = pneg %p94
    %p101 = scmp.eq.s32.totalorder %s10, 1
    %p102 = por %p100, %p101
    %p103 = scmp.ne.s32.totalorder %s95, %s98
    %p104 = scmp.eq.s32.totalorder %s10, 0
    %p105 = por %p103, %p104
    %p106 = scmp.ne.s32.totalorder %s95, %s98
    %p107 = scmp.eq.s32.totalorder %s15, 1
    %p108 = por %p106, %p107
    %p109 = scmp.ne.s32.totalorder %s98, %s99
    %p110 = scmp.eq.s32.totalorder %s15, 0
    %p111 = por %p109, %p110
    %p112 = scmp.ne.s32.totalorder %s98, %s99
    %p113 = scmp.eq.s32.totalorder %s16, 1
    %p114 = por %p112, %p113
    %p116 = scmp.ne.s32.totalorder %s99, %s115
    %p117 = scmp.eq.s32.totalorder %s16, 0
    %p118 = por %p116, %p117
    %s119 = ssub.s32 %s18, %s32
    %p120 = scmp.eq.s32.totalorder %s119, 0
    %s122 = sadd.s32 %s121, 1
    %s123 = scalar_select %p120, %s121, %s122
    %p126 = pneg %p120
    %p127 = scmp.eq.s32.totalorder %s10, 1
    %p128 = por %p126, %p127
    %p129 = scmp.ne.s32.totalorder %s121, %s124
    %p130 = scmp.eq.s32.totalorder %s10, 0
    %p131 = por %p129, %p130
    %p132 = scmp.ne.s32.totalorder %s121, %s124
    %p133 = scmp.eq.s32.totalorder %s15, 1
    %p134 = por %p132, %p133
    %p135 = scmp.ne.s32.totalorder %s124, %s125
    %p136 = scmp.eq.s32.totalorder %s15, 0
    %p137 = por %p135, %p136
    %p138 = scmp.ne.s32.totalorder %s124, %s125
    %p139 = scmp.eq.s32.totalorder %s16, 1
    %p140 = por %p138, %p139
    %p142 = scmp.ne.s32.totalorder %s125, %s141
    %p143 = scmp.eq.s32.totalorder %s16, 0
    %p144 = por %p142, %p143
    %s145 = ssub.s32 %s17, %s36
    %s146 = ssub.s32 %s18, %s32
    %s147 = sor.u32 %s145, %s146
    %p148 = scmp.eq.s32.totalorder %s147, 0
    %s150 = sadd.s32 %s149, 1
    %s151 = scalar_select %p148, %s149, %s150
    %p154 = pneg %p148
    %p155 = scmp.eq.s32.totalorder %s10, 1
    %p156 = por %p154, %p155
    %p157 = scmp.ne.s32.totalorder %s149, %s152
    %p158 = scmp.eq.s32.totalorder %s10, 0
    %p159 = por %p157, %p158
    %p160 = scmp.ne.s32.totalorder %s149, %s152
    %p161 = scmp.eq.s32.totalorder %s15, 1
    %p162 = por %p160, %p161
    %p163 = scmp.ne.s32.totalorder %s152, %s153
    %p164 = scmp.eq.s32.totalorder %s15, 0
    %p165 = por %p163, %p164
    %p166 = scmp.ne.s32.totalorder %s152, %s153
    %p167 = scmp.eq.s32.totalorder %s16, 1
    %p168 = por %p166, %p167
    %p170 = scmp.ne.s32.totalorder %s153, %s169
    %p171 = scmp.eq.s32.totalorder %s16, 0
    %p172 = por %p170, %p171
    %p173 = scmp.le.s32.totalorder 1, %s10
    %p174 = scmp.lt.s32.totalorder %s10, 3
    %p175 = pnand %p173, %p174
    %p176 = pneg %p175
    // Predicated region
    $region9: #{_lambda_.13} parent=5 // pred_check
      _
    $region10: #{_lambda_.13} parent=5 // pred_check_branch
      %178 = sbr.rel (%p175) target = $region12
    $region11: #{_lambda_.13} parent=5 // pred_region
      %s179 = ssub.s32 %s10, 1
      // Predicated region
      $region13: #{_lambda_.13} parent=11 // pred_check
        %p180 = pneg %p85
      $region14: #{_lambda_.13} parent=11 // pred_check_branch
        %182 = sbr.rel (%p180) target = $region16
      $region15: #{_lambda_.13} parent=11 // pred_region
        %s183 = smul.u32 16, %s22
        %p184 = scmp.lt.s32.totalorder %s183, 15
        %s185 = scalar_select %p184, %s183, 15
        %p186 = scmp.lt.s32.totalorder %s21, 0
        %s187 = scalar_select %p186, %s21, 0
        %s188 = sadd.s32 %s187, %s185
        %s189 = smul.addr %s188, 4
        %s190 = scalar_lea.vmem %s1, %s189
        %s191 = smul.u32 16, %s22
      $region16: #{_lambda_.13} parent=11 // pred_fallthru
        _
      // Predicated region
      $region17: #{_lambda_.13} parent=11 // pred_check
        %p192 = pneg %p111
      $region18: #{_lambda_.13} parent=11 // pred_check_branch
        %194 = sbr.rel (%p192) target = $region20
      $region19: #{_lambda_.13} parent=11 // pred_region
        %p195 = scmp.lt.s32.totalorder %s21, 0
        %s196 = scalar_select %p195, %s21, 0
        %s197 = scalar_lea.vmem %s2, %s196
      $region20: #{_lambda_.13} parent=11 // pred_fallthru
        _
      // Predicated region
      $region21: #{_lambda_.13} parent=11 // pred_check
        %p198 = pneg %p137
      $region22: #{_lambda_.13} parent=11 // pred_check_branch
        %200 = sbr.rel (%p198) target = $region24
      $region23: #{_lambda_.13} parent=11 // pred_region
        %p201 = scmp.lt.s32.totalorder %s21, 0
        %s202 = scalar_select %p201, %s21, 0
        %s203 = scalar_lea.vmem %s3, %s202
      $region24: #{_lambda_.13} parent=11 // pred_fallthru
        _
    $region12: #{_lambda_.13} parent=5 // pred_fallthru
      _
    %p204 = scmp.lt.s32.totalorder %s10, 2
    // Predicated region
    $region25: #{_lambda_.13} parent=5 // pred_check
      %p205 = pneg %p204
    $region26: #{_lambda_.13} parent=5 // pred_check_branch
      %207 = sbr.rel (%p205) target = $region28
    $region27: #{_lambda_.13} parent=5 // pred_region
      // Predicated region
      $region29: #{_lambda_.13} parent=27 // pred_check
        %p208 = pneg %p51
      $region30: #{_lambda_.13} parent=27 // pred_check_branch
        %210 = sbr.rel (%p208) target = $region32
      $region31: #{_lambda_.13} parent=27 // pred_region
        %s211 = smul.u32 32, %s17
        %p212 = scmp.lt.s32.totalorder %s211, 63
        %s213 = scalar_select %p212, %s211, 63
        %p214 = scmp.lt.s32.totalorder %s19, 0
        %s215 = scalar_select %p214, %s19, 0
        %s216 = sadd.s32 %s215, %s213
        %s217 = smul.addr %s216, 4
        %s218 = scalar_lea.vmem %s0, %s217
        %s219 = smul.u32 32, %s17
      $region32: #{_lambda_.13} parent=27 // pred_fallthru
        _
    $region28: #{_lambda_.13} parent=5 // pred_fallthru
      _
    %p220 = scmp.le.s32.totalorder 1, %s10
    %p221 = scmp.lt.s32.totalorder %s10, 3
    %p222 = pnand %p220, %p221
    %p223 = pneg %p222
    // Predicated region
    $region33: #{_lambda_.13} parent=5 // pred_check
      _
    $region34: #{_lambda_.13} parent=5 // pred_check_branch
      %225 = sbr.rel (%p222) target = $region36
    $region35: #{_lambda_.13} parent=5 // pred_region
      %s226 = ssub.s32 %s10, 1
      %s227 = smul.u32 32, %s20
      %p228 = scmp.lt.s32.totalorder %s227, 63
      %s229 = scalar_select %p228, %s227, 63
      %p230 = scmp.lt.s32.totalorder %s22, 0
      %s231 = scalar_select %p230, %s22, 0
      %s232 = sadd.s32 %s231, %s229
      %s233 = smul.addr %s232, 4
      %s234 = scalar_lea.vmem %s0, %s233
      %p235 = pneg %p57
      %p236 = pneg %p54
      %s237 = smul.u32 16, %s22
      %p238 = scmp.lt.s32.totalorder %s237, 15
      %s239 = scalar_select %p238, %s237, 15
      %p240 = scmp.lt.s32.totalorder %s21, 0
      %s241 = scalar_select %p240, %s21, 0
      %s242 = sadd.s32 %s241, %s239
      %s243 = smul.addr %s242, 4
      %s244 = scalar_lea.vmem %s1, %s243
      %p245 = pneg %p85
      %p246 = pneg %p82
      %p247 = scmp.lt.s32.totalorder %s21, 0
      %s248 = scalar_select %p247, %s21, 0
      %s249 = scalar_lea.vmem %s2, %s248
      %p250 = pneg %p111
      %p251 = pneg %p108
      %p252 = scmp.lt.s32.totalorder %s21, 0
      %s253 = scalar_select %p252, %s21, 0
      %s254 = scalar_lea.vmem %s3, %s253
      %p255 = pneg %p137
      %p256 = pneg %p134
      %p257 = pneg %p165
      %p258 = pneg %p162
      %s259 = smul.u32 32, %s20
      %p260 = scmp.lt.s32.totalorder %s259, 63
      %s261 = scalar_select %p260, %s259, 63
      %p262 = scmp.lt.s32.totalorder %s21, 0
      %s263 = scalar_select %p262, %s21, 0
      %s264 = sadd.s32 %s263, %s261
      %s265 = smul.addr %s264, 8
      %s266 = scalar_lea.vmem %s4, %s265
      %s267 = smul.u32 32, %s20
      %p268 = scmp.lt.s32.totalorder %s267, 63
      %s269 = scalar_select %p268, %s267, 63
      %p270 = scmp.lt.s32.totalorder %s22, 0
      %s271 = scalar_select %p270, %s22, 0
      %s272 = sadd.s32 %s271, %s269
      %s273 = smul.addr %s272, 4
      %s274 = scalar_lea.vmem %s0, %s273
      %s275 = smul.u32 32, %s20
      %s276 = smul.u32 16, %s22
      %p277 = scmp.lt.s32.totalorder %s276, 15
      %s278 = scalar_select %p277, %s276, 15
      %p279 = scmp.lt.s32.totalorder %s21, 0
      %s280 = scalar_select %p279, %s21, 0
      %s281 = sadd.s32 %s280, %s278
      %s282 = smul.addr %s281, 4
      %s283 = scalar_lea.vmem %s1, %s282
      %s284 = smul.u32 16, %s22
      %p285 = scmp.lt.s32.totalorder %s21, 0
      %s286 = scalar_select %p285, %s21, 0
      %s287 = scalar_lea.vmem %s2, %s286
      %p288 = scmp.lt.s32.totalorder %s21, 0
      %s289 = scalar_select %p288, %s21, 0
      %s290 = scalar_lea.vmem %s3, %s289
      %s291 = smul.u32 32, %s20
      %p292 = scmp.lt.s32.totalorder %s291, 63
      %s293 = scalar_select %p292, %s291, 63
      %p294 = scmp.lt.s32.totalorder %s21, 0
      %s295 = scalar_select %p294, %s21, 0
      %s296 = sadd.s32 %s295, %s293
      %s297 = smul.addr %s296, 8
      %s298 = scalar_lea.vmem %s4, %s297
      %s299 = smul.u32 32, %s20
      %p301 = scmp.eq.s32.totalorder %s22, 0
      // Predicated region
      $region37: #{_lambda_.13} parent=35 // pred_check
        %p302 = pneg %p301
      $region38: #{_lambda_.13} parent=35 // pred_check_branch
        %304 = sbr.rel (%p302) target = $region40
      $region39: #{_lambda_.13} parent=35 // pred_region
        %305 = vst [vmem:[#allocation2] sm:$0xff] 0.0
        %306 = vst [vmem:[#allocation2 + $0x8] sm:$0xff] 0.0
        %307 = vst [vmem:[#allocation2 + $0x10] sm:$0xff] 0.0
        %308 = vst [vmem:[#allocation2 + $0x18] sm:$0xff] 0.0
        %309 = vst [vmem:[#allocation2 + $0x20] sm:$0xff] 0.0
        %310 = vst [vmem:[#allocation2 + $0x28] sm:$0xff] 0.0
        %311 = vst [vmem:[#allocation2 + $0x30] sm:$0xff] 0.0
        %312 = vst [vmem:[#allocation2 + $0x38] sm:$0xff] 0.0
        %313 = vst [vmem:[#allocation2 + $0x40] sm:$0xff] 0.0
        %314 = vst [vmem:[#allocation2 + $0x48] sm:$0xff] 0.0
        %315 = vst [vmem:[#allocation2 + $0x50] sm:$0xff] 0.0
        %316 = vst [vmem:[#allocation2 + $0x58] sm:$0xff] 0.0
        %317 = vst [vmem:[#allocation2 + $0x60] sm:$0xff] 0.0
        %318 = vst [vmem:[#allocation2 + $0x68] sm:$0xff] 0.0
        %319 = vst [vmem:[#allocation2 + $0x70] sm:$0xff] 0.0
        %320 = vst [vmem:[#allocation2 + $0x78] sm:$0xff] 0.0
        %321 = vst [vmem:[#allocation2 + $0x80] sm:$0xff] 0.0
        %322 = vst [vmem:[#allocation2 + $0x88] sm:$0xff] 0.0
        %323 = vst [vmem:[#allocation2 + $0x90] sm:$0xff] 0.0
        %324 = vst [vmem:[#allocation2 + $0x98] sm:$0xff] 0.0
        %325 = vst [vmem:[#allocation2 + $0xa0] sm:$0xff] 0.0
        %326 = vst [vmem:[#allocation2 + $0xa8] sm:$0xff] 0.0
        %327 = vst [vmem:[#allocation2 + $0xb0] sm:$0xff] 0.0
        %328 = vst [vmem:[#allocation2 + $0xb8] sm:$0xff] 0.0
        %329 = vst [vmem:[#allocation2 + $0xc0] sm:$0xff] 0.0
        %330 = vst [vmem:[#allocation2 + $0xc8] sm:$0xff] 0.0
        %331 = vst [vmem:[#allocation2 + $0xd0] sm:$0xff] 0.0
        %332 = vst [vmem:[#allocation2 + $0xd8] sm:$0xff] 0.0
        %333 = vst [vmem:[#allocation2 + $0xe0] sm:$0xff] 0.0
        %334 = vst [vmem:[#allocation2 + $0xe8] sm:$0xff] 0.0
        %335 = vst [vmem:[#allocation2 + $0xf0] sm:$0xff] 0.0
        %336 = vst [vmem:[#allocation2 + $0xf8] sm:$0xff] 0.0
      $region40: #{_lambda_.13} parent=35 // pred_fallthru
        _
      %v337 = vld [vmem:[#allocation2] sm:$0xff]
      %v338 = vld [vmem:[#allocation2 + $0x8] sm:$0xff]
      %v339 = vld [vmem:[#allocation2 + $0x10] sm:$0xff]
      %v340 = vld [vmem:[#allocation2 + $0x18] sm:$0xff]
      %v341 = vld [vmem:[#allocation2 + $0x20] sm:$0xff]
      %v342 = vld [vmem:[#allocation2 + $0x28] sm:$0xff]
      %v343 = vld [vmem:[#allocation2 + $0x30] sm:$0xff]
      %v344 = vld [vmem:[#allocation2 + $0x38] sm:$0xff]
      %v345 = vld [vmem:[#allocation2 + $0x40] sm:$0xff]
      %v346 = vld [vmem:[#allocation2 + $0x48] sm:$0xff]
      %v347 = vld [vmem:[#allocation2 + $0x50] sm:$0xff]
      %v348 = vld [vmem:[#allocation2 + $0x58] sm:$0xff]
      %v349 = vld [vmem:[#allocation2 + $0x60] sm:$0xff]
      %v350 = vld [vmem:[#allocation2 + $0x68] sm:$0xff]
      %v351 = vld [vmem:[#allocation2 + $0x70] sm:$0xff]
      %v352 = vld [vmem:[#allocation2 + $0x78] sm:$0xff]
      %v353 = vld [vmem:[#allocation2 + $0x80] sm:$0xff]
      %v354 = vld [vmem:[#allocation2 + $0x88] sm:$0xff]
      %v355 = vld [vmem:[#allocation2 + $0x90] sm:$0xff]
      %v356 = vld [vmem:[#allocation2 + $0x98] sm:$0xff]
      %v357 = vld [vmem:[#allocation2 + $0xa0] sm:$0xff]
      %v358 = vld [vmem:[#allocation2 + $0xa8] sm:$0xff]
      %v359 = vld [vmem:[#allocation2 + $0xb0] sm:$0xff]
      %v360 = vld [vmem:[#allocation2 + $0xb8] sm:$0xff]
      %v361 = vld [vmem:[#allocation2 + $0xc0] sm:$0xff]
      %v362 = vld [vmem:[#allocation2 + $0xc8] sm:$0xff]
      %v363 = vld [vmem:[#allocation2 + $0xd0] sm:$0xff]
      %v364 = vld [vmem:[#allocation2 + $0xd8] sm:$0xff]
      %v365 = vld [vmem:[#allocation2 + $0xe0] sm:$0xff]
      %v366 = vld [vmem:[#allocation2 + $0xe8] sm:$0xff]
      %v367 = vld [vmem:[#allocation2 + $0xf0] sm:$0xff]
      %v368 = vld [vmem:[#allocation2 + $0xf8] sm:$0xff]
      %v369 = vld [vmem:[%s274] sm:$0xf]
      %v370 = vld [vmem:[%s274 + $0x4] sm:$0xf]
      %v371 = vld [vmem:[%s274 + $0x8] sm:$0xf]
      %v372 = vld [vmem:[%s274 + $0xc] sm:$0xf]
      %v373 = vld [vmem:[%s274 + $0x10] sm:$0xf]
      %v374 = vld [vmem:[%s274 + $0x14] sm:$0xf]
      %v375 = vld [vmem:[%s274 + $0x18] sm:$0xf]
      %v376 = vld [vmem:[%s274 + $0x1c] sm:$0xf]
      %v377 = vld [vmem:[%s274 + $0x20] sm:$0xf]
      %v378 = vld [vmem:[%s274 + $0x24] sm:$0xf]
      %v379 = vld [vmem:[%s274 + $0x28] sm:$0xf]
      %v380 = vld [vmem:[%s274 + $0x2c] sm:$0xf]
      %v381 = vld [vmem:[%s274 + $0x30] sm:$0xf]
      %v382 = vld [vmem:[%s274 + $0x34] sm:$0xf]
      %v383 = vld [vmem:[%s274 + $0x38] sm:$0xf]
      %v384 = vld [vmem:[%s274 + $0x3c] sm:$0xf]
      %v385 = vld [vmem:[%s274 + $0x40] sm:$0xf]
      %v386 = vld [vmem:[%s274 + $0x44] sm:$0xf]
      %v387 = vld [vmem:[%s274 + $0x48] sm:$0xf]
      %v388 = vld [vmem:[%s274 + $0x4c] sm:$0xf]
      %v389 = vld [vmem:[%s274 + $0x50] sm:$0xf]
      %v390 = vld [vmem:[%s274 + $0x54] sm:$0xf]
      %v391 = vld [vmem:[%s274 + $0x58] sm:$0xf]
      %v392 = vld [vmem:[%s274 + $0x5c] sm:$0xf]
      %v393 = vld [vmem:[%s274 + $0x60] sm:$0xf]
      %v394 = vld [vmem:[%s274 + $0x64] sm:$0xf]
      %v395 = vld [vmem:[%s274 + $0x68] sm:$0xf]
      %v396 = vld [vmem:[%s274 + $0x6c] sm:$0xf]
      %v397 = vld [vmem:[%s274 + $0x70] sm:$0xf]
      %v398 = vld [vmem:[%s274 + $0x74] sm:$0xf]
      %v399 = vld [vmem:[%s274 + $0x78] sm:$0xf]
      %v400 = vld [vmem:[%s274 + $0x7c] sm:$0xf]
      %v401 = vld [vmem:[%s283] sm:$0xf]
      %v402 = vld [vmem:[%s283 + $0x4] sm:$0xf]
      %v403 = vld [vmem:[%s283 + $0x8] sm:$0xf]
      %v404 = vld [vmem:[%s283 + $0xc] sm:$0xf]
      %v405 = vld [vmem:[%s283 + $0x10] sm:$0xf]
      %v406 = vld [vmem:[%s283 + $0x14] sm:$0xf]
      %v407 = vld [vmem:[%s283 + $0x18] sm:$0xf]
      %v408 = vld [vmem:[%s283 + $0x1c] sm:$0xf]
      %v409 = vld [vmem:[%s283 + $0x20] sm:$0xf]
      %v410 = vld [vmem:[%s283 + $0x24] sm:$0xf]
      %v411 = vld [vmem:[%s283 + $0x28] sm:$0xf]
      %v412 = vld [vmem:[%s283 + $0x2c] sm:$0xf]
      %v413 = vld [vmem:[%s283 + $0x30] sm:$0xf]
      %v414 = vld [vmem:[%s283 + $0x34] sm:$0xf]
      %v415 = vld [vmem:[%s283 + $0x38] sm:$0xf]
      %v416 = vld [vmem:[%s283 + $0x3c] sm:$0xf]
      %v449 = vunpack.c.l.b16 %v369
      %v450 = vunpack.c.l.b16 %v370
      %v451 = vunpack.c.l.b16 %v371
      %v452 = vunpack.c.l.b16 %v372
      %v453 = vunpack.c.l.b16 %v373
      %v454 = vunpack.c.l.b16 %v374
      %v455 = vunpack.c.l.b16 %v375
      %v456 = vunpack.c.l.b16 %v376
      %v457 = vunpack.c.l.b16 %v377
      %v458 = vunpack.c.l.b16 %v378
      %v459 = vunpack.c.l.b16 %v379
      %v460 = vunpack.c.l.b16 %v380
      %v461 = vunpack.c.l.b16 %v381
      %v462 = vunpack.c.l.b16 %v382
      %v463 = vunpack.c.l.b16 %v383
      %v464 = vunpack.c.l.b16 %v384
      %v465 = vunpack.c.l.b16 %v385
      %v466 = vunpack.c.l.b16 %v386
      %v467 = vunpack.c.l.b16 %v387
      %v468 = vunpack.c.l.b16 %v388
      %v469 = vunpack.c.l.b16 %v389
      %v470 = vunpack.c.l.b16 %v390
      %v471 = vunpack.c.l.b16 %v391
      %v472 = vunpack.c.l.b16 %v392
      %v473 = vunpack.c.l.b16 %v393
      %v474 = vunpack.c.l.b16 %v394
      %v475 = vunpack.c.l.b16 %v395
      %v476 = vunpack.c.l.b16 %v396
      %v477 = vunpack.c.l.b16 %v397
      %v478 = vunpack.c.l.b16 %v398
      %v479 = vunpack.c.l.b16 %v399
      %v480 = vunpack.c.l.b16 %v400
      %v481 = vpack.c.b16 %v450, %v449
      %v482 = vpack.c.b16 %v452, %v451
      %v483 = vpack.c.b16 %v454, %v453
      %v484 = vpack.c.b16 %v456, %v455
      %v485 = vpack.c.b16 %v458, %v457
      %v486 = vpack.c.b16 %v460, %v459
      %v487 = vpack.c.b16 %v462, %v461
      %v488 = vpack.c.b16 %v464, %v463
      %v489 = vpack.c.b16 %v466, %v465
      %v490 = vpack.c.b16 %v468, %v467
      %v491 = vpack.c.b16 %v470, %v469
      %v492 = vpack.c.b16 %v472, %v471
      %v493 = vpack.c.b16 %v474, %v473
      %v494 = vpack.c.b16 %v476, %v475
      %v495 = vpack.c.b16 %v478, %v477
      %v496 = vpack.c.b16 %v480, %v479
      %v529 = vunpack.c.l.b16 %v401
      %v530 = vunpack.c.l.b16 %v402
      %v531 = vunpack.c.l.b16 %v403
      %v532 = vunpack.c.l.b16 %v404
      %v533 = vunpack.c.l.b16 %v405
      %v534 = vunpack.c.l.b16 %v406
      %v535 = vunpack.c.l.b16 %v407
      %v536 = vunpack.c.l.b16 %v408
      %v537 = vunpack.c.l.b16 %v409
      %v538 = vunpack.c.l.b16 %v410
      %v539 = vunpack.c.l.b16 %v411
      %v540 = vunpack.c.l.b16 %v412
      %v541 = vunpack.c.l.b16 %v413
      %v542 = vunpack.c.l.b16 %v414
      %v543 = vunpack.c.l.b16 %v415
      %v544 = vunpack.c.l.b16 %v416
      %v545 = vpack.c.b16 %v530, %v529
      %v546 = vpack.c.b16 %v532, %v531
      %v547 = vpack.c.b16 %v534, %v533
      %v548 = vpack.c.b16 %v536, %v535
      %v549 = vpack.c.b16 %v538, %v537
      %v550 = vpack.c.b16 %v540, %v539
      %v551 = vpack.c.b16 %v542, %v541
      %v552 = vpack.c.b16 %v544, %v543
      %561 = vmatprep.subr.bf16.mxu0 0
      %562 = vmatpush1.bf16.msra.mxu0 %v552
      %563 = vmatprep.subr.bf16.mxu0 0
      %564 = vmatpush1.bf16.msra.mxu0 %v551
      %565 = vmatprep.subr.bf16.mxu0 0
      %566 = vmatpush1.bf16.msra.mxu0 %v550
      %567 = vmatprep.subr.bf16.mxu0 0
      %568 = vmatpush1.bf16.msra.mxu0 %v549
      %569 = vmatprep.subr.bf16.mxu0 0
      %570 = vmatpush1.bf16.msra.mxu0 %v548
      %571 = vmatprep.subr.bf16.mxu0 0
      %572 = vmatpush1.bf16.msra.mxu0 %v547
      %573 = vmatprep.subr.bf16.mxu0 0
      %574 = vmatpush1.bf16.msra.mxu0 %v546
      %575 = vmatprep.subr.bf16.mxu0 0
      %576 = vmatpush1.bf16.msra.mxu0 %v545
      %577 = vmatprep.subr.bf16.mxu0 0
      %578 = vmatpush2.bf16.msra.mxu0 0
      %579 = vmatprep.subr.bf16.mxu0 0
      %580 = vmatpush2.bf16.msra.mxu0 0
      %581 = vmatprep.subr.bf16.mxu0 0
      %582 = vmatpush2.bf16.msra.mxu0 0
      %583 = vmatprep.subr.bf16.mxu0 0
      %584 = vmatpush2.bf16.msra.mxu0 0
      %585 = vmatprep.subr.bf16.mxu0 0
      %586 = vmatpush2.bf16.msra.mxu0 0
      %587 = vmatprep.subr.bf16.mxu0 0
      %588 = vmatpush2.bf16.msra.mxu0 0
      %589 = vmatprep.subr.bf16.mxu0 0
      %590 = vmatpush2.bf16.msra.mxu0 0
      %591 = vmatprep.subr.bf16.mxu0 0
      %592 = vmatpush2.bf16.msra.mxu0 0
      %593 = vmatprep.mubr.bf16.mxu0 0
      %594 = vmatmul.mubr.bf16.gmra.mxu0 %v481
      %v595 = vpop.f32.mrf.mxu0
      %v596 = vadd.f32 0.0, %v595
      %v597 = vpop.f32.mrf.mxu0
      %v598 = vpop.f32.mrf.mxu0
      %v599 = vadd.f32 0.0, %v598
      %v600 = vpop.f32.mrf.mxu0
      %601 = vmatprep.mubr.bf16.mxu0 0
      %602 = vmatmul.mubr.bf16.gmra.mxu0 %v482
      %v603 = vpop.f32.mrf.mxu0
      %v604 = vadd.f32 0.0, %v603
      %v605 = vpop.f32.mrf.mxu0
      %v606 = vpop.f32.mrf.mxu0
      %v607 = vadd.f32 0.0, %v606
      %v608 = vpop.f32.mrf.mxu0
      %609 = vmatprep.mubr.bf16.mxu0 0
      %610 = vmatmul.mubr.bf16.gmra.mxu0 %v483
      %v611 = vpop.f32.mrf.mxu0
      %v612 = vadd.f32 0.0, %v611
      %v613 = vpop.f32.mrf.mxu0
      %v614 = vpop.f32.mrf.mxu0
      %v615 = vadd.f32 0.0, %v614
      %v616 = vpop.f32.mrf.mxu0
      %617 = vmatprep.mubr.bf16.mxu0 0
      %618 = vmatmul.mubr.bf16.gmra.mxu0 %v484
      %v619 = vpop.f32.mrf.mxu0
      %v620 = vadd.f32 0.0, %v619
      %v621 = vpop.f32.mrf.mxu0
      %v622 = vpop.f32.mrf.mxu0
      %v623 = vadd.f32 0.0, %v622
      %v624 = vpop.f32.mrf.mxu0
      %625 = vmatprep.mubr.bf16.mxu0 0
      %626 = vmatmul.mubr.bf16.gmra.mxu0 %v485
      %v627 = vpop.f32.mrf.mxu0
      %v628 = vadd.f32 0.0, %v627
      %v629 = vpop.f32.mrf.mxu0
      %v630 = vpop.f32.mrf.mxu0
      %v631 = vadd.f32 0.0, %v630
      %v632 = vpop.f32.mrf.mxu0
      %633 = vmatprep.mubr.bf16.mxu0 0
      %634 = vmatmul.mubr.bf16.gmra.mxu0 %v486
      %v635 = vpop.f32.mrf.mxu0
      %v636 = vadd.f32 0.0, %v635
      %v637 = vpop.f32.mrf.mxu0
      %v638 = vpop.f32.mrf.mxu0
      %v639 = vadd.f32 0.0, %v638
      %v640 = vpop.f32.mrf.mxu0
      %641 = vmatprep.mubr.bf16.mxu0 0
      %642 = vmatmul.mubr.bf16.gmra.mxu0 %v487
      %v643 = vpop.f32.mrf.mxu0
      %v644 = vadd.f32 0.0, %v643
      %v645 = vpop.f32.mrf.mxu0
      %v646 = vpop.f32.mrf.mxu0
      %v647 = vadd.f32 0.0, %v646
      %v648 = vpop.f32.mrf.mxu0
      %649 = vmatprep.mubr.bf16.mxu0 0
      %650 = vmatmul.mubr.bf16.gmra.mxu0 %v488
      %v651 = vpop.f32.mrf.mxu0
      %v652 = vadd.f32 0.0, %v651
      %v653 = vpop.f32.mrf.mxu0
      %v654 = vpop.f32.mrf.mxu0
      %v655 = vadd.f32 0.0, %v654
      %v656 = vpop.f32.mrf.mxu0
      %657 = vmatprep.mubr.bf16.mxu0 0
      %658 = vmatmul.mubr.bf16.gmra.mxu0 %v489
      %v659 = vpop.f32.mrf.mxu0
      %v660 = vadd.f32 0.0, %v659
      %v661 = vpop.f32.mrf.mxu0
      %v662 = vpop.f32.mrf.mxu0
      %v663 = vadd.f32 0.0, %v662
      %v664 = vpop.f32.mrf.mxu0
      %665 = vmatprep.mubr.bf16.mxu0 0
      %666 = vmatmul.mubr.bf16.gmra.mxu0 %v490
      %v667 = vpop.f32.mrf.mxu0
      %v668 = vadd.f32 0.0, %v667
      %v669 = vpop.f32.mrf.mxu0
      %v670 = vpop.f32.mrf.mxu0
      %v671 = vadd.f32 0.0, %v670
      %v672 = vpop.f32.mrf.mxu0
      %673 = vmatprep.mubr.bf16.mxu0 0
      %674 = vmatmul.mubr.bf16.gmra.mxu0 %v491
      %v675 = vpop.f32.mrf.mxu0
      %v676 = vadd.f32 0.0, %v675
      %v677 = vpop.f32.mrf.mxu0
      %v678 = vpop.f32.mrf.mxu0
      %v679 = vadd.f32 0.0, %v678
      %v680 = vpop.f32.mrf.mxu0
      %681 = vmatprep.mubr.bf16.mxu0 0
      %682 = vmatmul.mubr.bf16.gmra.mxu0 %v492
      %v683 = vpop.f32.mrf.mxu0
      %v684 = vadd.f32 0.0, %v683
      %v685 = vpop.f32.mrf.mxu0
      %v686 = vpop.f32.mrf.mxu0
      %v687 = vadd.f32 0.0, %v686
      %v688 = vpop.f32.mrf.mxu0
      %689 = vmatprep.mubr.bf16.mxu0 0
      %690 = vmatmul.mubr.bf16.gmra.mxu0 %v493
      %v691 = vpop.f32.mrf.mxu0
      %v692 = vadd.f32 0.0, %v691
      %v693 = vpop.f32.mrf.mxu0
      %v694 = vpop.f32.mrf.mxu0
      %v695 = vadd.f32 0.0, %v694
      %v696 = vpop.f32.mrf.mxu0
      %697 = vmatprep.mubr.bf16.mxu0 0
      %698 = vmatmul.mubr.bf16.gmra.mxu0 %v494
      %v699 = vpop.f32.mrf.mxu0
      %v700 = vadd.f32 0.0, %v699
      %v701 = vpop.f32.mrf.mxu0
      %v702 = vpop.f32.mrf.mxu0
      %v703 = vadd.f32 0.0, %v702
      %v704 = vpop.f32.mrf.mxu0
      %705 = vmatprep.mubr.bf16.mxu0 0
      %706 = vmatmul.mubr.bf16.gmra.mxu0 %v495
      %v707 = vpop.f32.mrf.mxu0
      %v708 = vadd.f32 0.0, %v707
      %v709 = vpop.f32.mrf.mxu0
      %v710 = vpop.f32.mrf.mxu0
      %v711 = vadd.f32 0.0, %v710
      %v712 = vpop.f32.mrf.mxu0
      %713 = vmatprep.mubr.bf16.mxu0 0
      %714 = vmatmul.mubr.bf16.gmra.mxu0 %v496
      %v715 = vpop.f32.mrf.mxu0
      %v716 = vadd.f32 0.0, %v715
      %v717 = vpop.f32.mrf.mxu0
      %v718 = vpop.f32.mrf.mxu0
      %v719 = vadd.f32 0.0, %v718
      %v720 = vpop.f32.mrf.mxu0
      %721 = vdwg.mxu0
      %v722 = vadd.f32 %v337, %v596
      %v723 = vadd.f32 %v338, %v599
      %v724 = vadd.f32 %v339, %v604
      %v725 = vadd.f32 %v340, %v607
      %v726 = vadd.f32 %v341, %v612
      %v727 = vadd.f32 %v342, %v615
      %v728 = vadd.f32 %v343, %v620
      %v729 = vadd.f32 %v344, %v623
      %v730 = vadd.f32 %v345, %v628
      %v731 = vadd.f32 %v346, %v631
      %v732 = vadd.f32 %v347, %v636
      %v733 = vadd.f32 %v348, %v639
      %v734 = vadd.f32 %v349, %v644
      %v735 = vadd.f32 %v350, %v647
      %v736 = vadd.f32 %v351, %v652
      %v737 = vadd.f32 %v352, %v655
      %v738 = vadd.f32 %v353, %v660
      %v739 = vadd.f32 %v354, %v663
      %v740 = vadd.f32 %v355, %v668
      %v741 = vadd.f32 %v356, %v671
      %v742 = vadd.f32 %v357, %v676
      %v743 = vadd.f32 %v358, %v679
      %v744 = vadd.f32 %v359, %v684
      %v745 = vadd.f32 %v360, %v687
      %v746 = vadd.f32 %v361, %v692
      %v747 = vadd.f32 %v362, %v695
      %v748 = vadd.f32 %v363, %v700
      %v749 = vadd.f32 %v364, %v703
      %v750 = vadd.f32 %v365, %v708
      %v751 = vadd.f32 %v366, %v711
      %v752 = vadd.f32 %v367, %v716
      %v753 = vadd.f32 %v368, %v719
      %754 = vst [vmem:[#allocation2] sm:$0xff] %v722
      %755 = vst [vmem:[#allocation2 + $0x8] sm:$0xff] %v723
      %756 = vst [vmem:[#allocation2 + $0x10] sm:$0xff] %v724
      %757 = vst [vmem:[#allocation2 + $0x18] sm:$0xff] %v725
      %758 = vst [vmem:[#allocation2 + $0x20] sm:$0xff] %v726
      %759 = vst [vmem:[#allocation2 + $0x28] sm:$0xff] %v727
      %760 = vst [vmem:[#allocation2 + $0x30] sm:$0xff] %v728
      %761 = vst [vmem:[#allocation2 + $0x38] sm:$0xff] %v729
      %762 = vst [vmem:[#allocation2 + $0x40] sm:$0xff] %v730
      %763 = vst [vmem:[#allocation2 + $0x48] sm:$0xff] %v731
      %764 = vst [vmem:[#allocation2 + $0x50] sm:$0xff] %v732
      %765 = vst [vmem:[#allocation2 + $0x58] sm:$0xff] %v733
      %766 = vst [vmem:[#allocation2 + $0x60] sm:$0xff] %v734
      %767 = vst [vmem:[#allocation2 + $0x68] sm:$0xff] %v735
      %768 = vst [vmem:[#allocation2 + $0x70] sm:$0xff] %v736
      %769 = vst [vmem:[#allocation2 + $0x78] sm:$0xff] %v737
      %770 = vst [vmem:[#allocation2 + $0x80] sm:$0xff] %v738
      %771 = vst [vmem:[#allocation2 + $0x88] sm:$0xff] %v739
      %772 = vst [vmem:[#allocation2 + $0x90] sm:$0xff] %v740
      %773 = vst [vmem:[#allocation2 + $0x98] sm:$0xff] %v741
      %774 = vst [vmem:[#allocation2 + $0xa0] sm:$0xff] %v742
      %775 = vst [vmem:[#allocation2 + $0xa8] sm:$0xff] %v743
      %776 = vst [vmem:[#allocation2 + $0xb0] sm:$0xff] %v744
      %777 = vst [vmem:[#allocation2 + $0xb8] sm:$0xff] %v745
      %778 = vst [vmem:[#allocation2 + $0xc0] sm:$0xff] %v746
      %779 = vst [vmem:[#allocation2 + $0xc8] sm:$0xff] %v747
      %780 = vst [vmem:[#allocation2 + $0xd0] sm:$0xff] %v748
      %781 = vst [vmem:[#allocation2 + $0xd8] sm:$0xff] %v749
      %782 = vst [vmem:[#allocation2 + $0xe0] sm:$0xff] %v750
      %783 = vst [vmem:[#allocation2 + $0xe8] sm:$0xff] %v751
      %784 = vst [vmem:[#allocation2 + $0xf0] sm:$0xff] %v752
      %785 = vst [vmem:[#allocation2 + $0xf8] sm:$0xff] %v753
      // Predicated region
      $region41: #{_lambda_.13} parent=35 // pred_check
        %p786 = pneg %p301
      $region42: #{_lambda_.13} parent=35 // pred_check_branch
        %788 = sbr.rel (%p786) target = $region44
      $region43: #{_lambda_.13} parent=35 // pred_region
        %v789 = vld [vmem:[#allocation2] sm:$0xff]
        %v790 = vld [vmem:[#allocation2 + $0x8] sm:$0xff]
        %v791 = vld [vmem:[#allocation2 + $0x10] sm:$0xff]
        %v792 = vld [vmem:[#allocation2 + $0x18] sm:$0xff]
        %v793 = vld [vmem:[#allocation2 + $0x20] sm:$0xff]
        %v794 = vld [vmem:[#allocation2 + $0x28] sm:$0xff]
        %v795 = vld [vmem:[#allocation2 + $0x30] sm:$0xff]
        %v796 = vld [vmem:[#allocation2 + $0x38] sm:$0xff]
        %v797 = vld [vmem:[#allocation2 + $0x40] sm:$0xff]
        %v798 = vld [vmem:[#allocation2 + $0x48] sm:$0xff]
        %v799 = vld [vmem:[#allocation2 + $0x50] sm:$0xff]
        %v800 = vld [vmem:[#allocation2 + $0x58] sm:$0xff]
        %v801 = vld [vmem:[#allocation2 + $0x60] sm:$0xff]
        %v802 = vld [vmem:[#allocation2 + $0x68] sm:$0xff]
        %v803 = vld [vmem:[#allocation2 + $0x70] sm:$0xff]
        %v804 = vld [vmem:[#allocation2 + $0x78] sm:$0xff]
        %v805 = vld [vmem:[#allocation2 + $0x80] sm:$0xff]
        %v806 = vld [vmem:[#allocation2 + $0x88] sm:$0xff]
        %v807 = vld [vmem:[#allocation2 + $0x90] sm:$0xff]
        %v808 = vld [vmem:[#allocation2 + $0x98] sm:$0xff]
        %v809 = vld [vmem:[#allocation2 + $0xa0] sm:$0xff]
        %v810 = vld [vmem:[#allocation2 + $0xa8] sm:$0xff]
        %v811 = vld [vmem:[#allocation2 + $0xb0] sm:$0xff]
        %v812 = vld [vmem:[#allocation2 + $0xb8] sm:$0xff]
        %v813 = vld [vmem:[#allocation2 + $0xc0] sm:$0xff]
        %v814 = vld [vmem:[#allocation2 + $0xc8] sm:$0xff]
        %v815 = vld [vmem:[#allocation2 + $0xd0] sm:$0xff]
        %v816 = vld [vmem:[#allocation2 + $0xd8] sm:$0xff]
        %v817 = vld [vmem:[#allocation2 + $0xe0] sm:$0xff]
        %v818 = vld [vmem:[#allocation2 + $0xe8] sm:$0xff]
        %v819 = vld [vmem:[#allocation2 + $0xf0] sm:$0xff]
        %v820 = vld [vmem:[#allocation2 + $0xf8] sm:$0xff]
        %v821 = vld [vmem:[%s287] sm:$0x1]
        %v823 = vlaneseq
        %v824 = vshrl.u32 %v823, 7
        %v825 = vsub.s32 0, %v824
        %v826 = vrot.slane %v821, %v825
        %v828 = vmul.f32 %v789, %v826
        %v829 = vmul.f32 %v790, %v826
        %v830 = vmul.f32 %v791, %v826
        %v831 = vmul.f32 %v792, %v826
        %v832 = vmul.f32 %v793, %v826
        %v833 = vmul.f32 %v794, %v826
        %v834 = vmul.f32 %v795, %v826
        %v835 = vmul.f32 %v796, %v826
        %v836 = vmul.f32 %v797, %v826
        %v837 = vmul.f32 %v798, %v826
        %v838 = vmul.f32 %v799, %v826
        %v839 = vmul.f32 %v800, %v826
        %v840 = vmul.f32 %v801, %v826
        %v841 = vmul.f32 %v802, %v826
        %v842 = vmul.f32 %v803, %v826
        %v843 = vmul.f32 %v804, %v826
        %v844 = vmul.f32 %v805, %v826
        %v845 = vmul.f32 %v806, %v826
        %v846 = vmul.f32 %v807, %v826
        %v847 = vmul.f32 %v808, %v826
        %v848 = vmul.f32 %v809, %v826
        %v849 = vmul.f32 %v810, %v826
        %v850 = vmul.f32 %v811, %v826
        %v851 = vmul.f32 %v812, %v826
        %v852 = vmul.f32 %v813, %v826
        %v853 = vmul.f32 %v814, %v826
        %v854 = vmul.f32 %v815, %v826
        %v855 = vmul.f32 %v816, %v826
        %v856 = vmul.f32 %v817, %v826
        %v857 = vmul.f32 %v818, %v826
        %v858 = vmul.f32 %v819, %v826
        %v859 = vmul.f32 %v820, %v826
        %v860 = vld [vmem:[%s290] sm:$0x1]
        %v862 = vlaneseq
        %v863 = vshrl.u32 %v862, 7
        %v864 = vsub.s32 0, %v863
        %v865 = vrot.slane %v860, %v864
        %v867 = vadd.f32 %v828, %v865
        %v868 = vadd.f32 %v829, %v865
        %v869 = vadd.f32 %v830, %v865
        %v870 = vadd.f32 %v831, %v865
        %v871 = vadd.f32 %v832, %v865
        %v872 = vadd.f32 %v833, %v865
        %v873 = vadd.f32 %v834, %v865
        %v874 = vadd.f32 %v835, %v865
        %v875 = vadd.f32 %v836, %v865
        %v876 = vadd.f32 %v837, %v865
        %v877 = vadd.f32 %v838, %v865
        %v878 = vadd.f32 %v839, %v865
        %v879 = vadd.f32 %v840, %v865
        %v880 = vadd.f32 %v841, %v865
        %v881 = vadd.f32 %v842, %v865
        %v882 = vadd.f32 %v843, %v865
        %v883 = vadd.f32 %v844, %v865
        %v884 = vadd.f32 %v845, %v865
        %v885 = vadd.f32 %v846, %v865
        %v886 = vadd.f32 %v847, %v865
        %v887 = vadd.f32 %v848, %v865
        %v888 = vadd.f32 %v849, %v865
        %v889 = vadd.f32 %v850, %v865
        %v890 = vadd.f32 %v851, %v865
        %v891 = vadd.f32 %v852, %v865
        %v892 = vadd.f32 %v853, %v865
        %v893 = vadd.f32 %v854, %v865
        %v894 = vadd.f32 %v855, %v865
        %v895 = vadd.f32 %v856, %v865
        %v896 = vadd.f32 %v857, %v865
        %v897 = vadd.f32 %v858, %v865
        %v898 = vadd.f32 %v859, %v865
        %vm899 = vcmp.gt.f32.partialorder %v867, 0.0
        %vm900 = vcmp.gt.f32.partialorder %v868, 0.0
        %vm901 = vcmp.gt.f32.partialorder %v869, 0.0
        %vm902 = vcmp.gt.f32.partialorder %v870, 0.0
        %vm903 = vcmp.gt.f32.partialorder %v871, 0.0
        %vm904 = vcmp.gt.f32.partialorder %v872, 0.0
        %vm905 = vcmp.gt.f32.partialorder %v873, 0.0
        %vm906 = vcmp.gt.f32.partialorder %v874, 0.0
        %vm907 = vcmp.gt.f32.partialorder %v875, 0.0
        %vm908 = vcmp.gt.f32.partialorder %v876, 0.0
        %vm909 = vcmp.gt.f32.partialorder %v877, 0.0
        %vm910 = vcmp.gt.f32.partialorder %v878, 0.0
        %vm911 = vcmp.gt.f32.partialorder %v879, 0.0
        %vm912 = vcmp.gt.f32.partialorder %v880, 0.0
        %vm913 = vcmp.gt.f32.partialorder %v881, 0.0
        %vm914 = vcmp.gt.f32.partialorder %v882, 0.0
        %vm915 = vcmp.gt.f32.partialorder %v883, 0.0
        %vm916 = vcmp.gt.f32.partialorder %v884, 0.0
        %vm917 = vcmp.gt.f32.partialorder %v885, 0.0
        %vm918 = vcmp.gt.f32.partialorder %v886, 0.0
        %vm919 = vcmp.gt.f32.partialorder %v887, 0.0
        %vm920 = vcmp.gt.f32.partialorder %v888, 0.0
        %vm921 = vcmp.gt.f32.partialorder %v889, 0.0
        %vm922 = vcmp.gt.f32.partialorder %v890, 0.0
        %vm923 = vcmp.gt.f32.partialorder %v891, 0.0
        %vm924 = vcmp.gt.f32.partialorder %v892, 0.0
        %vm925 = vcmp.gt.f32.partialorder %v893, 0.0
        %vm926 = vcmp.gt.f32.partialorder %v894, 0.0
        %vm927 = vcmp.gt.f32.partialorder %v895, 0.0
        %vm928 = vcmp.gt.f32.partialorder %v896, 0.0
        %vm929 = vcmp.gt.f32.partialorder %v897, 0.0
        %vm930 = vcmp.gt.f32.partialorder %v898, 0.0
        %v931 = vmul.f32 %v867, 0.1
        %v932 = vmul.f32 %v868, 0.1
        %v933 = vmul.f32 %v869, 0.1
        %v934 = vmul.f32 %v870, 0.1
        %v935 = vmul.f32 %v871, 0.1
        %v936 = vmul.f32 %v872, 0.1
        %v937 = vmul.f32 %v873, 0.1
        %v938 = vmul.f32 %v874, 0.1
        %v939 = vmul.f32 %v875, 0.1
        %v940 = vmul.f32 %v876, 0.1
        %v941 = vmul.f32 %v877, 0.1
        %v942 = vmul.f32 %v878, 0.1
        %v943 = vmul.f32 %v879, 0.1
        %v944 = vmul.f32 %v880, 0.1
        %v945 = vmul.f32 %v881, 0.1
        %v946 = vmul.f32 %v882, 0.1
        %v947 = vmul.f32 %v883, 0.1
        %v948 = vmul.f32 %v884, 0.1
        %v949 = vmul.f32 %v885, 0.1
        %v950 = vmul.f32 %v886, 0.1
        %v951 = vmul.f32 %v887, 0.1
        %v952 = vmul.f32 %v888, 0.1
        %v953 = vmul.f32 %v889, 0.1
        %v954 = vmul.f32 %v890, 0.1
        %v955 = vmul.f32 %v891, 0.1
        %v956 = vmul.f32 %v892, 0.1
        %v957 = vmul.f32 %v893, 0.1
        %v958 = vmul.f32 %v894, 0.1
        %v959 = vmul.f32 %v895, 0.1
        %v960 = vmul.f32 %v896, 0.1
        %v961 = vmul.f32 %v897, 0.1
        %v962 = vmul.f32 %v898, 0.1
        %v963 = vsel %vm899, %v867, %v931
        %v964 = vsel %vm900, %v868, %v932
        %v965 = vsel %vm901, %v869, %v933
        %v966 = vsel %vm902, %v870, %v934
        %v967 = vsel %vm903, %v871, %v935
        %v968 = vsel %vm904, %v872, %v936
        %v969 = vsel %vm905, %v873, %v937
        %v970 = vsel %vm906, %v874, %v938
        %v971 = vsel %vm907, %v875, %v939
        %v972 = vsel %vm908, %v876, %v940
        %v973 = vsel %vm909, %v877, %v941
        %v974 = vsel %vm910, %v878, %v942
        %v975 = vsel %vm911, %v879, %v943
        %v976 = vsel %vm912, %v880, %v944
        %v977 = vsel %vm913, %v881, %v945
        %v978 = vsel %vm914, %v882, %v946
        %v979 = vsel %vm915, %v883, %v947
        %v980 = vsel %vm916, %v884, %v948
        %v981 = vsel %vm917, %v885, %v949
        %v982 = vsel %vm918, %v886, %v950
        %v983 = vsel %vm919, %v887, %v951
        %v984 = vsel %vm920, %v888, %v952
        %v985 = vsel %vm921, %v889, %v953
        %v986 = vsel %vm922, %v890, %v954
        %v987 = vsel %vm923, %v891, %v955
        %v988 = vsel %vm924, %v892, %v956
        %v989 = vsel %vm925, %v893, %v957
        %v990 = vsel %vm926, %v894, %v958
        %v991 = vsel %vm927, %v895, %v959
        %v992 = vsel %vm928, %v896, %v960
        %v993 = vsel %vm929, %v897, %v961
        %v994 = vsel %vm930, %v898, %v962
        %995 = vst [vmem:[%s298] sm:$0xff] %v963
        %996 = vst [vmem:[%s298 + $0x8] sm:$0xff] %v964
        %997 = vst [vmem:[%s298 + $0x10] sm:$0xff] %v965
        %998 = vst [vmem:[%s298 + $0x18] sm:$0xff] %v966
        %999 = vst [vmem:[%s298 + $0x20] sm:$0xff] %v967
        %1000 = vst [vmem:[%s298 + $0x28] sm:$0xff] %v968
        %1001 = vst [vmem:[%s298 + $0x30] sm:$0xff] %v969
        %1002 = vst [vmem:[%s298 + $0x38] sm:$0xff] %v970
        %1003 = vst [vmem:[%s298 + $0x40] sm:$0xff] %v971
        %1004 = vst [vmem:[%s298 + $0x48] sm:$0xff] %v972
        %1005 = vst [vmem:[%s298 + $0x50] sm:$0xff] %v973
        %1006 = vst [vmem:[%s298 + $0x58] sm:$0xff] %v974
        %1007 = vst [vmem:[%s298 + $0x60] sm:$0xff] %v975
        %1008 = vst [vmem:[%s298 + $0x68] sm:$0xff] %v976
        %1009 = vst [vmem:[%s298 + $0x70] sm:$0xff] %v977
        %1010 = vst [vmem:[%s298 + $0x78] sm:$0xff] %v978
        %1011 = vst [vmem:[%s298 + $0x80] sm:$0xff] %v979
        %1012 = vst [vmem:[%s298 + $0x88] sm:$0xff] %v980
        %1013 = vst [vmem:[%s298 + $0x90] sm:$0xff] %v981
        %1014 = vst [vmem:[%s298 + $0x98] sm:$0xff] %v982
        %1015 = vst [vmem:[%s298 + $0xa0] sm:$0xff] %v983
        %1016 = vst [vmem:[%s298 + $0xa8] sm:$0xff] %v984
        %1017 = vst [vmem:[%s298 + $0xb0] sm:$0xff] %v985
        %1018 = vst [vmem:[%s298 + $0xb8] sm:$0xff] %v986
        %1019 = vst [vmem:[%s298 + $0xc0] sm:$0xff] %v987
        %1020 = vst [vmem:[%s298 + $0xc8] sm:$0xff] %v988
        %1021 = vst [vmem:[%s298 + $0xd0] sm:$0xff] %v989
        %1022 = vst [vmem:[%s298 + $0xd8] sm:$0xff] %v990
        %1023 = vst [vmem:[%s298 + $0xe0] sm:$0xff] %v991
        %1024 = vst [vmem:[%s298 + $0xe8] sm:$0xff] %v992
        %1025 = vst [vmem:[%s298 + $0xf0] sm:$0xff] %v993
        %1026 = vst [vmem:[%s298 + $0xf8] sm:$0xff] %v994
      $region44: #{_lambda_.13} parent=35 // pred_fallthru
        _
      %s1027 = smul.u32 32, %s20
      %p1028 = scmp.lt.s32.totalorder %s1027, 63
      %s1029 = scalar_select %p1028, %s1027, 63
      %p1030 = scmp.lt.s32.totalorder %s21, 0
      %s1031 = scalar_select %p1030, %s21, 0
      %s1032 = sadd.s32 %s1031, %s1029
      %s1033 = smul.addr %s1032, 8
      %s1034 = scalar_lea.vmem %s4, %s1033
      // Predicated region
      $region45: #{_lambda_.13} parent=35 // pred_check
        %p1035 = pneg %p162
      $region46: #{_lambda_.13} parent=35 // pred_check_branch
        %1037 = sbr.rel (%p1035) target = $region48
      $region47: #{_lambda_.13} parent=35 // pred_region
        %s1038 = smul.u32 32, %s20
      $region48: #{_lambda_.13} parent=35 // pred_fallthru
        _
    $region36: #{_lambda_.13} parent=5 // pred_fallthru
      _
    %p1039 = scmp.le.s32.totalorder 2, %s10
    // Predicated region
    $region49: #{_lambda_.13} parent=5 // pred_check
      %p1040 = pneg %p1039
    $region50: #{_lambda_.13} parent=5 // pred_check_branch
      %1042 = sbr.rel (%p1040) target = $region52
    $region51: #{_lambda_.13} parent=5 // pred_region
      %s1043 = ssub.s32 %s10, 2
      // Predicated region
      $region53: #{_lambda_.13} parent=51 // pred_check
        %p1044 = pneg %p168
      $region54: #{_lambda_.13} parent=51 // pred_check_branch
        %1046 = sbr.rel (%p1044) target = $region56
      $region55: #{_lambda_.13} parent=51 // pred_region
        %s1047 = smul.u32 32, %s23
        %p1048 = scmp.lt.s32.totalorder %s1047, 63
        %s1049 = scalar_select %p1048, %s1047, 63
        %p1050 = scmp.lt.s32.totalorder %s24, 0
        %s1051 = scalar_select %p1050, %s24, 0
        %s1052 = sadd.s32 %s1051, %s1049
        %s1053 = smul.addr %s1052, 8
        %s1054 = scalar_lea.vmem %s4, %s1053
      $region56: #{_lambda_.13} parent=51 // pred_fallthru
        _
    $region52: #{_lambda_.13} parent=5 // pred_fallthru
      _
  $region6: #{_lambda_.13} parent=0 // loop_footer
    %s14 = sadd.s32 1, %s10
  $region7: #{_lambda_.13} parent=0 // loop_footer_branch
    %9 = sbr.rel target = $region3
  $region8: #{_lambda_.13} parent=0 // loop_exit
    _

// kernel: _lambda_.15
$region0: #{_lambda_.15}
  #allocation0 [shape = 'u32[]', space=smem, size = 0x4, offset = 0x4, fixed_abs, tag = 'smem constant byte address 0x4 - core index']
  #allocation1 [shape = 'u32[144,128]{1,0:T(1,128)}', space=vmem, size = 0x12000, scoped, tag = 'internal scratch']
  #allocation2 [shape = 'f32[128,128]{1,0:T(8,128)}', space=vmem, size = 0x10000, scoped, tag = 'scratch operand']
  %s0 = inlined_call_operand.vmem [shape: bf16[128,128], index: 0, kind: input, shape index: {}]
  %s1 = inlined_call_operand.vmem [shape: bf16[128,128], index: 1, kind: input, shape index: {}]
  %s2 = inlined_call_operand.vmem [shape: f32[1,128], index: 2, kind: input, shape index: {}]
  %s3 = inlined_call_operand.vmem [shape: f32[1,128], index: 3, kind: input, shape index: {}]
  %s4 = inlined_call_operand.vmem [shape: f32[128,128], index: 4, kind: output, shape index: {}]
  %s5 = sld [smem:[#allocation0]]
  $region34: #{_lambda_.15} parent=0
    _
  %s7 = ssub.s32 1, %s5
  %s8 = scalar_select 0, %s7, %s5
  // Predicated region
  $region2: #{_lambda_.15} parent=0 // pred_check
    _
  $region3: #{_lambda_.15} parent=0 // pred_check_branch
    %10 = sbr.rel (0) target = $region5
  $region4: #{_lambda_.15} parent=0 // pred_region
    _
  $region5: #{_lambda_.15} parent=0 // pred_fallthru
    _
  // Predicated region
  $region6: #{_lambda_.15} parent=0 // pred_check
    _
  $region7: #{_lambda_.15} parent=0 // pred_check_branch
    %12 = sbr.rel (0) target = $region9
  $region8: #{_lambda_.15} parent=0 // pred_region
    _
  $region9: #{_lambda_.15} parent=0 // pred_fallthru
    _
  // Predicated region
  $region10: #{_lambda_.15} parent=0 // pred_check
    _
  $region11: #{_lambda_.15} parent=0 // pred_check_branch
    %14 = sbr.rel (0) target = $region13
  $region12: #{_lambda_.15} parent=0 // pred_region
    _
  $region13: #{_lambda_.15} parent=0 // pred_fallthru
    _
  // Predicated region
  $region14: #{_lambda_.15} parent=0 // pred_check
    _
  $region15: #{_lambda_.15} parent=0 // pred_check_branch
    %16 = sbr.rel (0) target = $region17
  $region16: #{_lambda_.15} parent=0 // pred_region
    _
  $region17: #{_lambda_.15} parent=0 // pred_fallthru
    _
  %p18 = scmp.eq.s32.totalorder 0, 0
  // Predicated region
  $region18: #{_lambda_.15} parent=0 // pred_check
    %p19 = pneg %p18
  $region19: #{_lambda_.15} parent=0 // pred_check_branch
    %21 = sbr.rel (%p19) target = $region21
  $region20: #{_lambda_.15} parent=0 // pred_region
    %22 = vst [vmem:[#allocation2] sm:$0xff] 0.0
    %23 = vst [vmem:[#allocation2 + $0x8] sm:$0xff] 0.0
    %24 = vst [vmem:[#allocation2 + $0x10] sm:$0xff] 0.0
    %25 = vst [vmem:[#allocation2 + $0x18] sm:$0xff] 0.0
    %26 = vst [vmem:[#allocation2 + $0x20] sm:$0xff] 0.0
    %27 = vst [vmem:[#allocation2 + $0x28] sm:$0xff] 0.0
    %28 = vst [vmem:[#allocation2 + $0x30] sm:$0xff] 0.0
    %29 = vst [vmem:[#allocation2 + $0x38] sm:$0xff] 0.0
    %30 = vst [vmem:[#allocation2 + $0x40] sm:$0xff] 0.0
    %31 = vst [vmem:[#allocation2 + $0x48] sm:$0xff] 0.0
    %32 = vst [vmem:[#allocation2 + $0x50] sm:$0xff] 0.0
    %33 = vst [vmem:[#allocation2 + $0x58] sm:$0xff] 0.0
    %34 = vst [vmem:[#allocation2 + $0x60] sm:$0xff] 0.0
    %35 = vst [vmem:[#allocation2 + $0x68] sm:$0xff] 0.0
    %36 = vst [vmem:[#allocation2 + $0x70] sm:$0xff] 0.0
    %37 = vst [vmem:[#allocation2 + $0x78] sm:$0xff] 0.0
  $region21: #{_lambda_.15} parent=0 // pred_fallthru
    _
  %v38 = vld [vmem:[#allocation2] sm:$0xff]
  %v39 = vld [vmem:[#allocation2 + $0x8] sm:$0xff]
  %v40 = vld [vmem:[#allocation2 + $0x10] sm:$0xff]
  %v41 = vld [vmem:[#allocation2 + $0x18] sm:$0xff]
  %v42 = vld [vmem:[#allocation2 + $0x20] sm:$0xff]
  %v43 = vld [vmem:[#allocation2 + $0x28] sm:$0xff]
  %v44 = vld [vmem:[#allocation2 + $0x30] sm:$0xff]
  %v45 = vld [vmem:[#allocation2 + $0x38] sm:$0xff]
  %v46 = vld [vmem:[#allocation2 + $0x40] sm:$0xff]
  %v47 = vld [vmem:[#allocation2 + $0x48] sm:$0xff]
  %v48 = vld [vmem:[#allocation2 + $0x50] sm:$0xff]
  %v49 = vld [vmem:[#allocation2 + $0x58] sm:$0xff]
  %v50 = vld [vmem:[#allocation2 + $0x60] sm:$0xff]
  %v51 = vld [vmem:[#allocation2 + $0x68] sm:$0xff]
  %v52 = vld [vmem:[#allocation2 + $0x70] sm:$0xff]
  %v53 = vld [vmem:[#allocation2 + $0x78] sm:$0xff]
  %v54 = vld [vmem:[%s0] sm:$0xf]
  %v55 = vld [vmem:[%s0 + $0x4] sm:$0xf]
  %v56 = vld [vmem:[%s0 + $0x8] sm:$0xf]
  %v57 = vld [vmem:[%s0 + $0xc] sm:$0xf]
  %v58 = vld [vmem:[%s0 + $0x10] sm:$0xf]
  %v59 = vld [vmem:[%s0 + $0x14] sm:$0xf]
  %v60 = vld [vmem:[%s0 + $0x18] sm:$0xf]
  %v61 = vld [vmem:[%s0 + $0x1c] sm:$0xf]
  %v62 = vld [vmem:[%s0 + $0x20] sm:$0xf]
  %v63 = vld [vmem:[%s0 + $0x24] sm:$0xf]
  %v64 = vld [vmem:[%s0 + $0x28] sm:$0xf]
  %v65 = vld [vmem:[%s0 + $0x2c] sm:$0xf]
  %v66 = vld [vmem:[%s0 + $0x30] sm:$0xf]
  %v67 = vld [vmem:[%s0 + $0x34] sm:$0xf]
  %v68 = vld [vmem:[%s0 + $0x38] sm:$0xf]
  %v69 = vld [vmem:[%s0 + $0x3c] sm:$0xf]
  %v70 = vld [vmem:[%s1] sm:$0xf]
  %v71 = vld [vmem:[%s1 + $0x4] sm:$0xf]
  %v72 = vld [vmem:[%s1 + $0x8] sm:$0xf]
  %v73 = vld [vmem:[%s1 + $0xc] sm:$0xf]
  %v74 = vld [vmem:[%s1 + $0x10] sm:$0xf]
  %v75 = vld [vmem:[%s1 + $0x14] sm:$0xf]
  %v76 = vld [vmem:[%s1 + $0x18] sm:$0xf]
  %v77 = vld [vmem:[%s1 + $0x1c] sm:$0xf]
  %v78 = vld [vmem:[%s1 + $0x20] sm:$0xf]
  %v79 = vld [vmem:[%s1 + $0x24] sm:$0xf]
  %v80 = vld [vmem:[%s1 + $0x28] sm:$0xf]
  %v81 = vld [vmem:[%s1 + $0x2c] sm:$0xf]
  %v82 = vld [vmem:[%s1 + $0x30] sm:$0xf]
  %v83 = vld [vmem:[%s1 + $0x34] sm:$0xf]
  %v84 = vld [vmem:[%s1 + $0x38] sm:$0xf]
  %v85 = vld [vmem:[%s1 + $0x3c] sm:$0xf]
  %v102 = vunpack.c.l.b16 %v54
  %v103 = vunpack.c.l.b16 %v55
  %v104 = vunpack.c.l.b16 %v56
  %v105 = vunpack.c.l.b16 %v57
  %v106 = vunpack.c.l.b16 %v58
  %v107 = vunpack.c.l.b16 %v59
  %v108 = vunpack.c.l.b16 %v60
  %v109 = vunpack.c.l.b16 %v61
  %v110 = vunpack.c.l.b16 %v62
  %v111 = vunpack.c.l.b16 %v63
  %v112 = vunpack.c.l.b16 %v64
  %v113 = vunpack.c.l.b16 %v65
  %v114 = vunpack.c.l.b16 %v66
  %v115 = vunpack.c.l.b16 %v67
  %v116 = vunpack.c.l.b16 %v68
  %v117 = vunpack.c.l.b16 %v69
  %v118 = vpack.c.b16 %v103, %v102
  %v119 = vpack.c.b16 %v105, %v104
  %v120 = vpack.c.b16 %v107, %v106
  %v121 = vpack.c.b16 %v109, %v108
  %v122 = vpack.c.b16 %v111, %v110
  %v123 = vpack.c.b16 %v113, %v112
  %v124 = vpack.c.b16 %v115, %v114
  %v125 = vpack.c.b16 %v117, %v116
  %v150 = vunpack.c.l.b16 %v70
  %v151 = vunpack.c.l.b16 %v71
  %v152 = vunpack.c.l.b16 %v72
  %v153 = vunpack.c.l.b16 %v73
  %v154 = vunpack.c.l.b16 %v74
  %v155 = vunpack.c.l.b16 %v75
  %v156 = vunpack.c.l.b16 %v76
  %v157 = vunpack.c.l.b16 %v77
  %v158 = vunpack.c.l.b16 %v78
  %v159 = vunpack.c.l.b16 %v79
  %v160 = vunpack.c.l.b16 %v80
  %v161 = vunpack.c.l.b16 %v81
  %v162 = vunpack.c.l.b16 %v82
  %v163 = vunpack.c.l.b16 %v83
  %v164 = vunpack.c.l.b16 %v84
  %v165 = vunpack.c.l.b16 %v85
  %v166 = vpack.c.b16 %v151, %v150
  %v167 = vpack.c.b16 %v153, %v152
  %v168 = vpack.c.b16 %v155, %v154
  %v169 = vpack.c.b16 %v157, %v156
  %v170 = vpack.c.b16 %v159, %v158
  %v171 = vpack.c.b16 %v161, %v160
  %v172 = vpack.c.b16 %v163, %v162
  %v173 = vpack.c.b16 %v165, %v164
  %182 = vmatprep.subr.bf16.mxu0 0
  %183 = vmatpush1.bf16.msra.mxu0 %v173
  %184 = vmatprep.subr.bf16.mxu0 0
  %185 = vmatpush1.bf16.msra.mxu0 %v172
  %186 = vmatprep.subr.bf16.mxu0 0
  %187 = vmatpush1.bf16.msra.mxu0 %v171
  %188 = vmatprep.subr.bf16.mxu0 0
  %189 = vmatpush1.bf16.msra.mxu0 %v170
  %190 = vmatprep.subr.bf16.mxu0 0
  %191 = vmatpush1.bf16.msra.mxu0 %v169
  %192 = vmatprep.subr.bf16.mxu0 0
  %193 = vmatpush1.bf16.msra.mxu0 %v168
  %194 = vmatprep.subr.bf16.mxu0 0
  %195 = vmatpush1.bf16.msra.mxu0 %v167
  %196 = vmatprep.subr.bf16.mxu0 0
  %197 = vmatpush1.bf16.msra.mxu0 %v166
  %198 = vmatprep.subr.bf16.mxu0 0
  %199 = vmatpush2.bf16.msra.mxu0 0
  %200 = vmatprep.subr.bf16.mxu0 0
  %201 = vmatpush2.bf16.msra.mxu0 0
  %202 = vmatprep.subr.bf16.mxu0 0
  %203 = vmatpush2.bf16.msra.mxu0 0
  %204 = vmatprep.subr.bf16.mxu0 0
  %205 = vmatpush2.bf16.msra.mxu0 0
  %206 = vmatprep.subr.bf16.mxu0 0
  %207 = vmatpush2.bf16.msra.mxu0 0
  %208 = vmatprep.subr.bf16.mxu0 0
  %209 = vmatpush2.bf16.msra.mxu0 0
  %210 = vmatprep.subr.bf16.mxu0 0
  %211 = vmatpush2.bf16.msra.mxu0 0
  %212 = vmatprep.subr.bf16.mxu0 0
  %213 = vmatpush2.bf16.msra.mxu0 0
  %214 = vmatprep.mubr.bf16.mxu0 0
  %215 = vmatmul.mubr.bf16.gmra.mxu0 %v118
  %v216 = vpop.f32.mrf.mxu0
  %v217 = vadd.f32 0.0, %v216
  %v218 = vpop.f32.mrf.mxu0
  %v219 = vpop.f32.mrf.mxu0
  %v220 = vadd.f32 0.0, %v219
  %v221 = vpop.f32.mrf.mxu0
  %222 = vmatprep.mubr.bf16.mxu0 0
  %223 = vmatmul.mubr.bf16.gmra.mxu0 %v119
  %v224 = vpop.f32.mrf.mxu0
  %v225 = vadd.f32 0.0, %v224
  %v226 = vpop.f32.mrf.mxu0
  %v227 = vpop.f32.mrf.mxu0
  %v228 = vadd.f32 0.0, %v227
  %v229 = vpop.f32.mrf.mxu0
  %230 = vmatprep.mubr.bf16.mxu0 0
  %231 = vmatmul.mubr.bf16.gmra.mxu0 %v120
  %v232 = vpop.f32.mrf.mxu0
  %v233 = vadd.f32 0.0, %v232
  %v234 = vpop.f32.mrf.mxu0
  %v235 = vpop.f32.mrf.mxu0
  %v236 = vadd.f32 0.0, %v235
  %v237 = vpop.f32.mrf.mxu0
  %238 = vmatprep.mubr.bf16.mxu0 0
  %239 = vmatmul.mubr.bf16.gmra.mxu0 %v121
  %v240 = vpop.f32.mrf.mxu0
  %v241 = vadd.f32 0.0, %v240
  %v242 = vpop.f32.mrf.mxu0
  %v243 = vpop.f32.mrf.mxu0
  %v244 = vadd.f32 0.0, %v243
  %v245 = vpop.f32.mrf.mxu0
  %246 = vmatprep.mubr.bf16.mxu0 0
  %247 = vmatmul.mubr.bf16.gmra.mxu0 %v122
  %v248 = vpop.f32.mrf.mxu0
  %v249 = vadd.f32 0.0, %v248
  %v250 = vpop.f32.mrf.mxu0
  %v251 = vpop.f32.mrf.mxu0
  %v252 = vadd.f32 0.0, %v251
  %v253 = vpop.f32.mrf.mxu0
  %254 = vmatprep.mubr.bf16.mxu0 0
  %255 = vmatmul.mubr.bf16.gmra.mxu0 %v123
  %v256 = vpop.f32.mrf.mxu0
  %v257 = vadd.f32 0.0, %v256
  %v258 = vpop.f32.mrf.mxu0
  %v259 = vpop.f32.mrf.mxu0
  %v260 = vadd.f32 0.0, %v259
  %v261 = vpop.f32.mrf.mxu0
  %262 = vmatprep.mubr.bf16.mxu0 0
  %263 = vmatmul.mubr.bf16.gmra.mxu0 %v124
  %v264 = vpop.f32.mrf.mxu0
  %v265 = vadd.f32 0.0, %v264
  %v266 = vpop.f32.mrf.mxu0
  %v267 = vpop.f32.mrf.mxu0
  %v268 = vadd.f32 0.0, %v267
  %v269 = vpop.f32.mrf.mxu0
  %270 = vmatprep.mubr.bf16.mxu0 0
  %271 = vmatmul.mubr.bf16.gmra.mxu0 %v125
  %v272 = vpop.f32.mrf.mxu0
  %v273 = vadd.f32 0.0, %v272
  %v274 = vpop.f32.mrf.mxu0
  %v275 = vpop.f32.mrf.mxu0
  %v276 = vadd.f32 0.0, %v275
  %v277 = vpop.f32.mrf.mxu0
  %278 = vdwg.mxu0
  %v279 = vadd.f32 %v38, %v217
  %v280 = vadd.f32 %v39, %v220
  %v281 = vadd.f32 %v40, %v225
  %v282 = vadd.f32 %v41, %v228
  %v283 = vadd.f32 %v42, %v233
  %v284 = vadd.f32 %v43, %v236
  %v285 = vadd.f32 %v44, %v241
  %v286 = vadd.f32 %v45, %v244
  %v287 = vadd.f32 %v46, %v249
  %v288 = vadd.f32 %v47, %v252
  %v289 = vadd.f32 %v48, %v257
  %v290 = vadd.f32 %v49, %v260
  %v291 = vadd.f32 %v50, %v265
  %v292 = vadd.f32 %v51, %v268
  %v293 = vadd.f32 %v52, %v273
  %v294 = vadd.f32 %v53, %v276
  %295 = vst [vmem:[#allocation2] sm:$0xff] %v279
  %296 = vst [vmem:[#allocation2 + $0x8] sm:$0xff] %v280
  %297 = vst [vmem:[#allocation2 + $0x10] sm:$0xff] %v281
  %298 = vst [vmem:[#allocation2 + $0x18] sm:$0xff] %v282
  %299 = vst [vmem:[#allocation2 + $0x20] sm:$0xff] %v283
  %300 = vst [vmem:[#allocation2 + $0x28] sm:$0xff] %v284
  %301 = vst [vmem:[#allocation2 + $0x30] sm:$0xff] %v285
  %302 = vst [vmem:[#allocation2 + $0x38] sm:$0xff] %v286
  %303 = vst [vmem:[#allocation2 + $0x40] sm:$0xff] %v287
  %304 = vst [vmem:[#allocation2 + $0x48] sm:$0xff] %v288
  %305 = vst [vmem:[#allocation2 + $0x50] sm:$0xff] %v289
  %306 = vst [vmem:[#allocation2 + $0x58] sm:$0xff] %v290
  %307 = vst [vmem:[#allocation2 + $0x60] sm:$0xff] %v291
  %308 = vst [vmem:[#allocation2 + $0x68] sm:$0xff] %v292
  %309 = vst [vmem:[#allocation2 + $0x70] sm:$0xff] %v293
  %310 = vst [vmem:[#allocation2 + $0x78] sm:$0xff] %v294
  // Predicated region
  $region22: #{_lambda_.15} parent=0 // pred_check
    %p311 = pneg %p18
  $region23: #{_lambda_.15} parent=0 // pred_check_branch
    %313 = sbr.rel (%p311) target = $region25
  $region24: #{_lambda_.15} parent=0 // pred_region
    %v314 = vld [vmem:[#allocation2] sm:$0xff]
    %v315 = vld [vmem:[#allocation2 + $0x8] sm:$0xff]
    %v316 = vld [vmem:[#allocation2 + $0x10] sm:$0xff]
    %v317 = vld [vmem:[#allocation2 + $0x18] sm:$0xff]
    %v318 = vld [vmem:[#allocation2 + $0x20] sm:$0xff]
    %v319 = vld [vmem:[#allocation2 + $0x28] sm:$0xff]
    %v320 = vld [vmem:[#allocation2 + $0x30] sm:$0xff]
    %v321 = vld [vmem:[#allocation2 + $0x38] sm:$0xff]
    %v322 = vld [vmem:[#allocation2 + $0x40] sm:$0xff]
    %v323 = vld [vmem:[#allocation2 + $0x48] sm:$0xff]
    %v324 = vld [vmem:[#allocation2 + $0x50] sm:$0xff]
    %v325 = vld [vmem:[#allocation2 + $0x58] sm:$0xff]
    %v326 = vld [vmem:[#allocation2 + $0x60] sm:$0xff]
    %v327 = vld [vmem:[#allocation2 + $0x68] sm:$0xff]
    %v328 = vld [vmem:[#allocation2 + $0x70] sm:$0xff]
    %v329 = vld [vmem:[#allocation2 + $0x78] sm:$0xff]
    %v330 = vld [vmem:[%s2] sm:$0x1]
    %v332 = vlaneseq
    %v333 = vshrl.u32 %v332, 7
    %v334 = vsub.s32 0, %v333
    %v335 = vrot.slane %v330, %v334
    %v337 = vmul.f32 %v314, %v335
    %v338 = vmul.f32 %v315, %v335
    %v339 = vmul.f32 %v316, %v335
    %v340 = vmul.f32 %v317, %v335
    %v341 = vmul.f32 %v318, %v335
    %v342 = vmul.f32 %v319, %v335
    %v343 = vmul.f32 %v320, %v335
    %v344 = vmul.f32 %v321, %v335
    %v345 = vmul.f32 %v322, %v335
    %v346 = vmul.f32 %v323, %v335
    %v347 = vmul.f32 %v324, %v335
    %v348 = vmul.f32 %v325, %v335
    %v349 = vmul.f32 %v326, %v335
    %v350 = vmul.f32 %v327, %v335
    %v351 = vmul.f32 %v328, %v335
    %v352 = vmul.f32 %v329, %v335
    %v353 = vld [vmem:[%s3] sm:$0x1]
    %v355 = vlaneseq
    %v356 = vshrl.u32 %v355, 7
    %v357 = vsub.s32 0, %v356
    %v358 = vrot.slane %v353, %v357
    %v360 = vadd.f32 %v337, %v358
    %v361 = vadd.f32 %v338, %v358
    %v362 = vadd.f32 %v339, %v358
    %v363 = vadd.f32 %v340, %v358
    %v364 = vadd.f32 %v341, %v358
    %v365 = vadd.f32 %v342, %v358
    %v366 = vadd.f32 %v343, %v358
    %v367 = vadd.f32 %v344, %v358
    %v368 = vadd.f32 %v345, %v358
    %v369 = vadd.f32 %v346, %v358
    %v370 = vadd.f32 %v347, %v358
    %v371 = vadd.f32 %v348, %v358
    %v372 = vadd.f32 %v349, %v358
    %v373 = vadd.f32 %v350, %v358
    %v374 = vadd.f32 %v351, %v358
    %v375 = vadd.f32 %v352, %v358
    %vm376 = vcmp.gt.f32.partialorder %v360, 0.0
    %vm377 = vcmp.gt.f32.partialorder %v361, 0.0
    %vm378 = vcmp.gt.f32.partialorder %v362, 0.0
    %vm379 = vcmp.gt.f32.partialorder %v363, 0.0
    %vm380 = vcmp.gt.f32.partialorder %v364, 0.0
    %vm381 = vcmp.gt.f32.partialorder %v365, 0.0
    %vm382 = vcmp.gt.f32.partialorder %v366, 0.0
    %vm383 = vcmp.gt.f32.partialorder %v367, 0.0
    %vm384 = vcmp.gt.f32.partialorder %v368, 0.0
    %vm385 = vcmp.gt.f32.partialorder %v369, 0.0
    %vm386 = vcmp.gt.f32.partialorder %v370, 0.0
    %vm387 = vcmp.gt.f32.partialorder %v371, 0.0
    %vm388 = vcmp.gt.f32.partialorder %v372, 0.0
    %vm389 = vcmp.gt.f32.partialorder %v373, 0.0
    %vm390 = vcmp.gt.f32.partialorder %v374, 0.0
    %vm391 = vcmp.gt.f32.partialorder %v375, 0.0
    %v392 = vmul.f32 %v360, 0.1
    %v393 = vmul.f32 %v361, 0.1
    %v394 = vmul.f32 %v362, 0.1
    %v395 = vmul.f32 %v363, 0.1
    %v396 = vmul.f32 %v364, 0.1
    %v397 = vmul.f32 %v365, 0.1
    %v398 = vmul.f32 %v366, 0.1
    %v399 = vmul.f32 %v367, 0.1
    %v400 = vmul.f32 %v368, 0.1
    %v401 = vmul.f32 %v369, 0.1
    %v402 = vmul.f32 %v370, 0.1
    %v403 = vmul.f32 %v371, 0.1
    %v404 = vmul.f32 %v372, 0.1
    %v405 = vmul.f32 %v373, 0.1
    %v406 = vmul.f32 %v374, 0.1
    %v407 = vmul.f32 %v375, 0.1
    %v408 = vsel %vm376, %v360, %v392
    %v409 = vsel %vm377, %v361, %v393
    %v410 = vsel %vm378, %v362, %v394
    %v411 = vsel %vm379, %v363, %v395
    %v412 = vsel %vm380, %v364, %v396
    %v413 = vsel %vm381, %v365, %v397
    %v414 = vsel %vm382, %v366, %v398
    %v415 = vsel %vm383, %v367, %v399
    %v416 = vsel %vm384, %v368, %v400
    %v417 = vsel %vm385, %v369, %v401
    %v418 = vsel %vm386, %v370, %v402
    %v419 = vsel %vm387, %v371, %v403
    %v420 = vsel %vm388, %v372, %v404
    %v421 = vsel %vm389, %v373, %v405
    %v422 = vsel %vm390, %v374, %v406
    %v423 = vsel %vm391, %v375, %v407
    %424 = vst [vmem:[%s4] sm:$0xff] %v408
    %425 = vst [vmem:[%s4 + $0x8] sm:$0xff] %v409
    %426 = vst [vmem:[%s4 + $0x10] sm:$0xff] %v410
    %427 = vst [vmem:[%s4 + $0x18] sm:$0xff] %v411
    %428 = vst [vmem:[%s4 + $0x20] sm:$0xff] %v412
    %429 = vst [vmem:[%s4 + $0x28] sm:$0xff] %v413
    %430 = vst [vmem:[%s4 + $0x30] sm:$0xff] %v414
    %431 = vst [vmem:[%s4 + $0x38] sm:$0xff] %v415
    %432 = vst [vmem:[%s4 + $0x40] sm:$0xff] %v416
    %433 = vst [vmem:[%s4 + $0x48] sm:$0xff] %v417
    %434 = vst [vmem:[%s4 + $0x50] sm:$0xff] %v418
    %435 = vst [vmem:[%s4 + $0x58] sm:$0xff] %v419
    %436 = vst [vmem:[%s4 + $0x60] sm:$0xff] %v420
    %437 = vst [vmem:[%s4 + $0x68] sm:$0xff] %v421
    %438 = vst [vmem:[%s4 + $0x70] sm:$0xff] %v422
    %439 = vst [vmem:[%s4 + $0x78] sm:$0xff] %v423
  $region25: #{_lambda_.15} parent=0 // pred_fallthru
    _
  // Predicated region
  $region26: #{_lambda_.15} parent=0 // pred_check
    _
  $region27: #{_lambda_.15} parent=0 // pred_check_branch
    %441 = sbr.rel (0) target = $region29
  $region28: #{_lambda_.15} parent=0 // pred_region
    _
  $region29: #{_lambda_.15} parent=0 // pred_fallthru
    _
  // Predicated region
  $region30: #{_lambda_.15} parent=0 // pred_check
    _
  $region31: #{_lambda_.15} parent=0 // pred_check_branch
    %443 = sbr.rel (0) target = $region33
  $region32: #{_lambda_.15} parent=0 // pred_region
    _
  $region33: #{_lambda_.15} parent=0 // pred_fallthru
    _

// kernel: _lambda_.16
$region0: #{_lambda_.16}
  #allocation0 [shape = 'u32[]', space=smem, size = 0x4, offset = 0x4, fixed_abs, tag = 'smem constant byte address 0x4 - core index']
  #allocation1 [shape = 'u32[144,128]{1,0:T(1,128)}', space=vmem, size = 0x12000, scoped, tag = 'internal scratch']
  #allocation2 [shape = 'f32[128,128]{1,0:T(8,128)}', space=vmem, size = 0x10000, scoped, tag = 'scratch operand']
  %s0 = inlined_call_operand.vmem [shape: bf16[128,256], index: 0, kind: input, shape index: {}]
  %s1 = inlined_call_operand.vmem [shape: bf16[256,128], index: 1, kind: input, shape index: {}]
  %s2 = inlined_call_operand.vmem [shape: f32[1,128], index: 2, kind: input, shape index: {}]
  %s3 = inlined_call_operand.vmem [shape: f32[1,128], index: 3, kind: input, shape index: {}]
  %s4 = inlined_call_operand.vmem [shape: f32[128,128], index: 4, kind: output, shape index: {}]
  %s5 = sld [smem:[#allocation0]]
  $region34: #{_lambda_.16} parent=0
    _
  %s7 = ssub.s32 1, %s5
  %s8 = scalar_select 0, %s7, %s5
  // Predicated region
  $region2: #{_lambda_.16} parent=0 // pred_check
    _
  $region3: #{_lambda_.16} parent=0 // pred_check_branch
    %10 = sbr.rel (0) target = $region5
  $region4: #{_lambda_.16} parent=0 // pred_region
    _
  $region5: #{_lambda_.16} parent=0 // pred_fallthru
    _
  // Predicated region
  $region6: #{_lambda_.16} parent=0 // pred_check
    _
  $region7: #{_lambda_.16} parent=0 // pred_check_branch
    %12 = sbr.rel (0) target = $region9
  $region8: #{_lambda_.16} parent=0 // pred_region
    _
  $region9: #{_lambda_.16} parent=0 // pred_fallthru
    _
  // Predicated region
  $region10: #{_lambda_.16} parent=0 // pred_check
    _
  $region11: #{_lambda_.16} parent=0 // pred_check_branch
    %14 = sbr.rel (0) target = $region13
  $region12: #{_lambda_.16} parent=0 // pred_region
    _
  $region13: #{_lambda_.16} parent=0 // pred_fallthru
    _
  // Predicated region
  $region14: #{_lambda_.16} parent=0 // pred_check
    _
  $region15: #{_lambda_.16} parent=0 // pred_check_branch
    %16 = sbr.rel (0) target = $region17
  $region16: #{_lambda_.16} parent=0 // pred_region
    _
  $region17: #{_lambda_.16} parent=0 // pred_fallthru
    _
  %p18 = scmp.eq.s32.totalorder 0, 0
  // Predicated region
  $region18: #{_lambda_.16} parent=0 // pred_check
    %p19 = pneg %p18
  $region19: #{_lambda_.16} parent=0 // pred_check_branch
    %21 = sbr.rel (%p19) target = $region21
  $region20: #{_lambda_.16} parent=0 // pred_region
    %22 = vst [vmem:[#allocation2] sm:$0xff] 0.0
    %23 = vst [vmem:[#allocation2 + $0x8] sm:$0xff] 0.0
    %24 = vst [vmem:[#allocation2 + $0x10] sm:$0xff] 0.0
    %25 = vst [vmem:[#allocation2 + $0x18] sm:$0xff] 0.0
    %26 = vst [vmem:[#allocation2 + $0x20] sm:$0xff] 0.0
    %27 = vst [vmem:[#allocation2 + $0x28] sm:$0xff] 0.0
    %28 = vst [vmem:[#allocation2 + $0x30] sm:$0xff] 0.0
    %29 = vst [vmem:[#allocation2 + $0x38] sm:$0xff] 0.0
    %30 = vst [vmem:[#allocation2 + $0x40] sm:$0xff] 0.0
    %31 = vst [vmem:[#allocation2 + $0x48] sm:$0xff] 0.0
    %32 = vst [vmem:[#allocation2 + $0x50] sm:$0xff] 0.0
    %33 = vst [vmem:[#allocation2 + $0x58] sm:$0xff] 0.0
    %34 = vst [vmem:[#allocation2 + $0x60] sm:$0xff] 0.0
    %35 = vst [vmem:[#allocation2 + $0x68] sm:$0xff] 0.0
    %36 = vst [vmem:[#allocation2 + $0x70] sm:$0xff] 0.0
    %37 = vst [vmem:[#allocation2 + $0x78] sm:$0xff] 0.0
  $region21: #{_lambda_.16} parent=0 // pred_fallthru
    _
  %v38 = vld [vmem:[#allocation2] sm:$0xff]
  %v39 = vld [vmem:[#allocation2 + $0x8] sm:$0xff]
  %v40 = vld [vmem:[#allocation2 + $0x10] sm:$0xff]
  %v41 = vld [vmem:[#allocation2 + $0x18] sm:$0xff]
  %v42 = vld [vmem:[#allocation2 + $0x20] sm:$0xff]
  %v43 = vld [vmem:[#allocation2 + $0x28] sm:$0xff]
  %v44 = vld [vmem:[#allocation2 + $0x30] sm:$0xff]
  %v45 = vld [vmem:[#allocation2 + $0x38] sm:$0xff]
  %v46 = vld [vmem:[#allocation2 + $0x40] sm:$0xff]
  %v47 = vld [vmem:[#allocation2 + $0x48] sm:$0xff]
  %v48 = vld [vmem:[#allocation2 + $0x50] sm:$0xff]
  %v49 = vld [vmem:[#allocation2 + $0x58] sm:$0xff]
  %v50 = vld [vmem:[#allocation2 + $0x60] sm:$0xff]
  %v51 = vld [vmem:[#allocation2 + $0x68] sm:$0xff]
  %v52 = vld [vmem:[#allocation2 + $0x70] sm:$0xff]
  %v53 = vld [vmem:[#allocation2 + $0x78] sm:$0xff]
  %v54 = vld [vmem:[%s0] sm:$0xff]
  %v55 = vld [vmem:[%s0 + $0x8] sm:$0xff]
  %v56 = vld [vmem:[%s0 + $0x10] sm:$0xff]
  %v57 = vld [vmem:[%s0 + $0x18] sm:$0xff]
  %v58 = vld [vmem:[%s0 + $0x20] sm:$0xff]
  %v59 = vld [vmem:[%s0 + $0x28] sm:$0xff]
  %v60 = vld [vmem:[%s0 + $0x30] sm:$0xff]
  %v61 = vld [vmem:[%s0 + $0x38] sm:$0xff]
  %v62 = vld [vmem:[%s0 + $0x40] sm:$0xff]
  %v63 = vld [vmem:[%s0 + $0x48] sm:$0xff]
  %v64 = vld [vmem:[%s0 + $0x50] sm:$0xff]
  %v65 = vld [vmem:[%s0 + $0x58] sm:$0xff]
  %v66 = vld [vmem:[%s0 + $0x60] sm:$0xff]
  %v67 = vld [vmem:[%s0 + $0x68] sm:$0xff]
  %v68 = vld [vmem:[%s0 + $0x70] sm:$0xff]
  %v69 = vld [vmem:[%s0 + $0x78] sm:$0xff]
  %v70 = vld [vmem:[%s1] sm:$0xf]
  %v71 = vld [vmem:[%s1 + $0x4] sm:$0xf]
  %v72 = vld [vmem:[%s1 + $0x8] sm:$0xf]
  %v73 = vld [vmem:[%s1 + $0xc] sm:$0xf]
  %v74 = vld [vmem:[%s1 + $0x10] sm:$0xf]
  %v75 = vld [vmem:[%s1 + $0x14] sm:$0xf]
  %v76 = vld [vmem:[%s1 + $0x18] sm:$0xf]
  %v77 = vld [vmem:[%s1 + $0x1c] sm:$0xf]
  %v78 = vld [vmem:[%s1 + $0x20] sm:$0xf]
  %v79 = vld [vmem:[%s1 + $0x24] sm:$0xf]
  %v80 = vld [vmem:[%s1 + $0x28] sm:$0xf]
  %v81 = vld [vmem:[%s1 + $0x2c] sm:$0xf]
  %v82 = vld [vmem:[%s1 + $0x30] sm:$0xf]
  %v83 = vld [vmem:[%s1 + $0x34] sm:$0xf]
  %v84 = vld [vmem:[%s1 + $0x38] sm:$0xf]
  %v85 = vld [vmem:[%s1 + $0x3c] sm:$0xf]
  %v86 = vld [vmem:[%s1 + $0x40] sm:$0xf]
  %v87 = vld [vmem:[%s1 + $0x44] sm:$0xf]
  %v88 = vld [vmem:[%s1 + $0x48] sm:$0xf]
  %v89 = vld [vmem:[%s1 + $0x4c] sm:$0xf]
  %v90 = vld [vmem:[%s1 + $0x50] sm:$0xf]
  %v91 = vld [vmem:[%s1 + $0x54] sm:$0xf]
  %v92 = vld [vmem:[%s1 + $0x58] sm:$0xf]
  %v93 = vld [vmem:[%s1 + $0x5c] sm:$0xf]
  %v94 = vld [vmem:[%s1 + $0x60] sm:$0xf]
  %v95 = vld [vmem:[%s1 + $0x64] sm:$0xf]
  %v96 = vld [vmem:[%s1 + $0x68] sm:$0xf]
  %v97 = vld [vmem:[%s1 + $0x6c] sm:$0xf]
  %v98 = vld [vmem:[%s1 + $0x70] sm:$0xf]
  %v99 = vld [vmem:[%s1 + $0x74] sm:$0xf]
  %v100 = vld [vmem:[%s1 + $0x78] sm:$0xf]
  %v101 = vld [vmem:[%s1 + $0x7c] sm:$0xf]
  %v118 = vunpack.c.l.b16 %v54
  %v119 = vunpack.c.h.b16 %v54
  %v120 = vunpack.c.l.b16 %v55
  %v121 = vunpack.c.h.b16 %v55
  %v122 = vunpack.c.l.b16 %v56
  %v123 = vunpack.c.h.b16 %v56
  %v124 = vunpack.c.l.b16 %v57
  %v125 = vunpack.c.h.b16 %v57
  %v126 = vunpack.c.l.b16 %v58
  %v127 = vunpack.c.h.b16 %v58
  %v128 = vunpack.c.l.b16 %v59
  %v129 = vunpack.c.h.b16 %v59
  %v130 = vunpack.c.l.b16 %v60
  %v131 = vunpack.c.h.b16 %v60
  %v132 = vunpack.c.l.b16 %v61
  %v133 = vunpack.c.h.b16 %v61
  %v134 = vunpack.c.l.b16 %v62
  %v135 = vunpack.c.h.b16 %v62
  %v136 = vunpack.c.l.b16 %v63
  %v137 = vunpack.c.h.b16 %v63
  %v138 = vunpack.c.l.b16 %v64
  %v139 = vunpack.c.h.b16 %v64
  %v140 = vunpack.c.l.b16 %v65
  %v141 = vunpack.c.h.b16 %v65
  %v142 = vunpack.c.l.b16 %v66
  %v143 = vunpack.c.h.b16 %v66
  %v144 = vunpack.c.l.b16 %v67
  %v145 = vunpack.c.h.b16 %v67
  %v146 = vunpack.c.l.b16 %v68
  %v147 = vunpack.c.h.b16 %v68
  %v148 = vunpack.c.l.b16 %v69
  %v149 = vunpack.c.h.b16 %v69
  %v150 = vpack.c.b16 %v120, %v118
  %v151 = vpack.c.b16 %v121, %v119
  %v152 = vpack.c.b16 %v124, %v122
  %v153 = vpack.c.b16 %v125, %v123
  %v154 = vpack.c.b16 %v128, %v126
  %v155 = vpack.c.b16 %v129, %v127
  %v156 = vpack.c.b16 %v132, %v130
  %v157 = vpack.c.b16 %v133, %v131
  %v158 = vpack.c.b16 %v136, %v134
  %v159 = vpack.c.b16 %v137, %v135
  %v160 = vpack.c.b16 %v140, %v138
  %v161 = vpack.c.b16 %v141, %v139
  %v162 = vpack.c.b16 %v144, %v142
  %v163 = vpack.c.b16 %v145, %v143
  %v164 = vpack.c.b16 %v148, %v146
  %v165 = vpack.c.b16 %v149, %v147
  %v214 = vunpack.c.l.b16 %v70
  %v215 = vunpack.c.l.b16 %v71
  %v216 = vunpack.c.l.b16 %v72
  %v217 = vunpack.c.l.b16 %v73
  %v218 = vunpack.c.l.b16 %v74
  %v219 = vunpack.c.l.b16 %v75
  %v220 = vunpack.c.l.b16 %v76
  %v221 = vunpack.c.l.b16 %v77
  %v222 = vunpack.c.l.b16 %v78
  %v223 = vunpack.c.l.b16 %v79
  %v224 = vunpack.c.l.b16 %v80
  %v225 = vunpack.c.l.b16 %v81
  %v226 = vunpack.c.l.b16 %v82
  %v227 = vunpack.c.l.b16 %v83
  %v228 = vunpack.c.l.b16 %v84
  %v229 = vunpack.c.l.b16 %v85
  %v230 = vunpack.c.l.b16 %v86
  %v231 = vunpack.c.l.b16 %v87
  %v232 = vunpack.c.l.b16 %v88
  %v233 = vunpack.c.l.b16 %v89
  %v234 = vunpack.c.l.b16 %v90
  %v235 = vunpack.c.l.b16 %v91
  %v236 = vunpack.c.l.b16 %v92
  %v237 = vunpack.c.l.b16 %v93
  %v238 = vunpack.c.l.b16 %v94
  %v239 = vunpack.c.l.b16 %v95
  %v240 = vunpack.c.l.b16 %v96
  %v241 = vunpack.c.l.b16 %v97
  %v242 = vunpack.c.l.b16 %v98
  %v243 = vunpack.c.l.b16 %v99
  %v244 = vunpack.c.l.b16 %v100
  %v245 = vunpack.c.l.b16 %v101
  %v246 = vpack.c.b16 %v215, %v214
  %v247 = vpack.c.b16 %v217, %v216
  %v248 = vpack.c.b16 %v219, %v218
  %v249 = vpack.c.b16 %v221, %v220
  %v250 = vpack.c.b16 %v223, %v222
  %v251 = vpack.c.b16 %v225, %v224
  %v252 = vpack.c.b16 %v227, %v226
  %v253 = vpack.c.b16 %v229, %v228
  %v254 = vpack.c.b16 %v231, %v230
  %v255 = vpack.c.b16 %v233, %v232
  %v256 = vpack.c.b16 %v235, %v234
  %v257 = vpack.c.b16 %v237, %v236
  %v258 = vpack.c.b16 %v239, %v238
  %v259 = vpack.c.b16 %v241, %v240
  %v260 = vpack.c.b16 %v243, %v242
  %v261 = vpack.c.b16 %v245, %v244
  %278 = vmatprep.subr.bf16.mxu0 0
  %279 = vmatpush1.bf16.msra.mxu0 %v253
  %280 = vmatprep.subr.bf16.mxu0 0
  %281 = vmatpush1.bf16.msra.mxu0 %v252
  %282 = vmatprep.subr.bf16.mxu0 0
  %283 = vmatpush1.bf16.msra.mxu0 %v251
  %284 = vmatprep.subr.bf16.mxu0 0
  %285 = vmatpush1.bf16.msra.mxu0 %v250
  %286 = vmatprep.subr.bf16.mxu0 0
  %287 = vmatpush1.bf16.msra.mxu0 %v249
  %288 = vmatprep.subr.bf16.mxu0 0
  %289 = vmatpush1.bf16.msra.mxu0 %v248
  %290 = vmatprep.subr.bf16.mxu0 0
  %291 = vmatpush1.bf16.msra.mxu0 %v247
  %292 = vmatprep.subr.bf16.mxu0 0
  %293 = vmatpush1.bf16.msra.mxu0 %v246
  %294 = vmatprep.subr.bf16.mxu0 0
  %295 = vmatpush2.bf16.msra.mxu0 %v261
  %296 = vmatprep.subr.bf16.mxu0 0
  %297 = vmatpush2.bf16.msra.mxu0 %v260
  %298 = vmatprep.subr.bf16.mxu0 0
  %299 = vmatpush2.bf16.msra.mxu0 %v259
  %300 = vmatprep.subr.bf16.mxu0 0
  %301 = vmatpush2.bf16.msra.mxu0 %v258
  %302 = vmatprep.subr.bf16.mxu0 0
  %303 = vmatpush2.bf16.msra.mxu0 %v257
  %304 = vmatprep.subr.bf16.mxu0 0
  %305 = vmatpush2.bf16.msra.mxu0 %v256
  %306 = vmatprep.subr.bf16.mxu0 0
  %307 = vmatpush2.bf16.msra.mxu0 %v255
  %308 = vmatprep.subr.bf16.mxu0 0
  %309 = vmatpush2.bf16.msra.mxu0 %v254
  %310 = vmatprep.mubr.bf16.mxu0 %v151
  %311 = vmatmul.mubr.bf16.gmra.mxu0 %v150
  %v312 = vpop.f32.mrf.mxu0
  %v313 = vadd.f32 0.0, %v312
  %v314 = vpop.f32.mrf.mxu0
  %v315 = vpop.f32.mrf.mxu0
  %v316 = vadd.f32 0.0, %v315
  %v317 = vpop.f32.mrf.mxu0
  %318 = vmatprep.mubr.bf16.mxu0 %v153
  %319 = vmatmul.mubr.bf16.gmra.mxu0 %v152
  %v320 = vpop.f32.mrf.mxu0
  %v321 = vadd.f32 0.0, %v320
  %v322 = vpop.f32.mrf.mxu0
  %v323 = vpop.f32.mrf.mxu0
  %v324 = vadd.f32 0.0, %v323
  %v325 = vpop.f32.mrf.mxu0
  %326 = vmatprep.mubr.bf16.mxu0 %v155
  %327 = vmatmul.mubr.bf16.gmra.mxu0 %v154
  %v328 = vpop.f32.mrf.mxu0
  %v329 = vadd.f32 0.0, %v328
  %v330 = vpop.f32.mrf.mxu0
  %v331 = vpop.f32.mrf.mxu0
  %v332 = vadd.f32 0.0, %v331
  %v333 = vpop.f32.mrf.mxu0
  %334 = vmatprep.mubr.bf16.mxu0 %v157
  %335 = vmatmul.mubr.bf16.gmra.mxu0 %v156
  %v336 = vpop.f32.mrf.mxu0
  %v337 = vadd.f32 0.0, %v336
  %v338 = vpop.f32.mrf.mxu0
  %v339 = vpop.f32.mrf.mxu0
  %v340 = vadd.f32 0.0, %v339
  %v341 = vpop.f32.mrf.mxu0
  %342 = vmatprep.mubr.bf16.mxu0 %v159
  %343 = vmatmul.mubr.bf16.gmra.mxu0 %v158
  %v344 = vpop.f32.mrf.mxu0
  %v345 = vadd.f32 0.0, %v344
  %v346 = vpop.f32.mrf.mxu0
  %v347 = vpop.f32.mrf.mxu0
  %v348 = vadd.f32 0.0, %v347
  %v349 = vpop.f32.mrf.mxu0
  %350 = vmatprep.mubr.bf16.mxu0 %v161
  %351 = vmatmul.mubr.bf16.gmra.mxu0 %v160
  %v352 = vpop.f32.mrf.mxu0
  %v353 = vadd.f32 0.0, %v352
  %v354 = vpop.f32.mrf.mxu0
  %v355 = vpop.f32.mrf.mxu0
  %v356 = vadd.f32 0.0, %v355
  %v357 = vpop.f32.mrf.mxu0
  %358 = vmatprep.mubr.bf16.mxu0 %v163
  %359 = vmatmul.mubr.bf16.gmra.mxu0 %v162
  %v360 = vpop.f32.mrf.mxu0
  %v361 = vadd.f32 0.0, %v360
  %v362 = vpop.f32.mrf.mxu0
  %v363 = vpop.f32.mrf.mxu0
  %v364 = vadd.f32 0.0, %v363
  %v365 = vpop.f32.mrf.mxu0
  %366 = vmatprep.mubr.bf16.mxu0 %v165
  %367 = vmatmul.mubr.bf16.gmra.mxu0 %v164
  %v368 = vpop.f32.mrf.mxu0
  %v369 = vadd.f32 0.0, %v368
  %v370 = vpop.f32.mrf.mxu0
  %v371 = vpop.f32.mrf.mxu0
  %v372 = vadd.f32 0.0, %v371
  %v373 = vpop.f32.mrf.mxu0
  %374 = vdwg.mxu0
  %v375 = vadd.f32 %v38, %v313
  %v376 = vadd.f32 %v39, %v316
  %v377 = vadd.f32 %v40, %v321
  %v378 = vadd.f32 %v41, %v324
  %v379 = vadd.f32 %v42, %v329
  %v380 = vadd.f32 %v43, %v332
  %v381 = vadd.f32 %v44, %v337
  %v382 = vadd.f32 %v45, %v340
  %v383 = vadd.f32 %v46, %v345
  %v384 = vadd.f32 %v47, %v348
  %v385 = vadd.f32 %v48, %v353
  %v386 = vadd.f32 %v49, %v356
  %v387 = vadd.f32 %v50, %v361
  %v388 = vadd.f32 %v51, %v364
  %v389 = vadd.f32 %v52, %v369
  %v390 = vadd.f32 %v53, %v372
  %391 = vst [vmem:[#allocation2] sm:$0xff] %v375
  %392 = vst [vmem:[#allocation2 + $0x8] sm:$0xff] %v376
  %393 = vst [vmem:[#allocation2 + $0x10] sm:$0xff] %v377
  %394 = vst [vmem:[#allocation2 + $0x18] sm:$0xff] %v378
  %395 = vst [vmem:[#allocation2 + $0x20] sm:$0xff] %v379
  %396 = vst [vmem:[#allocation2 + $0x28] sm:$0xff] %v380
  %397 = vst [vmem:[#allocation2 + $0x30] sm:$0xff] %v381
  %398 = vst [vmem:[#allocation2 + $0x38] sm:$0xff] %v382
  %399 = vst [vmem:[#allocation2 + $0x40] sm:$0xff] %v383
  %400 = vst [vmem:[#allocation2 + $0x48] sm:$0xff] %v384
  %401 = vst [vmem:[#allocation2 + $0x50] sm:$0xff] %v385
  %402 = vst [vmem:[#allocation2 + $0x58] sm:$0xff] %v386
  %403 = vst [vmem:[#allocation2 + $0x60] sm:$0xff] %v387
  %404 = vst [vmem:[#allocation2 + $0x68] sm:$0xff] %v388
  %405 = vst [vmem:[#allocation2 + $0x70] sm:$0xff] %v389
  %406 = vst [vmem:[#allocation2 + $0x78] sm:$0xff] %v390
  // Predicated region
  $region22: #{_lambda_.16} parent=0 // pred_check
    %p407 = pneg %p18
  $region23: #{_lambda_.16} parent=0 // pred_check_branch
    %409 = sbr.rel (%p407) target = $region25
  $region24: #{_lambda_.16} parent=0 // pred_region
    %v410 = vld [vmem:[#allocation2] sm:$0xff]
    %v411 = vld [vmem:[#allocation2 + $0x8] sm:$0xff]
    %v412 = vld [vmem:[#allocation2 + $0x10] sm:$0xff]
    %v413 = vld [vmem:[#allocation2 + $0x18] sm:$0xff]
    %v414 = vld [vmem:[#allocation2 + $0x20] sm:$0xff]
    %v415 = vld [vmem:[#allocation2 + $0x28] sm:$0xff]
    %v416 = vld [vmem:[#allocation2 + $0x30] sm:$0xff]
    %v417 = vld [vmem:[#allocation2 + $0x38] sm:$0xff]
    %v418 = vld [vmem:[#allocation2 + $0x40] sm:$0xff]
    %v419 = vld [vmem:[#allocation2 + $0x48] sm:$0xff]
    %v420 = vld [vmem:[#allocation2 + $0x50] sm:$0xff]
    %v421 = vld [vmem:[#allocation2 + $0x58] sm:$0xff]
    %v422 = vld [vmem:[#allocation2 + $0x60] sm:$0xff]
    %v423 = vld [vmem:[#allocation2 + $0x68] sm:$0xff]
    %v424 = vld [vmem:[#allocation2 + $0x70] sm:$0xff]
    %v425 = vld [vmem:[#allocation2 + $0x78] sm:$0xff]
    %v426 = vld [vmem:[%s2] sm:$0x1]
    %v428 = vlaneseq
    %v429 = vshrl.u32 %v428, 7
    %v430 = vsub.s32 0, %v429
    %v431 = vrot.slane %v426, %v430
    %v433 = vmul.f32 %v410, %v431
    %v434 = vmul.f32 %v411, %v431
    %v435 = vmul.f32 %v412, %v431
    %v436 = vmul.f32 %v413, %v431
    %v437 = vmul.f32 %v414, %v431
    %v438 = vmul.f32 %v415, %v431
    %v439 = vmul.f32 %v416, %v431
    %v440 = vmul.f32 %v417, %v431
    %v441 = vmul.f32 %v418, %v431
    %v442 = vmul.f32 %v419, %v431
    %v443 = vmul.f32 %v420, %v431
    %v444 = vmul.f32 %v421, %v431
    %v445 = vmul.f32 %v422, %v431
    %v446 = vmul.f32 %v423, %v431
    %v447 = vmul.f32 %v424, %v431
    %v448 = vmul.f32 %v425, %v431
    %v449 = vld [vmem:[%s3] sm:$0x1]
    %v451 = vlaneseq
    %v452 = vshrl.u32 %v451, 7
    %v453 = vsub.s32 0, %v452
    %v454 = vrot.slane %v449, %v453
    %v456 = vadd.f32 %v433, %v454
    %v457 = vadd.f32 %v434, %v454
    %v458 = vadd.f32 %v435, %v454
    %v459 = vadd.f32 %v436, %v454
    %v460 = vadd.f32 %v437, %v454
    %v461 = vadd.f32 %v438, %v454
    %v462 = vadd.f32 %v439, %v454
    %v463 = vadd.f32 %v440, %v454
    %v464 = vadd.f32 %v441, %v454
    %v465 = vadd.f32 %v442, %v454
    %v466 = vadd.f32 %v443, %v454
    %v467 = vadd.f32 %v444, %v454
    %v468 = vadd.f32 %v445, %v454
    %v469 = vadd.f32 %v446, %v454
    %v470 = vadd.f32 %v447, %v454
    %v471 = vadd.f32 %v448, %v454
    %vm472 = vcmp.gt.f32.partialorder %v456, 0.0
    %vm473 = vcmp.gt.f32.partialorder %v457, 0.0
    %vm474 = vcmp.gt.f32.partialorder %v458, 0.0
    %vm475 = vcmp.gt.f32.partialorder %v459, 0.0
    %vm476 = vcmp.gt.f32.partialorder %v460, 0.0
    %vm477 = vcmp.gt.f32.partialorder %v461, 0.0
    %vm478 = vcmp.gt.f32.partialorder %v462, 0.0
    %vm479 = vcmp.gt.f32.partialorder %v463, 0.0
    %vm480 = vcmp.gt.f32.partialorder %v464, 0.0
    %vm481 = vcmp.gt.f32.partialorder %v465, 0.0
    %vm482 = vcmp.gt.f32.partialorder %v466, 0.0
    %vm483 = vcmp.gt.f32.partialorder %v467, 0.0
    %vm484 = vcmp.gt.f32.partialorder %v468, 0.0
    %vm485 = vcmp.gt.f32.partialorder %v469, 0.0
    %vm486 = vcmp.gt.f32.partialorder %v470, 0.0
    %vm487 = vcmp.gt.f32.partialorder %v471, 0.0
    %v488 = vmul.f32 %v456, 0.1
    %v489 = vmul.f32 %v457, 0.1
    %v490 = vmul.f32 %v458, 0.1
    %v491 = vmul.f32 %v459, 0.1
    %v492 = vmul.f32 %v460, 0.1
    %v493 = vmul.f32 %v461, 0.1
    %v494 = vmul.f32 %v462, 0.1
    %v495 = vmul.f32 %v463, 0.1
    %v496 = vmul.f32 %v464, 0.1
    %v497 = vmul.f32 %v465, 0.1
    %v498 = vmul.f32 %v466, 0.1
    %v499 = vmul.f32 %v467, 0.1
    %v500 = vmul.f32 %v468, 0.1
    %v501 = vmul.f32 %v469, 0.1
    %v502 = vmul.f32 %v470, 0.1
    %v503 = vmul.f32 %v471, 0.1
    %v504 = vsel %vm472, %v456, %v488
    %v505 = vsel %vm473, %v457, %v489
    %v506 = vsel %vm474, %v458, %v490
    %v507 = vsel %vm475, %v459, %v491
    %v508 = vsel %vm476, %v460, %v492
    %v509 = vsel %vm477, %v461, %v493
    %v510 = vsel %vm478, %v462, %v494
    %v511 = vsel %vm479, %v463, %v495
    %v512 = vsel %vm480, %v464, %v496
    %v513 = vsel %vm481, %v465, %v497
    %v514 = vsel %vm482, %v466, %v498
    %v515 = vsel %vm483, %v467, %v499
    %v516 = vsel %vm484, %v468, %v500
    %v517 = vsel %vm485, %v469, %v501
    %v518 = vsel %vm486, %v470, %v502
    %v519 = vsel %vm487, %v471, %v503
    %520 = vst [vmem:[%s4] sm:$0xff] %v504
    %521 = vst [vmem:[%s4 + $0x8] sm:$0xff] %v505
    %522 = vst [vmem:[%s4 + $0x10] sm:$0xff] %v506
    %523 = vst [vmem:[%s4 + $0x18] sm:$0xff] %v507
    %524 = vst [vmem:[%s4 + $0x20] sm:$0xff] %v508
    %525 = vst [vmem:[%s4 + $0x28] sm:$0xff] %v509
    %526 = vst [vmem:[%s4 + $0x30] sm:$0xff] %v510
    %527 = vst [vmem:[%s4 + $0x38] sm:$0xff] %v511
    %528 = vst [vmem:[%s4 + $0x40] sm:$0xff] %v512
    %529 = vst [vmem:[%s4 + $0x48] sm:$0xff] %v513
    %530 = vst [vmem:[%s4 + $0x50] sm:$0xff] %v514
    %531 = vst [vmem:[%s4 + $0x58] sm:$0xff] %v515
    %532 = vst [vmem:[%s4 + $0x60] sm:$0xff] %v516
    %533 = vst [vmem:[%s4 + $0x68] sm:$0xff] %v517
    %534 = vst [vmem:[%s4 + $0x70] sm:$0xff] %v518
    %535 = vst [vmem:[%s4 + $0x78] sm:$0xff] %v519
  $region25: #{_lambda_.16} parent=0 // pred_fallthru
    _
  // Predicated region
  $region26: #{_lambda_.16} parent=0 // pred_check
    _
  $region27: #{_lambda_.16} parent=0 // pred_check_branch
    %537 = sbr.rel (0) target = $region29
  $region28: #{_lambda_.16} parent=0 // pred_region
    _
  $region29: #{_lambda_.16} parent=0 // pred_fallthru
    _
  // Predicated region
  $region30: #{_lambda_.16} parent=0 // pred_check
    _
  $region31: #{_lambda_.16} parent=0 // pred_check_branch
    %539 = sbr.rel (0) target = $region33
  $region32: #{_lambda_.16} parent=0 // pred_region
    _
  $region33: #{_lambda_.16} parent=0 // pred_fallthru
    _

// kernel: _lambda_.17
$region0: #{_lambda_.17}
  #allocation0 [shape = 'u32[]', space=smem, size = 0x4, offset = 0x4, fixed_abs, tag = 'smem constant byte address 0x4 - core index']
  #allocation1 [shape = 'u32[144,128]{1,0:T(1,128)}', space=vmem, size = 0x12000, scoped, tag = 'internal scratch']
  %s0 = inlined_call_operand.vmem [shape: f32[16,128], index: 0, kind: input, shape index: {}]
  %s1 = inlined_call_operand.vmem [shape: f32[16,128], index: 1, kind: input, shape index: {}]
  %s2 = inlined_call_operand.vmem [shape: f32[16,128], index: 2, kind: output, shape index: {}]
  %s3 = sld [smem:[#allocation0]]
  $region18: #{_lambda_.17} parent=0
    _
  %s5 = ssub.s32 1, %s3
  %s6 = scalar_select 0, %s5, %s3
  // Predicated region
  $region2: #{_lambda_.17} parent=0 // pred_check
    _
  $region3: #{_lambda_.17} parent=0 // pred_check_branch
    %8 = sbr.rel (0) target = $region5
  $region4: #{_lambda_.17} parent=0 // pred_region
    _
  $region5: #{_lambda_.17} parent=0 // pred_fallthru
    _
  // Predicated region
  $region6: #{_lambda_.17} parent=0 // pred_check
    _
  $region7: #{_lambda_.17} parent=0 // pred_check_branch
    %10 = sbr.rel (0) target = $region9
  $region8: #{_lambda_.17} parent=0 // pred_region
    _
  $region9: #{_lambda_.17} parent=0 // pred_fallthru
    _
  %v11 = vld [vmem:[%s0] sm:$0xff]
  %v12 = vld [vmem:[%s0 + $0x8] sm:$0xff]
  %v13 = vld [vmem:[%s1] sm:$0xff]
  %v14 = vld [vmem:[%s1 + $0x8] sm:$0xff]
  %v15 = vadd.f32 %v11, %v13
  %v16 = vadd.f32 %v12, %v14
  %17 = vst [vmem:[%s2] sm:$0xff] %v15
  %18 = vst [vmem:[%s2 + $0x8] sm:$0xff] %v16
  // Predicated region
  $region10: #{_lambda_.17} parent=0 // pred_check
    _
  $region11: #{_lambda_.17} parent=0 // pred_check_branch
    %20 = sbr.rel (0) target = $region13
  $region12: #{_lambda_.17} parent=0 // pred_region
    _
  $region13: #{_lambda_.17} parent=0 // pred_fallthru
    _
  // Predicated region
  $region14: #{_lambda_.17} parent=0 // pred_check
    _
  $region15: #{_lambda_.17} parent=0 // pred_check_branch
    %22 = sbr.rel (0) target = $region17
  $region16: #{_lambda_.17} parent=0 // pred_region
    _
  $region17: #{_lambda_.17} parent=0 // pred_fallthru
    _

// kernel: _lambda_.20
$region0: #{_lambda_.20}
  #allocation0 [shape = 'u32[]', space=smem, size = 0x4, offset = 0x4, fixed_abs, tag = 'smem constant byte address 0x4 - core index']
  #allocation1 [shape = 'u32[144,128]{1,0:T(1,128)}', space=vmem, size = 0x12000, scoped, tag = 'internal scratch']
  #allocation2 [shape = 'f32[256,128]{1,0:T(8,128)}', space=vmem, size = 0x20000, scoped, tag = 'scratch operand']
  %s0 = inlined_call_operand.vmem [shape: bf16[512,128], index: 0, kind: input, shape index: {}]
  %s1 = inlined_call_operand.vmem [shape: bf16[128,128], index: 1, kind: input, shape index: {}]
  %s2 = inlined_call_operand.vmem [shape: f32[1,128], index: 2, kind: input, shape index: {}]
  %s3 = inlined_call_operand.vmem [shape: f32[1,128], index: 3, kind: input, shape index: {}]
  %s4 = inlined_call_operand.vmem [shape: f32[512,128], index: 4, kind: output, shape index: {}]
  %s5 = sld [smem:[#allocation0]]
  $region57: #{_lambda_.20} parent=0
    _
  %s7 = ssub.s32 1, %s5
  %s8 = scalar_select 0, %s7, %s5
  loop: start=0, step=1, limit=4
  $region2: #{_lambda_.20} parent=0 // loop_pre_header
    _
  $region3: #{_lambda_.20} parent=0 // loop_header
    %s10 = sphi 0, %s14
    %p11 = scmp.ge.s32.totalorder %s10, 4
    %s17 = sphi 0, %s36
    %s18 = sphi 0, %s32
    %s19 = sphi 0, %s28
    %s20 = sphi 0, %s17
    %s21 = sphi 0, %s18
    %s22 = sphi 0, %s19
    %s23 = sphi 0, %s20
    %s24 = sphi 0, %s21
    %s25 = sphi 0, %s22
    %s41 = sphi 0, %s43
    %s44 = sphi 0, %s41
    %s45 = sphi 0, %s44
    %s61 = sphi 0, %s45
    %s69 = sphi 0, %s71
    %s72 = sphi 0, %s69
    %s73 = sphi 0, %s72
    %s89 = sphi 0, %s73
    %s95 = sphi 0, %s97
    %s98 = sphi 0, %s95
    %s99 = sphi 0, %s98
    %s115 = sphi 0, %s99
    %s121 = sphi 0, %s123
    %s124 = sphi 0, %s121
    %s125 = sphi 0, %s124
    %s141 = sphi 0, %s125
    %s149 = sphi 0, %s151
    %s152 = sphi 0, %s149
    %s153 = sphi 0, %s152
    %s169 = sphi 0, %s153
  $region4: #{_lambda_.20} parent=0 // loop_header_branch
    %13 = sbr.rel (%p11) target = $region8
  $region5: #{_lambda_.20} parent=0 // loop_body
    %s15 = ssub.s32 %s10, 1
    %s16 = ssub.s32 %s10, 2
    %s26 = sadd.s32 1, %s19
    %p27 = scmp.ge.s32.totalorder %s26, 1
    %s28 = scalar_select %p27, 0, %s26
    %s29 = sadd.s32 1, %s18
    %s30 = scalar_select %p27, %s29, %s18
    %p31 = scmp.ge.s32.totalorder %s30, 1
    %s32 = scalar_select %p31, 0, %s30
    %s33 = sadd.s32 1, %s17
    %s34 = scalar_select %p31, %s33, %s17
    %p35 = scmp.ge.s32.totalorder %s34, 2
    %s36 = scalar_select %p35, 0, %s34
    %s37 = ssub.s32 %s17, %s36
    %s38 = ssub.s32 %s19, %s28
    %s39 = sor.u32 %s37, %s38
    %p40 = scmp.eq.s32.totalorder %s39, 0
    %s42 = sadd.s32 %s41, 1
    %s43 = scalar_select %p40, %s41, %s42
    %p46 = pneg %p40
    %p47 = scmp.eq.s32.totalorder %s10, 1
    %p48 = por %p46, %p47
    %p49 = scmp.ne.s32.totalorder %s41, %s44
    %p50 = scmp.eq.s32.totalorder %s10, 0
    %p51 = por %p49, %p50
    %p52 = scmp.ne.s32.totalorder %s41, %s44
    %p53 = scmp.eq.s32.totalorder %s15, 1
    %p54 = por %p52, %p53
    %p55 = scmp.ne.s32.totalorder %s44, %s45
    %p56 = scmp.eq.s32.totalorder %s15, 0
    %p57 = por %p55, %p56
    %p58 = scmp.ne.s32.totalorder %s44, %s45
    %p59 = scmp.eq.s32.totalorder %s16, 1
    %p60 = por %p58, %p59
    %p62 = scmp.ne.s32.totalorder %s45, %s61
    %p63 = scmp.eq.s32.totalorder %s16, 0
    %p64 = por %p62, %p63
    %s65 = ssub.s32 %s19, %s28
    %s66 = ssub.s32 %s18, %s32
    %s67 = sor.u32 %s65, %s66
    %p68 = scmp.eq.s32.totalorder %s67, 0
    %s70 = sadd.s32 %s69, 1
    %s71 = scalar_select %p68, %s69, %s70
    %p74 = pneg %p68
    %p75 = scmp.eq.s32.totalorder %s10, 1
    %p76 = por %p74, %p75
    %p77 = scmp.ne.s32.totalorder %s69, %s72
    %p78 = scmp.eq.s32.totalorder %s10, 0
    %p79 = por %p77, %p78
    %p80 = scmp.ne.s32.totalorder %s69, %s72
    %p81 = scmp.eq.s32.totalorder %s15, 1
    %p82 = por %p80, %p81
    %p83 = scmp.ne.s32.totalorder %s72, %s73
    %p84 = scmp.eq.s32.totalorder %s15, 0
    %p85 = por %p83, %p84
    %p86 = scmp.ne.s32.totalorder %s72, %s73
    %p87 = scmp.eq.s32.totalorder %s16, 1
    %p88 = por %p86, %p87
    %p90 = scmp.ne.s32.totalorder %s73, %s89
    %p91 = scmp.eq.s32.totalorder %s16, 0
    %p92 = por %p90, %p91
    %s93 = ssub.s32 %s18, %s32
    %p94 = scmp.eq.s32.totalorder %s93, 0
    %s96 = sadd.s32 %s95, 1
    %s97 = scalar_select %p94, %s95, %s96
    %p100 = pneg %p94
    %p101 = scmp.eq.s32.totalorder %s10, 1
    %p102 = por %p100, %p101
    %p103 = scmp.ne.s32.totalorder %s95, %s98
    %p104 = scmp.eq.s32.totalorder %s10, 0
    %p105 = por %p103, %p104
    %p106 = scmp.ne.s32.totalorder %s95, %s98
    %p107 = scmp.eq.s32.totalorder %s15, 1
    %p108 = por %p106, %p107
    %p109 = scmp.ne.s32.totalorder %s98, %s99
    %p110 = scmp.eq.s32.totalorder %s15, 0
    %p111 = por %p109, %p110
    %p112 = scmp.ne.s32.totalorder %s98, %s99
    %p113 = scmp.eq.s32.totalorder %s16, 1
    %p114 = por %p112, %p113
    %p116 = scmp.ne.s32.totalorder %s99, %s115
    %p117 = scmp.eq.s32.totalorder %s16, 0
    %p118 = por %p116, %p117
    %s119 = ssub.s32 %s18, %s32
    %p120 = scmp.eq.s32.totalorder %s119, 0
    %s122 = sadd.s32 %s121, 1
    %s123 = scalar_select %p120, %s121, %s122
    %p126 = pneg %p120
    %p127 = scmp.eq.s32.totalorder %s10, 1
    %p128 = por %p126, %p127
    %p129 = scmp.ne.s32.totalorder %s121, %s124
    %p130 = scmp.eq.s32.totalorder %s10, 0
    %p131 = por %p129, %p130
    %p132 = scmp.ne.s32.totalorder %s121, %s124
    %p133 = scmp.eq.s32.totalorder %s15, 1
    %p134 = por %p132, %p133
    %p135 = scmp.ne.s32.totalorder %s124, %s125
    %p136 = scmp.eq.s32.totalorder %s15, 0
    %p137 = por %p135, %p136
    %p138 = scmp.ne.s32.totalorder %s124, %s125
    %p139 = scmp.eq.s32.totalorder %s16, 1
    %p140 = por %p138, %p139
    %p142 = scmp.ne.s32.totalorder %s125, %s141
    %p143 = scmp.eq.s32.totalorder %s16, 0
    %p144 = por %p142, %p143
    %s145 = ssub.s32 %s17, %s36
    %s146 = ssub.s32 %s18, %s32
    %s147 = sor.u32 %s145, %s146
    %p148 = scmp.eq.s32.totalorder %s147, 0
    %s150 = sadd.s32 %s149, 1
    %s151 = scalar_select %p148, %s149, %s150
    %p154 = pneg %p148
    %p155 = scmp.eq.s32.totalorder %s10, 1
    %p156 = por %p154, %p155
    %p157 = scmp.ne.s32.totalorder %s149, %s152
    %p158 = scmp.eq.s32.totalorder %s10, 0
    %p159 = por %p157, %p158
    %p160 = scmp.ne.s32.totalorder %s149, %s152
    %p161 = scmp.eq.s32.totalorder %s15, 1
    %p162 = por %p160, %p161
    %p163 = scmp.ne.s32.totalorder %s152, %s153
    %p164 = scmp.eq.s32.totalorder %s15, 0
    %p165 = por %p163, %p164
    %p166 = scmp.ne.s32.totalorder %s152, %s153
    %p167 = scmp.eq.s32.totalorder %s16, 1
    %p168 = por %p166, %p167
    %p170 = scmp.ne.s32.totalorder %s153, %s169
    %p171 = scmp.eq.s32.totalorder %s16, 0
    %p172 = por %p170, %p171
    %p173 = scmp.le.s32.totalorder 1, %s10
    %p174 = scmp.lt.s32.totalorder %s10, 3
    %p175 = pnand %p173, %p174
    %p176 = pneg %p175
    // Predicated region
    $region9: #{_lambda_.20} parent=5 // pred_check
      _
    $region10: #{_lambda_.20} parent=5 // pred_check_branch
      %178 = sbr.rel (%p175) target = $region12
    $region11: #{_lambda_.20} parent=5 // pred_region
      %s179 = ssub.s32 %s10, 1
      // Predicated region
      $region13: #{_lambda_.20} parent=11 // pred_check
        %p180 = pneg %p85
      $region14: #{_lambda_.20} parent=11 // pred_check_branch
        %182 = sbr.rel (%p180) target = $region16
      $region15: #{_lambda_.20} parent=11 // pred_region
        %s183 = smul.u32 16, %s22
        %p184 = scmp.lt.s32.totalorder %s183, 15
        %s185 = scalar_select %p184, %s183, 15
        %p186 = scmp.lt.s32.totalorder %s21, 0
        %s187 = scalar_select %p186, %s21, 0
        %s188 = sadd.s32 %s187, %s185
        %s189 = smul.addr %s188, 4
        %s190 = scalar_lea.vmem %s1, %s189
        %s191 = smul.u32 16, %s22
      $region16: #{_lambda_.20} parent=11 // pred_fallthru
        _
      // Predicated region
      $region17: #{_lambda_.20} parent=11 // pred_check
        %p192 = pneg %p111
      $region18: #{_lambda_.20} parent=11 // pred_check_branch
        %194 = sbr.rel (%p192) target = $region20
      $region19: #{_lambda_.20} parent=11 // pred_region
        %p195 = scmp.lt.s32.totalorder %s21, 0
        %s196 = scalar_select %p195, %s21, 0
        %s197 = scalar_lea.vmem %s2, %s196
      $region20: #{_lambda_.20} parent=11 // pred_fallthru
        _
      // Predicated region
      $region21: #{_lambda_.20} parent=11 // pred_check
        %p198 = pneg %p137
      $region22: #{_lambda_.20} parent=11 // pred_check_branch
        %200 = sbr.rel (%p198) target = $region24
      $region23: #{_lambda_.20} parent=11 // pred_region
        %p201 = scmp.lt.s32.totalorder %s21, 0
        %s202 = scalar_select %p201, %s21, 0
        %s203 = scalar_lea.vmem %s3, %s202
      $region24: #{_lambda_.20} parent=11 // pred_fallthru
        _
    $region12: #{_lambda_.20} parent=5 // pred_fallthru
      _
    %p204 = scmp.lt.s32.totalorder %s10, 2
    // Predicated region
    $region25: #{_lambda_.20} parent=5 // pred_check
      %p205 = pneg %p204
    $region26: #{_lambda_.20} parent=5 // pred_check_branch
      %207 = sbr.rel (%p205) target = $region28
    $region27: #{_lambda_.20} parent=5 // pred_region
      // Predicated region
      $region29: #{_lambda_.20} parent=27 // pred_check
        %p208 = pneg %p51
      $region30: #{_lambda_.20} parent=27 // pred_check_branch
        %210 = sbr.rel (%p208) target = $region32
      $region31: #{_lambda_.20} parent=27 // pred_region
        %s211 = smul.u32 32, %s17
        %p212 = scmp.lt.s32.totalorder %s211, 63
        %s213 = scalar_select %p212, %s211, 63
        %p214 = scmp.lt.s32.totalorder %s19, 0
        %s215 = scalar_select %p214, %s19, 0
        %s216 = sadd.s32 %s215, %s213
        %s217 = smul.addr %s216, 4
        %s218 = scalar_lea.vmem %s0, %s217
        %s219 = smul.u32 32, %s17
      $region32: #{_lambda_.20} parent=27 // pred_fallthru
        _
    $region28: #{_lambda_.20} parent=5 // pred_fallthru
      _
    %p220 = scmp.le.s32.totalorder 1, %s10
    %p221 = scmp.lt.s32.totalorder %s10, 3
    %p222 = pnand %p220, %p221
    %p223 = pneg %p222
    // Predicated region
    $region33: #{_lambda_.20} parent=5 // pred_check
      _
    $region34: #{_lambda_.20} parent=5 // pred_check_branch
      %225 = sbr.rel (%p222) target = $region36
    $region35: #{_lambda_.20} parent=5 // pred_region
      %s226 = ssub.s32 %s10, 1
      %s227 = smul.u32 32, %s20
      %p228 = scmp.lt.s32.totalorder %s227, 63
      %s229 = scalar_select %p228, %s227, 63
      %p230 = scmp.lt.s32.totalorder %s22, 0
      %s231 = scalar_select %p230, %s22, 0
      %s232 = sadd.s32 %s231, %s229
      %s233 = smul.addr %s232, 4
      %s234 = scalar_lea.vmem %s0, %s233
      %p235 = pneg %p57
      %p236 = pneg %p54
      %s237 = smul.u32 16, %s22
      %p238 = scmp.lt.s32.totalorder %s237, 15
      %s239 = scalar_select %p238, %s237, 15
      %p240 = scmp.lt.s32.totalorder %s21, 0
      %s241 = scalar_select %p240, %s21, 0
      %s242 = sadd.s32 %s241, %s239
      %s243 = smul.addr %s242, 4
      %s244 = scalar_lea.vmem %s1, %s243
      %p245 = pneg %p85
      %p246 = pneg %p82
      %p247 = scmp.lt.s32.totalorder %s21, 0
      %s248 = scalar_select %p247, %s21, 0
      %s249 = scalar_lea.vmem %s2, %s248
      %p250 = pneg %p111
      %p251 = pneg %p108
      %p252 = scmp.lt.s32.totalorder %s21, 0
      %s253 = scalar_select %p252, %s21, 0
      %s254 = scalar_lea.vmem %s3, %s253
      %p255 = pneg %p137
      %p256 = pneg %p134
      %p257 = pneg %p165
      %p258 = pneg %p162
      %s259 = smul.u32 32, %s20
      %p260 = scmp.lt.s32.totalorder %s259, 63
      %s261 = scalar_select %p260, %s259, 63
      %p262 = scmp.lt.s32.totalorder %s21, 0
      %s263 = scalar_select %p262, %s21, 0
      %s264 = sadd.s32 %s263, %s261
      %s265 = smul.addr %s264, 8
      %s266 = scalar_lea.vmem %s4, %s265
      %s267 = smul.u32 32, %s20
      %p268 = scmp.lt.s32.totalorder %s267, 63
      %s269 = scalar_select %p268, %s267, 63
      %p270 = scmp.lt.s32.totalorder %s22, 0
      %s271 = scalar_select %p270, %s22, 0
      %s272 = sadd.s32 %s271, %s269
      %s273 = smul.addr %s272, 4
      %s274 = scalar_lea.vmem %s0, %s273
      %s275 = smul.u32 32, %s20
      %s276 = smul.u32 16, %s22
      %p277 = scmp.lt.s32.totalorder %s276, 15
      %s278 = scalar_select %p277, %s276, 15
      %p279 = scmp.lt.s32.totalorder %s21, 0
      %s280 = scalar_select %p279, %s21, 0
      %s281 = sadd.s32 %s280, %s278
      %s282 = smul.addr %s281, 4
      %s283 = scalar_lea.vmem %s1, %s282
      %s284 = smul.u32 16, %s22
      %p285 = scmp.lt.s32.totalorder %s21, 0
      %s286 = scalar_select %p285, %s21, 0
      %s287 = scalar_lea.vmem %s2, %s286
      %p288 = scmp.lt.s32.totalorder %s21, 0
      %s289 = scalar_select %p288, %s21, 0
      %s290 = scalar_lea.vmem %s3, %s289
      %s291 = smul.u32 32, %s20
      %p292 = scmp.lt.s32.totalorder %s291, 63
      %s293 = scalar_select %p292, %s291, 63
      %p294 = scmp.lt.s32.totalorder %s21, 0
      %s295 = scalar_select %p294, %s21, 0
      %s296 = sadd.s32 %s295, %s293
      %s297 = smul.addr %s296, 8
      %s298 = scalar_lea.vmem %s4, %s297
      %s299 = smul.u32 32, %s20
      %p301 = scmp.eq.s32.totalorder %s22, 0
      // Predicated region
      $region37: #{_lambda_.20} parent=35 // pred_check
        %p302 = pneg %p301
      $region38: #{_lambda_.20} parent=35 // pred_check_branch
        %304 = sbr.rel (%p302) target = $region40
      $region39: #{_lambda_.20} parent=35 // pred_region
        %305 = vst [vmem:[#allocation2] sm:$0xff] 0.0
        %306 = vst [vmem:[#allocation2 + $0x8] sm:$0xff] 0.0
        %307 = vst [vmem:[#allocation2 + $0x10] sm:$0xff] 0.0
        %308 = vst [vmem:[#allocation2 + $0x18] sm:$0xff] 0.0
        %309 = vst [vmem:[#allocation2 + $0x20] sm:$0xff] 0.0
        %310 = vst [vmem:[#allocation2 + $0x28] sm:$0xff] 0.0
        %311 = vst [vmem:[#allocation2 + $0x30] sm:$0xff] 0.0
        %312 = vst [vmem:[#allocation2 + $0x38] sm:$0xff] 0.0
        %313 = vst [vmem:[#allocation2 + $0x40] sm:$0xff] 0.0
        %314 = vst [vmem:[#allocation2 + $0x48] sm:$0xff] 0.0
        %315 = vst [vmem:[#allocation2 + $0x50] sm:$0xff] 0.0
        %316 = vst [vmem:[#allocation2 + $0x58] sm:$0xff] 0.0
        %317 = vst [vmem:[#allocation2 + $0x60] sm:$0xff] 0.0
        %318 = vst [vmem:[#allocation2 + $0x68] sm:$0xff] 0.0
        %319 = vst [vmem:[#allocation2 + $0x70] sm:$0xff] 0.0
        %320 = vst [vmem:[#allocation2 + $0x78] sm:$0xff] 0.0
        %321 = vst [vmem:[#allocation2 + $0x80] sm:$0xff] 0.0
        %322 = vst [vmem:[#allocation2 + $0x88] sm:$0xff] 0.0
        %323 = vst [vmem:[#allocation2 + $0x90] sm:$0xff] 0.0
        %324 = vst [vmem:[#allocation2 + $0x98] sm:$0xff] 0.0
        %325 = vst [vmem:[#allocation2 + $0xa0] sm:$0xff] 0.0
        %326 = vst [vmem:[#allocation2 + $0xa8] sm:$0xff] 0.0
        %327 = vst [vmem:[#allocation2 + $0xb0] sm:$0xff] 0.0
        %328 = vst [vmem:[#allocation2 + $0xb8] sm:$0xff] 0.0
        %329 = vst [vmem:[#allocation2 + $0xc0] sm:$0xff] 0.0
        %330 = vst [vmem:[#allocation2 + $0xc8] sm:$0xff] 0.0
        %331 = vst [vmem:[#allocation2 + $0xd0] sm:$0xff] 0.0
        %332 = vst [vmem:[#allocation2 + $0xd8] sm:$0xff] 0.0
        %333 = vst [vmem:[#allocation2 + $0xe0] sm:$0xff] 0.0
        %334 = vst [vmem:[#allocation2 + $0xe8] sm:$0xff] 0.0
        %335 = vst [vmem:[#allocation2 + $0xf0] sm:$0xff] 0.0
        %336 = vst [vmem:[#allocation2 + $0xf8] sm:$0xff] 0.0
      $region40: #{_lambda_.20} parent=35 // pred_fallthru
        _
      %v337 = vld [vmem:[#allocation2] sm:$0xff]
      %v338 = vld [vmem:[#allocation2 + $0x8] sm:$0xff]
      %v339 = vld [vmem:[#allocation2 + $0x10] sm:$0xff]
      %v340 = vld [vmem:[#allocation2 + $0x18] sm:$0xff]
      %v341 = vld [vmem:[#allocation2 + $0x20] sm:$0xff]
      %v342 = vld [vmem:[#allocation2 + $0x28] sm:$0xff]
      %v343 = vld [vmem:[#allocation2 + $0x30] sm:$0xff]
      %v344 = vld [vmem:[#allocation2 + $0x38] sm:$0xff]
      %v345 = vld [vmem:[#allocation2 + $0x40] sm:$0xff]
      %v346 = vld [vmem:[#allocation2 + $0x48] sm:$0xff]
      %v347 = vld [vmem:[#allocation2 + $0x50] sm:$0xff]
      %v348 = vld [vmem:[#allocation2 + $0x58] sm:$0xff]
      %v349 = vld [vmem:[#allocation2 + $0x60] sm:$0xff]
      %v350 = vld [vmem:[#allocation2 + $0x68] sm:$0xff]
      %v351 = vld [vmem:[#allocation2 + $0x70] sm:$0xff]
      %v352 = vld [vmem:[#allocation2 + $0x78] sm:$0xff]
      %v353 = vld [vmem:[#allocation2 + $0x80] sm:$0xff]
      %v354 = vld [vmem:[#allocation2 + $0x88] sm:$0xff]
      %v355 = vld [vmem:[#allocation2 + $0x90] sm:$0xff]
      %v356 = vld [vmem:[#allocation2 + $0x98] sm:$0xff]
      %v357 = vld [vmem:[#allocation2 + $0xa0] sm:$0xff]
      %v358 = vld [vmem:[#allocation2 + $0xa8] sm:$0xff]
      %v359 = vld [vmem:[#allocation2 + $0xb0] sm:$0xff]
      %v360 = vld [vmem:[#allocation2 + $0xb8] sm:$0xff]
      %v361 = vld [vmem:[#allocation2 + $0xc0] sm:$0xff]
      %v362 = vld [vmem:[#allocation2 + $0xc8] sm:$0xff]
      %v363 = vld [vmem:[#allocation2 + $0xd0] sm:$0xff]
      %v364 = vld [vmem:[#allocation2 + $0xd8] sm:$0xff]
      %v365 = vld [vmem:[#allocation2 + $0xe0] sm:$0xff]
      %v366 = vld [vmem:[#allocation2 + $0xe8] sm:$0xff]
      %v367 = vld [vmem:[#allocation2 + $0xf0] sm:$0xff]
      %v368 = vld [vmem:[#allocation2 + $0xf8] sm:$0xff]
      %v369 = vld [vmem:[%s274] sm:$0xf]
      %v370 = vld [vmem:[%s274 + $0x4] sm:$0xf]
      %v371 = vld [vmem:[%s274 + $0x8] sm:$0xf]
      %v372 = vld [vmem:[%s274 + $0xc] sm:$0xf]
      %v373 = vld [vmem:[%s274 + $0x10] sm:$0xf]
      %v374 = vld [vmem:[%s274 + $0x14] sm:$0xf]
      %v375 = vld [vmem:[%s274 + $0x18] sm:$0xf]
      %v376 = vld [vmem:[%s274 + $0x1c] sm:$0xf]
      %v377 = vld [vmem:[%s274 + $0x20] sm:$0xf]
      %v378 = vld [vmem:[%s274 + $0x24] sm:$0xf]
      %v379 = vld [vmem:[%s274 + $0x28] sm:$0xf]
      %v380 = vld [vmem:[%s274 + $0x2c] sm:$0xf]
      %v381 = vld [vmem:[%s274 + $0x30] sm:$0xf]
      %v382 = vld [vmem:[%s274 + $0x34] sm:$0xf]
      %v383 = vld [vmem:[%s274 + $0x38] sm:$0xf]
      %v384 = vld [vmem:[%s274 + $0x3c] sm:$0xf]
      %v385 = vld [vmem:[%s274 + $0x40] sm:$0xf]
      %v386 = vld [vmem:[%s274 + $0x44] sm:$0xf]
      %v387 = vld [vmem:[%s274 + $0x48] sm:$0xf]
      %v388 = vld [vmem:[%s274 + $0x4c] sm:$0xf]
      %v389 = vld [vmem:[%s274 + $0x50] sm:$0xf]
      %v390 = vld [vmem:[%s274 + $0x54] sm:$0xf]
      %v391 = vld [vmem:[%s274 + $0x58] sm:$0xf]
      %v392 = vld [vmem:[%s274 + $0x5c] sm:$0xf]
      %v393 = vld [vmem:[%s274 + $0x60] sm:$0xf]
      %v394 = vld [vmem:[%s274 + $0x64] sm:$0xf]
      %v395 = vld [vmem:[%s274 + $0x68] sm:$0xf]
      %v396 = vld [vmem:[%s274 + $0x6c] sm:$0xf]
      %v397 = vld [vmem:[%s274 + $0x70] sm:$0xf]
      %v398 = vld [vmem:[%s274 + $0x74] sm:$0xf]
      %v399 = vld [vmem:[%s274 + $0x78] sm:$0xf]
      %v400 = vld [vmem:[%s274 + $0x7c] sm:$0xf]
      %v401 = vld [vmem:[%s283] sm:$0xf]
      %v402 = vld [vmem:[%s283 + $0x4] sm:$0xf]
      %v403 = vld [vmem:[%s283 + $0x8] sm:$0xf]
      %v404 = vld [vmem:[%s283 + $0xc] sm:$0xf]
      %v405 = vld [vmem:[%s283 + $0x10] sm:$0xf]
      %v406 = vld [vmem:[%s283 + $0x14] sm:$0xf]
      %v407 = vld [vmem:[%s283 + $0x18] sm:$0xf]
      %v408 = vld [vmem:[%s283 + $0x1c] sm:$0xf]
      %v409 = vld [vmem:[%s283 + $0x20] sm:$0xf]
      %v410 = vld [vmem:[%s283 + $0x24] sm:$0xf]
      %v411 = vld [vmem:[%s283 + $0x28] sm:$0xf]
      %v412 = vld [vmem:[%s283 + $0x2c] sm:$0xf]
      %v413 = vld [vmem:[%s283 + $0x30] sm:$0xf]
      %v414 = vld [vmem:[%s283 + $0x34] sm:$0xf]
      %v415 = vld [vmem:[%s283 + $0x38] sm:$0xf]
      %v416 = vld [vmem:[%s283 + $0x3c] sm:$0xf]
      %v449 = vunpack.c.l.b16 %v369
      %v450 = vunpack.c.l.b16 %v370
      %v451 = vunpack.c.l.b16 %v371
      %v452 = vunpack.c.l.b16 %v372
      %v453 = vunpack.c.l.b16 %v373
      %v454 = vunpack.c.l.b16 %v374
      %v455 = vunpack.c.l.b16 %v375
      %v456 = vunpack.c.l.b16 %v376
      %v457 = vunpack.c.l.b16 %v377
      %v458 = vunpack.c.l.b16 %v378
      %v459 = vunpack.c.l.b16 %v379
      %v460 = vunpack.c.l.b16 %v380
      %v461 = vunpack.c.l.b16 %v381
      %v462 = vunpack.c.l.b16 %v382
      %v463 = vunpack.c.l.b16 %v383
      %v464 = vunpack.c.l.b16 %v384
      %v465 = vunpack.c.l.b16 %v385
      %v466 = vunpack.c.l.b16 %v386
      %v467 = vunpack.c.l.b16 %v387
      %v468 = vunpack.c.l.b16 %v388
      %v469 = vunpack.c.l.b16 %v389
      %v470 = vunpack.c.l.b16 %v390
      %v471 = vunpack.c.l.b16 %v391
      %v472 = vunpack.c.l.b16 %v392
      %v473 = vunpack.c.l.b16 %v393
      %v474 = vunpack.c.l.b16 %v394
      %v475 = vunpack.c.l.b16 %v395
      %v476 = vunpack.c.l.b16 %v396
      %v477 = vunpack.c.l.b16 %v397
      %v478 = vunpack.c.l.b16 %v398
      %v479 = vunpack.c.l.b16 %v399
      %v480 = vunpack.c.l.b16 %v400
      %v481 = vpack.c.b16 %v450, %v449
      %v482 = vpack.c.b16 %v452, %v451
      %v483 = vpack.c.b16 %v454, %v453
      %v484 = vpack.c.b16 %v456, %v455
      %v485 = vpack.c.b16 %v458, %v457
      %v486 = vpack.c.b16 %v460, %v459
      %v487 = vpack.c.b16 %v462, %v461
      %v488 = vpack.c.b16 %v464, %v463
      %v489 = vpack.c.b16 %v466, %v465
      %v490 = vpack.c.b16 %v468, %v467
      %v491 = vpack.c.b16 %v470, %v469
      %v492 = vpack.c.b16 %v472, %v471
      %v493 = vpack.c.b16 %v474, %v473
      %v494 = vpack.c.b16 %v476, %v475
      %v495 = vpack.c.b16 %v478, %v477
      %v496 = vpack.c.b16 %v480, %v479
      %v529 = vunpack.c.l.b16 %v401
      %v530 = vunpack.c.l.b16 %v402
      %v531 = vunpack.c.l.b16 %v403
      %v532 = vunpack.c.l.b16 %v404
      %v533 = vunpack.c.l.b16 %v405
      %v534 = vunpack.c.l.b16 %v406
      %v535 = vunpack.c.l.b16 %v407
      %v536 = vunpack.c.l.b16 %v408
      %v537 = vunpack.c.l.b16 %v409
      %v538 = vunpack.c.l.b16 %v410
      %v539 = vunpack.c.l.b16 %v411
      %v540 = vunpack.c.l.b16 %v412
      %v541 = vunpack.c.l.b16 %v413
      %v542 = vunpack.c.l.b16 %v414
      %v543 = vunpack.c.l.b16 %v415
      %v544 = vunpack.c.l.b16 %v416
      %v545 = vpack.c.b16 %v530, %v529
      %v546 = vpack.c.b16 %v532, %v531
      %v547 = vpack.c.b16 %v534, %v533
      %v548 = vpack.c.b16 %v536, %v535
      %v549 = vpack.c.b16 %v538, %v537
      %v550 = vpack.c.b16 %v540, %v539
      %v551 = vpack.c.b16 %v542, %v541
      %v552 = vpack.c.b16 %v544, %v543
      %561 = vmatprep.subr.bf16.mxu0 0
      %562 = vmatpush1.bf16.msra.mxu0 %v552
      %563 = vmatprep.subr.bf16.mxu0 0
      %564 = vmatpush1.bf16.msra.mxu0 %v551
      %565 = vmatprep.subr.bf16.mxu0 0
      %566 = vmatpush1.bf16.msra.mxu0 %v550
      %567 = vmatprep.subr.bf16.mxu0 0
      %568 = vmatpush1.bf16.msra.mxu0 %v549
      %569 = vmatprep.subr.bf16.mxu0 0
      %570 = vmatpush1.bf16.msra.mxu0 %v548
      %571 = vmatprep.subr.bf16.mxu0 0
      %572 = vmatpush1.bf16.msra.mxu0 %v547
      %573 = vmatprep.subr.bf16.mxu0 0
      %574 = vmatpush1.bf16.msra.mxu0 %v546
      %575 = vmatprep.subr.bf16.mxu0 0
      %576 = vmatpush1.bf16.msra.mxu0 %v545
      %577 = vmatprep.subr.bf16.mxu0 0
      %578 = vmatpush2.bf16.msra.mxu0 0
      %579 = vmatprep.subr.bf16.mxu0 0
      %580 = vmatpush2.bf16.msra.mxu0 0
      %581 = vmatprep.subr.bf16.mxu0 0
      %582 = vmatpush2.bf16.msra.mxu0 0
      %583 = vmatprep.subr.bf16.mxu0 0
      %584 = vmatpush2.bf16.msra.mxu0 0
      %585 = vmatprep.subr.bf16.mxu0 0
      %586 = vmatpush2.bf16.msra.mxu0 0
      %587 = vmatprep.subr.bf16.mxu0 0
      %588 = vmatpush2.bf16.msra.mxu0 0
      %589 = vmatprep.subr.bf16.mxu0 0
      %590 = vmatpush2.bf16.msra.mxu0 0
      %591 = vmatprep.subr.bf16.mxu0 0
      %592 = vmatpush2.bf16.msra.mxu0 0
      %593 = vmatprep.mubr.bf16.mxu0 0
      %594 = vmatmul.mubr.bf16.gmra.mxu0 %v481
      %v595 = vpop.f32.mrf.mxu0
      %v596 = vadd.f32 0.0, %v595
      %v597 = vpop.f32.mrf.mxu0
      %v598 = vpop.f32.mrf.mxu0
      %v599 = vadd.f32 0.0, %v598
      %v600 = vpop.f32.mrf.mxu0
      %601 = vmatprep.mubr.bf16.mxu0 0
      %602 = vmatmul.mubr.bf16.gmra.mxu0 %v482
      %v603 = vpop.f32.mrf.mxu0
      %v604 = vadd.f32 0.0, %v603
      %v605 = vpop.f32.mrf.mxu0
      %v606 = vpop.f32.mrf.mxu0
      %v607 = vadd.f32 0.0, %v606
      %v608 = vpop.f32.mrf.mxu0
      %609 = vmatprep.mubr.bf16.mxu0 0
      %610 = vmatmul.mubr.bf16.gmra.mxu0 %v483
      %v611 = vpop.f32.mrf.mxu0
      %v612 = vadd.f32 0.0, %v611
      %v613 = vpop.f32.mrf.mxu0
      %v614 = vpop.f32.mrf.mxu0
      %v615 = vadd.f32 0.0, %v614
      %v616 = vpop.f32.mrf.mxu0
      %617 = vmatprep.mubr.bf16.mxu0 0
      %618 = vmatmul.mubr.bf16.gmra.mxu0 %v484
      %v619 = vpop.f32.mrf.mxu0
      %v620 = vadd.f32 0.0, %v619
      %v621 = vpop.f32.mrf.mxu0
      %v622 = vpop.f32.mrf.mxu0
      %v623 = vadd.f32 0.0, %v622
      %v624 = vpop.f32.mrf.mxu0
      %625 = vmatprep.mubr.bf16.mxu0 0
      %626 = vmatmul.mubr.bf16.gmra.mxu0 %v485
      %v627 = vpop.f32.mrf.mxu0
      %v628 = vadd.f32 0.0, %v627
      %v629 = vpop.f32.mrf.mxu0
      %v630 = vpop.f32.mrf.mxu0
      %v631 = vadd.f32 0.0, %v630
      %v632 = vpop.f32.mrf.mxu0
      %633 = vmatprep.mubr.bf16.mxu0 0
      %634 = vmatmul.mubr.bf16.gmra.mxu0 %v486
      %v635 = vpop.f32.mrf.mxu0
      %v636 = vadd.f32 0.0, %v635
      %v637 = vpop.f32.mrf.mxu0
      %v638 = vpop.f32.mrf.mxu0
      %v639 = vadd.f32 0.0, %v638
      %v640 = vpop.f32.mrf.mxu0
      %641 = vmatprep.mubr.bf16.mxu0 0
      %642 = vmatmul.mubr.bf16.gmra.mxu0 %v487
      %v643 = vpop.f32.mrf.mxu0
      %v644 = vadd.f32 0.0, %v643
      %v645 = vpop.f32.mrf.mxu0
      %v646 = vpop.f32.mrf.mxu0
      %v647 = vadd.f32 0.0, %v646
      %v648 = vpop.f32.mrf.mxu0
      %649 = vmatprep.mubr.bf16.mxu0 0
      %650 = vmatmul.mubr.bf16.gmra.mxu0 %v488
      %v651 = vpop.f32.mrf.mxu0
      %v652 = vadd.f32 0.0, %v651
      %v653 = vpop.f32.mrf.mxu0
      %v654 = vpop.f32.mrf.mxu0
      %v655 = vadd.f32 0.0, %v654
      %v656 = vpop.f32.mrf.mxu0
      %657 = vmatprep.mubr.bf16.mxu0 0
      %658 = vmatmul.mubr.bf16.gmra.mxu0 %v489
      %v659 = vpop.f32.mrf.mxu0
      %v660 = vadd.f32 0.0, %v659
      %v661 = vpop.f32.mrf.mxu0
      %v662 = vpop.f32.mrf.mxu0
      %v663 = vadd.f32 0.0, %v662
      %v664 = vpop.f32.mrf.mxu0
      %665 = vmatprep.mubr.bf16.mxu0 0
      %666 = vmatmul.mubr.bf16.gmra.mxu0 %v490
      %v667 = vpop.f32.mrf.mxu0
      %v668 = vadd.f32 0.0, %v667
      %v669 = vpop.f32.mrf.mxu0
      %v670 = vpop.f32.mrf.mxu0
      %v671 = vadd.f32 0.0, %v670
      %v672 = vpop.f32.mrf.mxu0
      %673 = vmatprep.mubr.bf16.mxu0 0
      %674 = vmatmul.mubr.bf16.gmra.mxu0 %v491
      %v675 = vpop.f32.mrf.mxu0
      %v676 = vadd.f32 0.0, %v675
      %v677 = vpop.f32.mrf.mxu0
      %v678 = vpop.f32.mrf.mxu0
      %v679 = vadd.f32 0.0, %v678
      %v680 = vpop.f32.mrf.mxu0
      %681 = vmatprep.mubr.bf16.mxu0 0
      %682 = vmatmul.mubr.bf16.gmra.mxu0 %v492
      %v683 = vpop.f32.mrf.mxu0
      %v684 = vadd.f32 0.0, %v683
      %v685 = vpop.f32.mrf.mxu0
      %v686 = vpop.f32.mrf.mxu0
      %v687 = vadd.f32 0.0, %v686
      %v688 = vpop.f32.mrf.mxu0
      %689 = vmatprep.mubr.bf16.mxu0 0
      %690 = vmatmul.mubr.bf16.gmra.mxu0 %v493
      %v691 = vpop.f32.mrf.mxu0
      %v692 = vadd.f32 0.0, %v691
      %v693 = vpop.f32.mrf.mxu0
      %v694 = vpop.f32.mrf.mxu0
      %v695 = vadd.f32 0.0, %v694
      %v696 = vpop.f32.mrf.mxu0
      %697 = vmatprep.mubr.bf16.mxu0 0
      %698 = vmatmul.mubr.bf16.gmra.mxu0 %v494
      %v699 = vpop.f32.mrf.mxu0
      %v700 = vadd.f32 0.0, %v699
      %v701 = vpop.f32.mrf.mxu0
      %v702 = vpop.f32.mrf.mxu0
      %v703 = vadd.f32 0.0, %v702
      %v704 = vpop.f32.mrf.mxu0
      %705 = vmatprep.mubr.bf16.mxu0 0
      %706 = vmatmul.mubr.bf16.gmra.mxu0 %v495
      %v707 = vpop.f32.mrf.mxu0
      %v708 = vadd.f32 0.0, %v707
      %v709 = vpop.f32.mrf.mxu0
      %v710 = vpop.f32.mrf.mxu0
      %v711 = vadd.f32 0.0, %v710
      %v712 = vpop.f32.mrf.mxu0
      %713 = vmatprep.mubr.bf16.mxu0 0
      %714 = vmatmul.mubr.bf16.gmra.mxu0 %v496
      %v715 = vpop.f32.mrf.mxu0
      %v716 = vadd.f32 0.0, %v715
      %v717 = vpop.f32.mrf.mxu0
      %v718 = vpop.f32.mrf.mxu0
      %v719 = vadd.f32 0.0, %v718
      %v720 = vpop.f32.mrf.mxu0
      %721 = vdwg.mxu0
      %v722 = vadd.f32 %v337, %v596
      %v723 = vadd.f32 %v338, %v599
      %v724 = vadd.f32 %v339, %v604
      %v725 = vadd.f32 %v340, %v607
      %v726 = vadd.f32 %v341, %v612
      %v727 = vadd.f32 %v342, %v615
      %v728 = vadd.f32 %v343, %v620
      %v729 = vadd.f32 %v344, %v623
      %v730 = vadd.f32 %v345, %v628
      %v731 = vadd.f32 %v346, %v631
      %v732 = vadd.f32 %v347, %v636
      %v733 = vadd.f32 %v348, %v639
      %v734 = vadd.f32 %v349, %v644
      %v735 = vadd.f32 %v350, %v647
      %v736 = vadd.f32 %v351, %v652
      %v737 = vadd.f32 %v352, %v655
      %v738 = vadd.f32 %v353, %v660
      %v739 = vadd.f32 %v354, %v663
      %v740 = vadd.f32 %v355, %v668
      %v741 = vadd.f32 %v356, %v671
      %v742 = vadd.f32 %v357, %v676
      %v743 = vadd.f32 %v358, %v679
      %v744 = vadd.f32 %v359, %v684
      %v745 = vadd.f32 %v360, %v687
      %v746 = vadd.f32 %v361, %v692
      %v747 = vadd.f32 %v362, %v695
      %v748 = vadd.f32 %v363, %v700
      %v749 = vadd.f32 %v364, %v703
      %v750 = vadd.f32 %v365, %v708
      %v751 = vadd.f32 %v366, %v711
      %v752 = vadd.f32 %v367, %v716
      %v753 = vadd.f32 %v368, %v719
      %754 = vst [vmem:[#allocation2] sm:$0xff] %v722
      %755 = vst [vmem:[#allocation2 + $0x8] sm:$0xff] %v723
      %756 = vst [vmem:[#allocation2 + $0x10] sm:$0xff] %v724
      %757 = vst [vmem:[#allocation2 + $0x18] sm:$0xff] %v725
      %758 = vst [vmem:[#allocation2 + $0x20] sm:$0xff] %v726
      %759 = vst [vmem:[#allocation2 + $0x28] sm:$0xff] %v727
      %760 = vst [vmem:[#allocation2 + $0x30] sm:$0xff] %v728
      %761 = vst [vmem:[#allocation2 + $0x38] sm:$0xff] %v729
      %762 = vst [vmem:[#allocation2 + $0x40] sm:$0xff] %v730
      %763 = vst [vmem:[#allocation2 + $0x48] sm:$0xff] %v731
      %764 = vst [vmem:[#allocation2 + $0x50] sm:$0xff] %v732
      %765 = vst [vmem:[#allocation2 + $0x58] sm:$0xff] %v733
      %766 = vst [vmem:[#allocation2 + $0x60] sm:$0xff] %v734
      %767 = vst [vmem:[#allocation2 + $0x68] sm:$0xff] %v735
      %768 = vst [vmem:[#allocation2 + $0x70] sm:$0xff] %v736
      %769 = vst [vmem:[#allocation2 + $0x78] sm:$0xff] %v737
      %770 = vst [vmem:[#allocation2 + $0x80] sm:$0xff] %v738
      %771 = vst [vmem:[#allocation2 + $0x88] sm:$0xff] %v739
      %772 = vst [vmem:[#allocation2 + $0x90] sm:$0xff] %v740
      %773 = vst [vmem:[#allocation2 + $0x98] sm:$0xff] %v741
      %774 = vst [vmem:[#allocation2 + $0xa0] sm:$0xff] %v742
      %775 = vst [vmem:[#allocation2 + $0xa8] sm:$0xff] %v743
      %776 = vst [vmem:[#allocation2 + $0xb0] sm:$0xff] %v744
      %777 = vst [vmem:[#allocation2 + $0xb8] sm:$0xff] %v745
      %778 = vst [vmem:[#allocation2 + $0xc0] sm:$0xff] %v746
      %779 = vst [vmem:[#allocation2 + $0xc8] sm:$0xff] %v747
      %780 = vst [vmem:[#allocation2 + $0xd0] sm:$0xff] %v748
      %781 = vst [vmem:[#allocation2 + $0xd8] sm:$0xff] %v749
      %782 = vst [vmem:[#allocation2 + $0xe0] sm:$0xff] %v750
      %783 = vst [vmem:[#allocation2 + $0xe8] sm:$0xff] %v751
      %784 = vst [vmem:[#allocation2 + $0xf0] sm:$0xff] %v752
      %785 = vst [vmem:[#allocation2 + $0xf8] sm:$0xff] %v753
      // Predicated region
      $region41: #{_lambda_.20} parent=35 // pred_check
        %p786 = pneg %p301
      $region42: #{_lambda_.20} parent=35 // pred_check_branch
        %788 = sbr.rel (%p786) target = $region44
      $region43: #{_lambda_.20} parent=35 // pred_region
        %v789 = vld [vmem:[#allocation2] sm:$0xff]
        %v790 = vld [vmem:[#allocation2 + $0x8] sm:$0xff]
        %v791 = vld [vmem:[#allocation2 + $0x10] sm:$0xff]
        %v792 = vld [vmem:[#allocation2 + $0x18] sm:$0xff]
        %v793 = vld [vmem:[#allocation2 + $0x20] sm:$0xff]
        %v794 = vld [vmem:[#allocation2 + $0x28] sm:$0xff]
        %v795 = vld [vmem:[#allocation2 + $0x30] sm:$0xff]
        %v796 = vld [vmem:[#allocation2 + $0x38] sm:$0xff]
        %v797 = vld [vmem:[#allocation2 + $0x40] sm:$0xff]
        %v798 = vld [vmem:[#allocation2 + $0x48] sm:$0xff]
        %v799 = vld [vmem:[#allocation2 + $0x50] sm:$0xff]
        %v800 = vld [vmem:[#allocation2 + $0x58] sm:$0xff]
        %v801 = vld [vmem:[#allocation2 + $0x60] sm:$0xff]
        %v802 = vld [vmem:[#allocation2 + $0x68] sm:$0xff]
        %v803 = vld [vmem:[#allocation2 + $0x70] sm:$0xff]
        %v804 = vld [vmem:[#allocation2 + $0x78] sm:$0xff]
        %v805 = vld [vmem:[#allocation2 + $0x80] sm:$0xff]
        %v806 = vld [vmem:[#allocation2 + $0x88] sm:$0xff]
        %v807 = vld [vmem:[#allocation2 + $0x90] sm:$0xff]
        %v808 = vld [vmem:[#allocation2 + $0x98] sm:$0xff]
        %v809 = vld [vmem:[#allocation2 + $0xa0] sm:$0xff]
        %v810 = vld [vmem:[#allocation2 + $0xa8] sm:$0xff]
        %v811 = vld [vmem:[#allocation2 + $0xb0] sm:$0xff]
        %v812 = vld [vmem:[#allocation2 + $0xb8] sm:$0xff]
        %v813 = vld [vmem:[#allocation2 + $0xc0] sm:$0xff]
        %v814 = vld [vmem:[#allocation2 + $0xc8] sm:$0xff]
        %v815 = vld [vmem:[#allocation2 + $0xd0] sm:$0xff]
        %v816 = vld [vmem:[#allocation2 + $0xd8] sm:$0xff]
        %v817 = vld [vmem:[#allocation2 + $0xe0] sm:$0xff]
        %v818 = vld [vmem:[#allocation2 + $0xe8] sm:$0xff]
        %v819 = vld [vmem:[#allocation2 + $0xf0] sm:$0xff]
        %v820 = vld [vmem:[#allocation2 + $0xf8] sm:$0xff]
        %v821 = vld [vmem:[%s287] sm:$0x1]
        %v823 = vlaneseq
        %v824 = vshrl.u32 %v823, 7
        %v825 = vsub.s32 0, %v824
        %v826 = vrot.slane %v821, %v825
        %v828 = vmul.f32 %v789, %v826
        %v829 = vmul.f32 %v790, %v826
        %v830 = vmul.f32 %v791, %v826
        %v831 = vmul.f32 %v792, %v826
        %v832 = vmul.f32 %v793, %v826
        %v833 = vmul.f32 %v794, %v826
        %v834 = vmul.f32 %v795, %v826
        %v835 = vmul.f32 %v796, %v826
        %v836 = vmul.f32 %v797, %v826
        %v837 = vmul.f32 %v798, %v826
        %v838 = vmul.f32 %v799, %v826
        %v839 = vmul.f32 %v800, %v826
        %v840 = vmul.f32 %v801, %v826
        %v841 = vmul.f32 %v802, %v826
        %v842 = vmul.f32 %v803, %v826
        %v843 = vmul.f32 %v804, %v826
        %v844 = vmul.f32 %v805, %v826
        %v845 = vmul.f32 %v806, %v826
        %v846 = vmul.f32 %v807, %v826
        %v847 = vmul.f32 %v808, %v826
        %v848 = vmul.f32 %v809, %v826
        %v849 = vmul.f32 %v810, %v826
        %v850 = vmul.f32 %v811, %v826
        %v851 = vmul.f32 %v812, %v826
        %v852 = vmul.f32 %v813, %v826
        %v853 = vmul.f32 %v814, %v826
        %v854 = vmul.f32 %v815, %v826
        %v855 = vmul.f32 %v816, %v826
        %v856 = vmul.f32 %v817, %v826
        %v857 = vmul.f32 %v818, %v826
        %v858 = vmul.f32 %v819, %v826
        %v859 = vmul.f32 %v820, %v826
        %v860 = vld [vmem:[%s290] sm:$0x1]
        %v862 = vlaneseq
        %v863 = vshrl.u32 %v862, 7
        %v864 = vsub.s32 0, %v863
        %v865 = vrot.slane %v860, %v864
        %v867 = vadd.f32 %v828, %v865
        %v868 = vadd.f32 %v829, %v865
        %v869 = vadd.f32 %v830, %v865
        %v870 = vadd.f32 %v831, %v865
        %v871 = vadd.f32 %v832, %v865
        %v872 = vadd.f32 %v833, %v865
        %v873 = vadd.f32 %v834, %v865
        %v874 = vadd.f32 %v835, %v865
        %v875 = vadd.f32 %v836, %v865
        %v876 = vadd.f32 %v837, %v865
        %v877 = vadd.f32 %v838, %v865
        %v878 = vadd.f32 %v839, %v865
        %v879 = vadd.f32 %v840, %v865
        %v880 = vadd.f32 %v841, %v865
        %v881 = vadd.f32 %v842, %v865
        %v882 = vadd.f32 %v843, %v865
        %v883 = vadd.f32 %v844, %v865
        %v884 = vadd.f32 %v845, %v865
        %v885 = vadd.f32 %v846, %v865
        %v886 = vadd.f32 %v847, %v865
        %v887 = vadd.f32 %v848, %v865
        %v888 = vadd.f32 %v849, %v865
        %v889 = vadd.f32 %v850, %v865
        %v890 = vadd.f32 %v851, %v865
        %v891 = vadd.f32 %v852, %v865
        %v892 = vadd.f32 %v853, %v865
        %v893 = vadd.f32 %v854, %v865
        %v894 = vadd.f32 %v855, %v865
        %v895 = vadd.f32 %v856, %v865
        %v896 = vadd.f32 %v857, %v865
        %v897 = vadd.f32 %v858, %v865
        %v898 = vadd.f32 %v859, %v865
        %899 = vst [vmem:[%s298] sm:$0xff] %v867
        %900 = vst [vmem:[%s298 + $0x8] sm:$0xff] %v868
        %901 = vst [vmem:[%s298 + $0x10] sm:$0xff] %v869
        %902 = vst [vmem:[%s298 + $0x18] sm:$0xff] %v870
        %903 = vst [vmem:[%s298 + $0x20] sm:$0xff] %v871
        %904 = vst [vmem:[%s298 + $0x28] sm:$0xff] %v872
        %905 = vst [vmem:[%s298 + $0x30] sm:$0xff] %v873
        %906 = vst [vmem:[%s298 + $0x38] sm:$0xff] %v874
        %907 = vst [vmem:[%s298 + $0x40] sm:$0xff] %v875
        %908 = vst [vmem:[%s298 + $0x48] sm:$0xff] %v876
        %909 = vst [vmem:[%s298 + $0x50] sm:$0xff] %v877
        %910 = vst [vmem:[%s298 + $0x58] sm:$0xff] %v878
        %911 = vst [vmem:[%s298 + $0x60] sm:$0xff] %v879
        %912 = vst [vmem:[%s298 + $0x68] sm:$0xff] %v880
        %913 = vst [vmem:[%s298 + $0x70] sm:$0xff] %v881
        %914 = vst [vmem:[%s298 + $0x78] sm:$0xff] %v882
        %915 = vst [vmem:[%s298 + $0x80] sm:$0xff] %v883
        %916 = vst [vmem:[%s298 + $0x88] sm:$0xff] %v884
        %917 = vst [vmem:[%s298 + $0x90] sm:$0xff] %v885
        %918 = vst [vmem:[%s298 + $0x98] sm:$0xff] %v886
        %919 = vst [vmem:[%s298 + $0xa0] sm:$0xff] %v887
        %920 = vst [vmem:[%s298 + $0xa8] sm:$0xff] %v888
        %921 = vst [vmem:[%s298 + $0xb0] sm:$0xff] %v889
        %922 = vst [vmem:[%s298 + $0xb8] sm:$0xff] %v890
        %923 = vst [vmem:[%s298 + $0xc0] sm:$0xff] %v891
        %924 = vst [vmem:[%s298 + $0xc8] sm:$0xff] %v892
        %925 = vst [vmem:[%s298 + $0xd0] sm:$0xff] %v893
        %926 = vst [vmem:[%s298 + $0xd8] sm:$0xff] %v894
        %927 = vst [vmem:[%s298 + $0xe0] sm:$0xff] %v895
        %928 = vst [vmem:[%s298 + $0xe8] sm:$0xff] %v896
        %929 = vst [vmem:[%s298 + $0xf0] sm:$0xff] %v897
        %930 = vst [vmem:[%s298 + $0xf8] sm:$0xff] %v898
      $region44: #{_lambda_.20} parent=35 // pred_fallthru
        _
      %s931 = smul.u32 32, %s20
      %p932 = scmp.lt.s32.totalorder %s931, 63
      %s933 = scalar_select %p932, %s931, 63
      %p934 = scmp.lt.s32.totalorder %s21, 0
      %s935 = scalar_select %p934, %s21, 0
      %s936 = sadd.s32 %s935, %s933
      %s937 = smul.addr %s936, 8
      %s938 = scalar_lea.vmem %s4, %s937
      // Predicated region
      $region45: #{_lambda_.20} parent=35 // pred_check
        %p939 = pneg %p162
      $region46: #{_lambda_.20} parent=35 // pred_check_branch
        %941 = sbr.rel (%p939) target = $region48
      $region47: #{_lambda_.20} parent=35 // pred_region
        %s942 = smul.u32 32, %s20
      $region48: #{_lambda_.20} parent=35 // pred_fallthru
        _
    $region36: #{_lambda_.20} parent=5 // pred_fallthru
      _
    %p943 = scmp.le.s32.totalorder 2, %s10
    // Predicated region
    $region49: #{_lambda_.20} parent=5 // pred_check
      %p944 = pneg %p943
    $region50: #{_lambda_.20} parent=5 // pred_check_branch
      %946 = sbr.rel (%p944) target = $region52
    $region51: #{_lambda_.20} parent=5 // pred_region
      %s947 = ssub.s32 %s10, 2
      // Predicated region
      $region53: #{_lambda_.20} parent=51 // pred_check
        %p948 = pneg %p168
      $region54: #{_lambda_.20} parent=51 // pred_check_branch
        %950 = sbr.rel (%p948) target = $region56
      $region55: #{_lambda_.20} parent=51 // pred_region
        %s951 = smul.u32 32, %s23
        %p952 = scmp.lt.s32.totalorder %s951, 63
        %s953 = scalar_select %p952, %s951, 63
        %p954 = scmp.lt.s32.totalorder %s24, 0
        %s955 = scalar_select %p954, %s24, 0
        %s956 = sadd.s32 %s955, %s953
        %s957 = smul.addr %s956, 8
        %s958 = scalar_lea.vmem %s4, %s957
      $region56: #{_lambda_.20} parent=51 // pred_fallthru
        _
    $region52: #{_lambda_.20} parent=5 // pred_fallthru
      _
  $region6: #{_lambda_.20} parent=0 // loop_footer
    %s14 = sadd.s32 1, %s10
  $region7: #{_lambda_.20} parent=0 // loop_footer_branch
    %9 = sbr.rel target = $region3
  $region8: #{_lambda_.20} parent=0 // loop_exit
    _

// kernel: _lambda_.21
$region0: #{_lambda_.21}
  #allocation0 [shape = 'u32[]', space=smem, size = 0x4, offset = 0x4, fixed_abs, tag = 'smem constant byte address 0x4 - core index']
  #allocation1 [shape = 'u32[144,128]{1,0:T(1,128)}', space=vmem, size = 0x12000, scoped, tag = 'internal scratch']
  %s0 = inlined_call_operand.vmem [shape: f32[8,1536], index: 0, kind: input, shape index: {}]
  %s1 = inlined_call_operand.vmem [shape: f32[4,1536], index: 1, kind: input, shape index: {}]
  %s2 = inlined_call_operand.vmem [shape: f32[8,1536], index: 2, kind: output, shape index: {}]
  %s3 = sld [smem:[#allocation0]]
  $region18: #{_lambda_.21} parent=0
    _
  %s5 = ssub.s32 1, %s3
  %s6 = scalar_select 0, %s5, %s3
  // Predicated region
  $region2: #{_lambda_.21} parent=0 // pred_check
    _
  $region3: #{_lambda_.21} parent=0 // pred_check_branch
    %8 = sbr.rel (0) target = $region5
  $region4: #{_lambda_.21} parent=0 // pred_region
    _
  $region5: #{_lambda_.21} parent=0 // pred_fallthru
    _
  // Predicated region
  $region6: #{_lambda_.21} parent=0 // pred_check
    _
  $region7: #{_lambda_.21} parent=0 // pred_check_branch
    %10 = sbr.rel (0) target = $region9
  $region8: #{_lambda_.21} parent=0 // pred_region
    _
  $region9: #{_lambda_.21} parent=0 // pred_fallthru
    _
  %v11 = vld [vmem:[%s0] sm:$0xff]
  %v12 = vld [vmem:[%s0 + $0x8] sm:$0xff]
  %v13 = vld [vmem:[%s0 + $0x10] sm:$0xff]
  %v14 = vld [vmem:[%s0 + $0x18] sm:$0xff]
  %v15 = vld [vmem:[%s0 + $0x20] sm:$0xff]
  %v16 = vld [vmem:[%s0 + $0x28] sm:$0xff]
  %v17 = vld [vmem:[%s0 + $0x30] sm:$0xff]
  %v18 = vld [vmem:[%s0 + $0x38] sm:$0xff]
  %v19 = vld [vmem:[%s0 + $0x40] sm:$0xff]
  %v20 = vld [vmem:[%s0 + $0x48] sm:$0xff]
  %v21 = vld [vmem:[%s0 + $0x50] sm:$0xff]
  %v22 = vld [vmem:[%s0 + $0x58] sm:$0xff]
  %v23 = vld [vmem:[%s1] sm:$0xff]
  %v24 = vld [vmem:[%s1 + $0x8] sm:$0xff]
  %v25 = vld [vmem:[%s1 + $0x10] sm:$0xff]
  %v26 = vld [vmem:[%s1 + $0x18] sm:$0xff]
  %v27 = vld [vmem:[%s1 + $0x20] sm:$0xff]
  %v28 = vld [vmem:[%s1 + $0x28] sm:$0xff]
  %v29 = vxor.u32 %v11, 2147483648
  %v30 = vxor.u32 %v12, 2147483648
  %v31 = vxor.u32 %v13, 2147483648
  %v32 = vxor.u32 %v14, 2147483648
  %v33 = vxor.u32 %v15, 2147483648
  %v34 = vxor.u32 %v16, 2147483648
  %v35 = vxor.u32 %v17, 2147483648
  %v36 = vxor.u32 %v18, 2147483648
  %v37 = vxor.u32 %v19, 2147483648
  %v38 = vxor.u32 %v20, 2147483648
  %v39 = vxor.u32 %v21, 2147483648
  %v40 = vxor.u32 %v22, 2147483648
  %v41 = vmul.f32 %v29, 1.442695
  %v42 = vpow.pop %v41
  %v43 = vmul.f32 %v30, 1.442695
  %v44 = vpow.pop %v43
  %v45 = vmul.f32 %v31, 1.442695
  %v46 = vpow.pop %v45
  %v47 = vmul.f32 %v32, 1.442695
  %v48 = vpow.pop %v47
  %v49 = vmul.f32 %v33, 1.442695
  %v50 = vpow.pop %v49
  %v51 = vmul.f32 %v34, 1.442695
  %v52 = vpow.pop %v51
  %v53 = vmul.f32 %v35, 1.442695
  %v54 = vpow.pop %v53
  %v55 = vmul.f32 %v36, 1.442695
  %v56 = vpow.pop %v55
  %v57 = vmul.f32 %v37, 1.442695
  %v58 = vpow.pop %v57
  %v59 = vmul.f32 %v38, 1.442695
  %v60 = vpow.pop %v59
  %v61 = vmul.f32 %v39, 1.442695
  %v62 = vpow.pop %v61
  %v63 = vmul.f32 %v40, 1.442695
  %v64 = vpow.pop %v63
  %v65 = vadd.f32 %v42, 1.0
  %v66 = vadd.f32 %v44, 1.0
  %v67 = vadd.f32 %v46, 1.0
  %v68 = vadd.f32 %v48, 1.0
  %v69 = vadd.f32 %v50, 1.0
  %v70 = vadd.f32 %v52, 1.0
  %v71 = vadd.f32 %v54, 1.0
  %v72 = vadd.f32 %v56, 1.0
  %v73 = vadd.f32 %v58, 1.0
  %v74 = vadd.f32 %v60, 1.0
  %v75 = vadd.f32 %v62, 1.0
  %v76 = vadd.f32 %v64, 1.0
  %v77 = vrcp.pop %v65
  %v78 = vmul.f32 1.0, %v77
  %v79 = vrcp.pop %v66
  %v80 = vmul.f32 1.0, %v79
  %v81 = vrcp.pop %v67
  %v82 = vmul.f32 1.0, %v81
  %v83 = vrcp.pop %v68
  %v84 = vmul.f32 1.0, %v83
  %v85 = vrcp.pop %v69
  %v86 = vmul.f32 1.0, %v85
  %v87 = vrcp.pop %v70
  %v88 = vmul.f32 1.0, %v87
  %v89 = vrcp.pop %v71
  %v90 = vmul.f32 1.0, %v89
  %v91 = vrcp.pop %v72
  %v92 = vmul.f32 1.0, %v91
  %v93 = vrcp.pop %v73
  %v94 = vmul.f32 1.0, %v93
  %v95 = vrcp.pop %v74
  %v96 = vmul.f32 1.0, %v95
  %v97 = vrcp.pop %v75
  %v98 = vmul.f32 1.0, %v97
  %v99 = vrcp.pop %v76
  %v100 = vmul.f32 1.0, %v99
  %v107 = vcombine.high %v23, %v23
  %v108 = vcombine.high %v24, %v24
  %v109 = vcombine.high %v25, %v25
  %v110 = vcombine.high %v26, %v26
  %v111 = vcombine.high %v27, %v27
  %v112 = vcombine.high %v28, %v28
  %v119 = vadd.f32 %v78, %v23
  %v120 = vadd.f32 %v80, %v107
  %v121 = vadd.f32 %v82, %v24
  %v122 = vadd.f32 %v84, %v108
  %v123 = vadd.f32 %v86, %v25
  %v124 = vadd.f32 %v88, %v109
  %v125 = vadd.f32 %v90, %v26
  %v126 = vadd.f32 %v92, %v110
  %v127 = vadd.f32 %v94, %v27
  %v128 = vadd.f32 %v96, %v111
  %v129 = vadd.f32 %v98, %v28
  %v130 = vadd.f32 %v100, %v112
  %v131 = vmul.f32 %v119, 2.0
  %v132 = vmul.f32 %v120, 2.0
  %v133 = vmul.f32 %v121, 2.0
  %v134 = vmul.f32 %v122, 2.0
  %v135 = vmul.f32 %v123, 2.0
  %v136 = vmul.f32 %v124, 2.0
  %v137 = vmul.f32 %v125, 2.0
  %v138 = vmul.f32 %v126, 2.0
  %v139 = vmul.f32 %v127, 2.0
  %v140 = vmul.f32 %v128, 2.0
  %v141 = vmul.f32 %v129, 2.0
  %v142 = vmul.f32 %v130, 2.0
  %143 = vst [vmem:[%s2] sm:$0x3] %v131
  %144 = vst [vmem:[%s2 + $0x8] sm:$0x3] %v132
  %145 = vst [vmem:[%s2 + $0x10] sm:$0x3] %v133
  %146 = vst [vmem:[%s2 + $0x18] sm:$0x3] %v134
  %147 = vst [vmem:[%s2 + $0x20] sm:$0x3] %v135
  %148 = vst [vmem:[%s2 + $0x28] sm:$0x3] %v136
  %149 = vst [vmem:[%s2 + $0x30] sm:$0x3] %v137
  %150 = vst [vmem:[%s2 + $0x38] sm:$0x3] %v138
  %151 = vst [vmem:[%s2 + $0x40] sm:$0x3] %v139
  %152 = vst [vmem:[%s2 + $0x48] sm:$0x3] %v140
  %153 = vst [vmem:[%s2 + $0x50] sm:$0x3] %v141
  %154 = vst [vmem:[%s2 + $0x58] sm:$0x3] %v142
  %v155 = vmul.f32 %v11, 1.442695
  %v156 = vpow.pop %v155
  %v157 = vmul.f32 %v12, 1.442695
  %v158 = vpow.pop %v157
  %v159 = vmul.f32 %v13, 1.442695
  %v160 = vpow.pop %v159
  %v161 = vmul.f32 %v14, 1.442695
  %v162 = vpow.pop %v161
  %v163 = vmul.f32 %v15, 1.442695
  %v164 = vpow.pop %v163
  %v165 = vmul.f32 %v16, 1.442695
  %v166 = vpow.pop %v165
  %v167 = vmul.f32 %v17, 1.442695
  %v168 = vpow.pop %v167
  %v169 = vmul.f32 %v18, 1.442695
  %v170 = vpow.pop %v169
  %v171 = vmul.f32 %v19, 1.442695
  %v172 = vpow.pop %v171
  %v173 = vmul.f32 %v20, 1.442695
  %v174 = vpow.pop %v173
  %v175 = vmul.f32 %v21, 1.442695
  %v176 = vpow.pop %v175
  %v177 = vmul.f32 %v22, 1.442695
  %v178 = vpow.pop %v177
  %v179 = vmul.f32 %v156, %v23
  %v180 = vmul.f32 %v158, %v107
  %v181 = vmul.f32 %v160, %v24
  %v182 = vmul.f32 %v162, %v108
  %v183 = vmul.f32 %v164, %v25
  %v184 = vmul.f32 %v166, %v109
  %v185 = vmul.f32 %v168, %v26
  %v186 = vmul.f32 %v170, %v110
  %v187 = vmul.f32 %v172, %v27
  %v188 = vmul.f32 %v174, %v111
  %v189 = vmul.f32 %v176, %v28
  %v190 = vmul.f32 %v178, %v112
  %v191 = vmul.f32 %v179, 2.0
  %v192 = vmul.f32 %v180, 2.0
  %v193 = vmul.f32 %v181, 2.0
  %v194 = vmul.f32 %v182, 2.0
  %v195 = vmul.f32 %v183, 2.0
  %v196 = vmul.f32 %v184, 2.0
  %v197 = vmul.f32 %v185, 2.0
  %v198 = vmul.f32 %v186, 2.0
  %v199 = vmul.f32 %v187, 2.0
  %v200 = vmul.f32 %v188, 2.0
  %v201 = vmul.f32 %v189, 2.0
  %v202 = vmul.f32 %v190, 2.0
  %203 = vst [vmem:[%s2] sm:$0xc] %v191
  %204 = vst [vmem:[%s2 + $0x8] sm:$0xc] %v192
  %205 = vst [vmem:[%s2 + $0x10] sm:$0xc] %v193
  %206 = vst [vmem:[%s2 + $0x18] sm:$0xc] %v194
  %207 = vst [vmem:[%s2 + $0x20] sm:$0xc] %v195
  %208 = vst [vmem:[%s2 + $0x28] sm:$0xc] %v196
  %209 = vst [vmem:[%s2 + $0x30] sm:$0xc] %v197
  %210 = vst [vmem:[%s2 + $0x38] sm:$0xc] %v198
  %211 = vst [vmem:[%s2 + $0x40] sm:$0xc] %v199
  %212 = vst [vmem:[%s2 + $0x48] sm:$0xc] %v200
  %213 = vst [vmem:[%s2 + $0x50] sm:$0xc] %v201
  %214 = vst [vmem:[%s2 + $0x58] sm:$0xc] %v202
  %s215 = scalar_lea.vmem %s2, 4
  %216 = vst [vmem:[%s215] ss:$8 sm:$0xf] 0.0
  %217 = vst [vmem:[%s215] ss:$8 sm:$0xf0] 0.0
  %v218 = vlaneseq
  %vm219 = vcmp.ge.s32.totalorder %v218, 0
  %vm220 = vcmp.lt.s32.totalorder %v218, 512
  %vm221 = vmand %vm219, %vm220
  %s222 = scalar_lea.vmem %s2, 68
  %223 = vst.msk [vmem:[%s222] ss:$8 sm:$0xf] %vm221, 0.0
  %224 = vst.msk [vmem:[%s222] ss:$8 sm:$0x0] %vm221, 0.0
  %225 = vst [vmem:[%s2] sm:$0xe0] %v78
  %226 = vst [vmem:[%s2 + $0x8] sm:$0xe0] %v80
  %227 = vst [vmem:[%s2 + $0x10] sm:$0xe0] %v82
  %228 = vst [vmem:[%s2 + $0x18] sm:$0xe0] %v84
  %229 = vst [vmem:[%s2 + $0x20] sm:$0xe0] %v86
  %230 = vst [vmem:[%s2 + $0x28] sm:$0xe0] %v88
  %231 = vst [vmem:[%s2 + $0x30] sm:$0xe0] %v90
  %232 = vst [vmem:[%s2 + $0x38] sm:$0xe0] %v92
  %233 = vst [vmem:[%s2 + $0x40] sm:$0xe0] %v94
  %234 = vst [vmem:[%s2 + $0x48] sm:$0xe0] %v96
  %235 = vst [vmem:[%s2 + $0x50] sm:$0xe0] %v98
  %236 = vst [vmem:[%s2 + $0x58] sm:$0xe0] %v100
  // Predicated region
  $region10: #{_lambda_.21} parent=0 // pred_check
    _
  $region11: #{_lambda_.21} parent=0 // pred_check_branch
    %238 = sbr.rel (0) target = $region13
  $region12: #{_lambda_.21} parent=0 // pred_region
    _
  $region13: #{_lambda_.21} parent=0 // pred_fallthru
    _
  // Predicated region
  $region14: #{_lambda_.21} parent=0 // pred_check
    _
  $region15: #{_lambda_.21} parent=0 // pred_check_branch
    %240 = sbr.rel (0) target = $region17
  $region16: #{_lambda_.21} parent=0 // pred_region
    _
  $region17: #{_lambda_.21} parent=0 // pred_fallthru
    _

// kernel: _lambda_.18
$region0: #{_lambda_.18}
  #allocation0 [shape = 'u32[]', space=smem, size = 0x4, offset = 0x4, fixed_abs, tag = 'smem constant byte address 0x4 - core index']
  #allocation1 [shape = 'u32[144,128]{1,0:T(1,128)}', space=vmem, size = 0x12000, scoped, tag = 'internal scratch']
  #allocation2 [shape = 'f32[128,128]{1,0:T(8,128)}', space=vmem, size = 0x10000, scoped, tag = 'scratch operand']
  %s0 = inlined_call_operand.vmem [shape: bf16[128,128], index: 0, kind: input, shape index: {}]
  %s1 = inlined_call_operand.vmem [shape: bf16[128,128], index: 1, kind: input, shape index: {}]
  %s2 = inlined_call_operand.vmem [shape: f32[1,128], index: 2, kind: input, shape index: {}]
  %s3 = inlined_call_operand.vmem [shape: f32[1,128], index: 3, kind: input, shape index: {}]
  %s4 = inlined_call_operand.vmem [shape: f32[128,128], index: 4, kind: output, shape index: {}]
  %s5 = sld [smem:[#allocation0]]
  $region34: #{_lambda_.18} parent=0
    _
  %s7 = ssub.s32 1, %s5
  %s8 = scalar_select 0, %s7, %s5
  // Predicated region
  $region2: #{_lambda_.18} parent=0 // pred_check
    _
  $region3: #{_lambda_.18} parent=0 // pred_check_branch
    %10 = sbr.rel (0) target = $region5
  $region4: #{_lambda_.18} parent=0 // pred_region
    _
  $region5: #{_lambda_.18} parent=0 // pred_fallthru
    _
  // Predicated region
  $region6: #{_lambda_.18} parent=0 // pred_check
    _
  $region7: #{_lambda_.18} parent=0 // pred_check_branch
    %12 = sbr.rel (0) target = $region9
  $region8: #{_lambda_.18} parent=0 // pred_region
    _
  $region9: #{_lambda_.18} parent=0 // pred_fallthru
    _
  // Predicated region
  $region10: #{_lambda_.18} parent=0 // pred_check
    _
  $region11: #{_lambda_.18} parent=0 // pred_check_branch
    %14 = sbr.rel (0) target = $region13
  $region12: #{_lambda_.18} parent=0 // pred_region
    _
  $region13: #{_lambda_.18} parent=0 // pred_fallthru
    _
  // Predicated region
  $region14: #{_lambda_.18} parent=0 // pred_check
    _
  $region15: #{_lambda_.18} parent=0 // pred_check_branch
    %16 = sbr.rel (0) target = $region17
  $region16: #{_lambda_.18} parent=0 // pred_region
    _
  $region17: #{_lambda_.18} parent=0 // pred_fallthru
    _
  %p18 = scmp.eq.s32.totalorder 0, 0
  // Predicated region
  $region18: #{_lambda_.18} parent=0 // pred_check
    %p19 = pneg %p18
  $region19: #{_lambda_.18} parent=0 // pred_check_branch
    %21 = sbr.rel (%p19) target = $region21
  $region20: #{_lambda_.18} parent=0 // pred_region
    %22 = vst [vmem:[#allocation2] sm:$0xff] 0.0
    %23 = vst [vmem:[#allocation2 + $0x8] sm:$0xff] 0.0
    %24 = vst [vmem:[#allocation2 + $0x10] sm:$0xff] 0.0
    %25 = vst [vmem:[#allocation2 + $0x18] sm:$0xff] 0.0
    %26 = vst [vmem:[#allocation2 + $0x20] sm:$0xff] 0.0
    %27 = vst [vmem:[#allocation2 + $0x28] sm:$0xff] 0.0
    %28 = vst [vmem:[#allocation2 + $0x30] sm:$0xff] 0.0
    %29 = vst [vmem:[#allocation2 + $0x38] sm:$0xff] 0.0
    %30 = vst [vmem:[#allocation2 + $0x40] sm:$0xff] 0.0
    %31 = vst [vmem:[#allocation2 + $0x48] sm:$0xff] 0.0
    %32 = vst [vmem:[#allocation2 + $0x50] sm:$0xff] 0.0
    %33 = vst [vmem:[#allocation2 + $0x58] sm:$0xff] 0.0
    %34 = vst [vmem:[#allocation2 + $0x60] sm:$0xff] 0.0
    %35 = vst [vmem:[#allocation2 + $0x68] sm:$0xff] 0.0
    %36 = vst [vmem:[#allocation2 + $0x70] sm:$0xff] 0.0
    %37 = vst [vmem:[#allocation2 + $0x78] sm:$0xff] 0.0
  $region21: #{_lambda_.18} parent=0 // pred_fallthru
    _
  %v38 = vld [vmem:[#allocation2] sm:$0xff]
  %v39 = vld [vmem:[#allocation2 + $0x8] sm:$0xff]
  %v40 = vld [vmem:[#allocation2 + $0x10] sm:$0xff]
  %v41 = vld [vmem:[#allocation2 + $0x18] sm:$0xff]
  %v42 = vld [vmem:[#allocation2 + $0x20] sm:$0xff]
  %v43 = vld [vmem:[#allocation2 + $0x28] sm:$0xff]
  %v44 = vld [vmem:[#allocation2 + $0x30] sm:$0xff]
  %v45 = vld [vmem:[#allocation2 + $0x38] sm:$0xff]
  %v46 = vld [vmem:[#allocation2 + $0x40] sm:$0xff]
  %v47 = vld [vmem:[#allocation2 + $0x48] sm:$0xff]
  %v48 = vld [vmem:[#allocation2 + $0x50] sm:$0xff]
  %v49 = vld [vmem:[#allocation2 + $0x58] sm:$0xff]
  %v50 = vld [vmem:[#allocation2 + $0x60] sm:$0xff]
  %v51 = vld [vmem:[#allocation2 + $0x68] sm:$0xff]
  %v52 = vld [vmem:[#allocation2 + $0x70] sm:$0xff]
  %v53 = vld [vmem:[#allocation2 + $0x78] sm:$0xff]
  %v54 = vld [vmem:[%s0] sm:$0xf]
  %v55 = vld [vmem:[%s0 + $0x4] sm:$0xf]
  %v56 = vld [vmem:[%s0 + $0x8] sm:$0xf]
  %v57 = vld [vmem:[%s0 + $0xc] sm:$0xf]
  %v58 = vld [vmem:[%s0 + $0x10] sm:$0xf]
  %v59 = vld [vmem:[%s0 + $0x14] sm:$0xf]
  %v60 = vld [vmem:[%s0 + $0x18] sm:$0xf]
  %v61 = vld [vmem:[%s0 + $0x1c] sm:$0xf]
  %v62 = vld [vmem:[%s0 + $0x20] sm:$0xf]
  %v63 = vld [vmem:[%s0 + $0x24] sm:$0xf]
  %v64 = vld [vmem:[%s0 + $0x28] sm:$0xf]
  %v65 = vld [vmem:[%s0 + $0x2c] sm:$0xf]
  %v66 = vld [vmem:[%s0 + $0x30] sm:$0xf]
  %v67 = vld [vmem:[%s0 + $0x34] sm:$0xf]
  %v68 = vld [vmem:[%s0 + $0x38] sm:$0xf]
  %v69 = vld [vmem:[%s0 + $0x3c] sm:$0xf]
  %v70 = vld [vmem:[%s1] sm:$0xf]
  %v71 = vld [vmem:[%s1 + $0x4] sm:$0xf]
  %v72 = vld [vmem:[%s1 + $0x8] sm:$0xf]
  %v73 = vld [vmem:[%s1 + $0xc] sm:$0xf]
  %v74 = vld [vmem:[%s1 + $0x10] sm:$0xf]
  %v75 = vld [vmem:[%s1 + $0x14] sm:$0xf]
  %v76 = vld [vmem:[%s1 + $0x18] sm:$0xf]
  %v77 = vld [vmem:[%s1 + $0x1c] sm:$0xf]
  %v78 = vld [vmem:[%s1 + $0x20] sm:$0xf]
  %v79 = vld [vmem:[%s1 + $0x24] sm:$0xf]
  %v80 = vld [vmem:[%s1 + $0x28] sm:$0xf]
  %v81 = vld [vmem:[%s1 + $0x2c] sm:$0xf]
  %v82 = vld [vmem:[%s1 + $0x30] sm:$0xf]
  %v83 = vld [vmem:[%s1 + $0x34] sm:$0xf]
  %v84 = vld [vmem:[%s1 + $0x38] sm:$0xf]
  %v85 = vld [vmem:[%s1 + $0x3c] sm:$0xf]
  %v102 = vunpack.c.l.b16 %v54
  %v103 = vunpack.c.l.b16 %v55
  %v104 = vunpack.c.l.b16 %v56
  %v105 = vunpack.c.l.b16 %v57
  %v106 = vunpack.c.l.b16 %v58
  %v107 = vunpack.c.l.b16 %v59
  %v108 = vunpack.c.l.b16 %v60
  %v109 = vunpack.c.l.b16 %v61
  %v110 = vunpack.c.l.b16 %v62
  %v111 = vunpack.c.l.b16 %v63
  %v112 = vunpack.c.l.b16 %v64
  %v113 = vunpack.c.l.b16 %v65
  %v114 = vunpack.c.l.b16 %v66
  %v115 = vunpack.c.l.b16 %v67
  %v116 = vunpack.c.l.b16 %v68
  %v117 = vunpack.c.l.b16 %v69
  %v118 = vpack.c.b16 %v103, %v102
  %v119 = vpack.c.b16 %v105, %v104
  %v120 = vpack.c.b16 %v107, %v106
  %v121 = vpack.c.b16 %v109, %v108
  %v122 = vpack.c.b16 %v111, %v110
  %v123 = vpack.c.b16 %v113, %v112
  %v124 = vpack.c.b16 %v115, %v114
  %v125 = vpack.c.b16 %v117, %v116
  %v150 = vunpack.c.l.b16 %v70
  %v151 = vunpack.c.l.b16 %v71
  %v152 = vunpack.c.l.b16 %v72
  %v153 = vunpack.c.l.b16 %v73
  %v154 = vunpack.c.l.b16 %v74
  %v155 = vunpack.c.l.b16 %v75
  %v156 = vunpack.c.l.b16 %v76
  %v157 = vunpack.c.l.b16 %v77
  %v158 = vunpack.c.l.b16 %v78
  %v159 = vunpack.c.l.b16 %v79
  %v160 = vunpack.c.l.b16 %v80
  %v161 = vunpack.c.l.b16 %v81
  %v162 = vunpack.c.l.b16 %v82
  %v163 = vunpack.c.l.b16 %v83
  %v164 = vunpack.c.l.b16 %v84
  %v165 = vunpack.c.l.b16 %v85
  %v166 = vpack.c.b16 %v151, %v150
  %v167 = vpack.c.b16 %v153, %v152
  %v168 = vpack.c.b16 %v155, %v154
  %v169 = vpack.c.b16 %v157, %v156
  %v170 = vpack.c.b16 %v159, %v158
  %v171 = vpack.c.b16 %v161, %v160
  %v172 = vpack.c.b16 %v163, %v162
  %v173 = vpack.c.b16 %v165, %v164
  %182 = vmatprep.subr.bf16.mxu0 0
  %183 = vmatpush1.bf16.msra.mxu0 %v173
  %184 = vmatprep.subr.bf16.mxu0 0
  %185 = vmatpush1.bf16.msra.mxu0 %v172
  %186 = vmatprep.subr.bf16.mxu0 0
  %187 = vmatpush1.bf16.msra.mxu0 %v171
  %188 = vmatprep.subr.bf16.mxu0 0
  %189 = vmatpush1.bf16.msra.mxu0 %v170
  %190 = vmatprep.subr.bf16.mxu0 0
  %191 = vmatpush1.bf16.msra.mxu0 %v169
  %192 = vmatprep.subr.bf16.mxu0 0
  %193 = vmatpush1.bf16.msra.mxu0 %v168
  %194 = vmatprep.subr.bf16.mxu0 0
  %195 = vmatpush1.bf16.msra.mxu0 %v167
  %196 = vmatprep.subr.bf16.mxu0 0
  %197 = vmatpush1.bf16.msra.mxu0 %v166
  %198 = vmatprep.subr.bf16.mxu0 0
  %199 = vmatpush2.bf16.msra.mxu0 0
  %200 = vmatprep.subr.bf16.mxu0 0
  %201 = vmatpush2.bf16.msra.mxu0 0
  %202 = vmatprep.subr.bf16.mxu0 0
  %203 = vmatpush2.bf16.msra.mxu0 0
  %204 = vmatprep.subr.bf16.mxu0 0
  %205 = vmatpush2.bf16.msra.mxu0 0
  %206 = vmatprep.subr.bf16.mxu0 0
  %207 = vmatpush2.bf16.msra.mxu0 0
  %208 = vmatprep.subr.bf16.mxu0 0
  %209 = vmatpush2.bf16.msra.mxu0 0
  %210 = vmatprep.subr.bf16.mxu0 0
  %211 = vmatpush2.bf16.msra.mxu0 0
  %212 = vmatprep.subr.bf16.mxu0 0
  %213 = vmatpush2.bf16.msra.mxu0 0
  %214 = vmatprep.mubr.bf16.mxu0 0
  %215 = vmatmul.mubr.bf16.gmra.mxu0 %v118
  %v216 = vpop.f32.mrf.mxu0
  %v217 = vadd.f32 0.0, %v216
  %v218 = vpop.f32.mrf.mxu0
  %v219 = vpop.f32.mrf.mxu0
  %v220 = vadd.f32 0.0, %v219
  %v221 = vpop.f32.mrf.mxu0
  %222 = vmatprep.mubr.bf16.mxu0 0
  %223 = vmatmul.mubr.bf16.gmra.mxu0 %v119
  %v224 = vpop.f32.mrf.mxu0
  %v225 = vadd.f32 0.0, %v224
  %v226 = vpop.f32.mrf.mxu0
  %v227 = vpop.f32.mrf.mxu0
  %v228 = vadd.f32 0.0, %v227
  %v229 = vpop.f32.mrf.mxu0
  %230 = vmatprep.mubr.bf16.mxu0 0
  %231 = vmatmul.mubr.bf16.gmra.mxu0 %v120
  %v232 = vpop.f32.mrf.mxu0
  %v233 = vadd.f32 0.0, %v232
  %v234 = vpop.f32.mrf.mxu0
  %v235 = vpop.f32.mrf.mxu0
  %v236 = vadd.f32 0.0, %v235
  %v237 = vpop.f32.mrf.mxu0
  %238 = vmatprep.mubr.bf16.mxu0 0
  %239 = vmatmul.mubr.bf16.gmra.mxu0 %v121
  %v240 = vpop.f32.mrf.mxu0
  %v241 = vadd.f32 0.0, %v240
  %v242 = vpop.f32.mrf.mxu0
  %v243 = vpop.f32.mrf.mxu0
  %v244 = vadd.f32 0.0, %v243
  %v245 = vpop.f32.mrf.mxu0
  %246 = vmatprep.mubr.bf16.mxu0 0
  %247 = vmatmul.mubr.bf16.gmra.mxu0 %v122
  %v248 = vpop.f32.mrf.mxu0
  %v249 = vadd.f32 0.0, %v248
  %v250 = vpop.f32.mrf.mxu0
  %v251 = vpop.f32.mrf.mxu0
  %v252 = vadd.f32 0.0, %v251
  %v253 = vpop.f32.mrf.mxu0
  %254 = vmatprep.mubr.bf16.mxu0 0
  %255 = vmatmul.mubr.bf16.gmra.mxu0 %v123
  %v256 = vpop.f32.mrf.mxu0
  %v257 = vadd.f32 0.0, %v256
  %v258 = vpop.f32.mrf.mxu0
  %v259 = vpop.f32.mrf.mxu0
  %v260 = vadd.f32 0.0, %v259
  %v261 = vpop.f32.mrf.mxu0
  %262 = vmatprep.mubr.bf16.mxu0 0
  %263 = vmatmul.mubr.bf16.gmra.mxu0 %v124
  %v264 = vpop.f32.mrf.mxu0
  %v265 = vadd.f32 0.0, %v264
  %v266 = vpop.f32.mrf.mxu0
  %v267 = vpop.f32.mrf.mxu0
  %v268 = vadd.f32 0.0, %v267
  %v269 = vpop.f32.mrf.mxu0
  %270 = vmatprep.mubr.bf16.mxu0 0
  %271 = vmatmul.mubr.bf16.gmra.mxu0 %v125
  %v272 = vpop.f32.mrf.mxu0
  %v273 = vadd.f32 0.0, %v272
  %v274 = vpop.f32.mrf.mxu0
  %v275 = vpop.f32.mrf.mxu0
  %v276 = vadd.f32 0.0, %v275
  %v277 = vpop.f32.mrf.mxu0
  %278 = vdwg.mxu0
  %v279 = vadd.f32 %v38, %v217
  %v280 = vadd.f32 %v39, %v220
  %v281 = vadd.f32 %v40, %v225
  %v282 = vadd.f32 %v41, %v228
  %v283 = vadd.f32 %v42, %v233
  %v284 = vadd.f32 %v43, %v236
  %v285 = vadd.f32 %v44, %v241
  %v286 = vadd.f32 %v45, %v244
  %v287 = vadd.f32 %v46, %v249
  %v288 = vadd.f32 %v47, %v252
  %v289 = vadd.f32 %v48, %v257
  %v290 = vadd.f32 %v49, %v260
  %v291 = vadd.f32 %v50, %v265
  %v292 = vadd.f32 %v51, %v268
  %v293 = vadd.f32 %v52, %v273
  %v294 = vadd.f32 %v53, %v276
  %295 = vst [vmem:[#allocation2] sm:$0xff] %v279
  %296 = vst [vmem:[#allocation2 + $0x8] sm:$0xff] %v280
  %297 = vst [vmem:[#allocation2 + $0x10] sm:$0xff] %v281
  %298 = vst [vmem:[#allocation2 + $0x18] sm:$0xff] %v282
  %299 = vst [vmem:[#allocation2 + $0x20] sm:$0xff] %v283
  %300 = vst [vmem:[#allocation2 + $0x28] sm:$0xff] %v284
  %301 = vst [vmem:[#allocation2 + $0x30] sm:$0xff] %v285
  %302 = vst [vmem:[#allocation2 + $0x38] sm:$0xff] %v286
  %303 = vst [vmem:[#allocation2 + $0x40] sm:$0xff] %v287
  %304 = vst [vmem:[#allocation2 + $0x48] sm:$0xff] %v288
  %305 = vst [vmem:[#allocation2 + $0x50] sm:$0xff] %v289
  %306 = vst [vmem:[#allocation2 + $0x58] sm:$0xff] %v290
  %307 = vst [vmem:[#allocation2 + $0x60] sm:$0xff] %v291
  %308 = vst [vmem:[#allocation2 + $0x68] sm:$0xff] %v292
  %309 = vst [vmem:[#allocation2 + $0x70] sm:$0xff] %v293
  %310 = vst [vmem:[#allocation2 + $0x78] sm:$0xff] %v294
  // Predicated region
  $region22: #{_lambda_.18} parent=0 // pred_check
    %p311 = pneg %p18
  $region23: #{_lambda_.18} parent=0 // pred_check_branch
    %313 = sbr.rel (%p311) target = $region25
  $region24: #{_lambda_.18} parent=0 // pred_region
    %v314 = vld [vmem:[#allocation2] sm:$0xff]
    %v315 = vld [vmem:[#allocation2 + $0x8] sm:$0xff]
    %v316 = vld [vmem:[#allocation2 + $0x10] sm:$0xff]
    %v317 = vld [vmem:[#allocation2 + $0x18] sm:$0xff]
    %v318 = vld [vmem:[#allocation2 + $0x20] sm:$0xff]
    %v319 = vld [vmem:[#allocation2 + $0x28] sm:$0xff]
    %v320 = vld [vmem:[#allocation2 + $0x30] sm:$0xff]
    %v321 = vld [vmem:[#allocation2 + $0x38] sm:$0xff]
    %v322 = vld [vmem:[#allocation2 + $0x40] sm:$0xff]
    %v323 = vld [vmem:[#allocation2 + $0x48] sm:$0xff]
    %v324 = vld [vmem:[#allocation2 + $0x50] sm:$0xff]
    %v325 = vld [vmem:[#allocation2 + $0x58] sm:$0xff]
    %v326 = vld [vmem:[#allocation2 + $0x60] sm:$0xff]
    %v327 = vld [vmem:[#allocation2 + $0x68] sm:$0xff]
    %v328 = vld [vmem:[#allocation2 + $0x70] sm:$0xff]
    %v329 = vld [vmem:[#allocation2 + $0x78] sm:$0xff]
    %v330 = vld [vmem:[%s2] sm:$0x1]
    %v332 = vlaneseq
    %v333 = vshrl.u32 %v332, 7
    %v334 = vsub.s32 0, %v333
    %v335 = vrot.slane %v330, %v334
    %v337 = vmul.f32 %v314, %v335
    %v338 = vmul.f32 %v315, %v335
    %v339 = vmul.f32 %v316, %v335
    %v340 = vmul.f32 %v317, %v335
    %v341 = vmul.f32 %v318, %v335
    %v342 = vmul.f32 %v319, %v335
    %v343 = vmul.f32 %v320, %v335
    %v344 = vmul.f32 %v321, %v335
    %v345 = vmul.f32 %v322, %v335
    %v346 = vmul.f32 %v323, %v335
    %v347 = vmul.f32 %v324, %v335
    %v348 = vmul.f32 %v325, %v335
    %v349 = vmul.f32 %v326, %v335
    %v350 = vmul.f32 %v327, %v335
    %v351 = vmul.f32 %v328, %v335
    %v352 = vmul.f32 %v329, %v335
    %v353 = vld [vmem:[%s3] sm:$0x1]
    %v355 = vlaneseq
    %v356 = vshrl.u32 %v355, 7
    %v357 = vsub.s32 0, %v356
    %v358 = vrot.slane %v353, %v357
    %v360 = vadd.f32 %v337, %v358
    %v361 = vadd.f32 %v338, %v358
    %v362 = vadd.f32 %v339, %v358
    %v363 = vadd.f32 %v340, %v358
    %v364 = vadd.f32 %v341, %v358
    %v365 = vadd.f32 %v342, %v358
    %v366 = vadd.f32 %v343, %v358
    %v367 = vadd.f32 %v344, %v358
    %v368 = vadd.f32 %v345, %v358
    %v369 = vadd.f32 %v346, %v358
    %v370 = vadd.f32 %v347, %v358
    %v371 = vadd.f32 %v348, %v358
    %v372 = vadd.f32 %v349, %v358
    %v373 = vadd.f32 %v350, %v358
    %v374 = vadd.f32 %v351, %v358
    %v375 = vadd.f32 %v352, %v358
    %376 = vst [vmem:[%s4] sm:$0xff] %v360
    %377 = vst [vmem:[%s4 + $0x8] sm:$0xff] %v361
    %378 = vst [vmem:[%s4 + $0x10] sm:$0xff] %v362
    %379 = vst [vmem:[%s4 + $0x18] sm:$0xff] %v363
    %380 = vst [vmem:[%s4 + $0x20] sm:$0xff] %v364
    %381 = vst [vmem:[%s4 + $0x28] sm:$0xff] %v365
    %382 = vst [vmem:[%s4 + $0x30] sm:$0xff] %v366
    %383 = vst [vmem:[%s4 + $0x38] sm:$0xff] %v367
    %384 = vst [vmem:[%s4 + $0x40] sm:$0xff] %v368
    %385 = vst [vmem:[%s4 + $0x48] sm:$0xff] %v369
    %386 = vst [vmem:[%s4 + $0x50] sm:$0xff] %v370
    %387 = vst [vmem:[%s4 + $0x58] sm:$0xff] %v371
    %388 = vst [vmem:[%s4 + $0x60] sm:$0xff] %v372
    %389 = vst [vmem:[%s4 + $0x68] sm:$0xff] %v373
    %390 = vst [vmem:[%s4 + $0x70] sm:$0xff] %v374
    %391 = vst [vmem:[%s4 + $0x78] sm:$0xff] %v375
  $region25: #{_lambda_.18} parent=0 // pred_fallthru
    _
  // Predicated region
  $region26: #{_lambda_.18} parent=0 // pred_check
    _
  $region27: #{_lambda_.18} parent=0 // pred_check_branch
    %393 = sbr.rel (0) target = $region29
  $region28: #{_lambda_.18} parent=0 // pred_region
    _
  $region29: #{_lambda_.18} parent=0 // pred_fallthru
    _
  // Predicated region
  $region30: #{_lambda_.18} parent=0 // pred_check
    _
  $region31: #{_lambda_.18} parent=0 // pred_check_branch
    %395 = sbr.rel (0) target = $region33
  $region32: #{_lambda_.18} parent=0 // pred_region
    _
  $region33: #{_lambda_.18} parent=0 // pred_fallthru
    _

// kernel: _lambda_.19
$region0: #{_lambda_.19}
  #allocation0 [shape = 'u32[]', space=smem, size = 0x4, offset = 0x4, fixed_abs, tag = 'smem constant byte address 0x4 - core index']
  #allocation1 [shape = 'u32[144,128]{1,0:T(1,128)}', space=vmem, size = 0x12000, scoped, tag = 'internal scratch']
  %s0 = inlined_call_operand.vmem [shape: f32[8,384], index: 0, kind: input, shape index: {}]
  %s1 = inlined_call_operand.vmem [shape: f32[4,384], index: 1, kind: input, shape index: {}]
  %s2 = inlined_call_operand.vmem [shape: f32[8,384], index: 2, kind: output, shape index: {}]
  %s3 = sld [smem:[#allocation0]]
  $region18: #{_lambda_.19} parent=0
    _
  %s5 = ssub.s32 1, %s3
  %s6 = scalar_select 0, %s5, %s3
  // Predicated region
  $region2: #{_lambda_.19} parent=0 // pred_check
    _
  $region3: #{_lambda_.19} parent=0 // pred_check_branch
    %8 = sbr.rel (0) target = $region5
  $region4: #{_lambda_.19} parent=0 // pred_region
    _
  $region5: #{_lambda_.19} parent=0 // pred_fallthru
    _
  // Predicated region
  $region6: #{_lambda_.19} parent=0 // pred_check
    _
  $region7: #{_lambda_.19} parent=0 // pred_check_branch
    %10 = sbr.rel (0) target = $region9
  $region8: #{_lambda_.19} parent=0 // pred_region
    _
  $region9: #{_lambda_.19} parent=0 // pred_fallthru
    _
  %v11 = vld [vmem:[%s0] sm:$0xff]
  %v12 = vld [vmem:[%s0 + $0x8] sm:$0xff]
  %v13 = vld [vmem:[%s0 + $0x10] sm:$0xff]
  %v14 = vld [vmem:[%s1] sm:$0xff]
  %v15 = vld [vmem:[%s1 + $0x8] sm:$0xf]
  %v16 = vxor.u32 %v11, 2147483648
  %v17 = vxor.u32 %v12, 2147483648
  %v18 = vxor.u32 %v13, 2147483648
  %v19 = vmul.f32 %v16, 1.442695
  %v20 = vpow.pop %v19
  %v21 = vmul.f32 %v17, 1.442695
  %v22 = vpow.pop %v21
  %v23 = vmul.f32 %v18, 1.442695
  %v24 = vpow.pop %v23
  %v25 = vadd.f32 %v20, 1.0
  %v26 = vadd.f32 %v22, 1.0
  %v27 = vadd.f32 %v24, 1.0
  %v28 = vrcp.pop %v25
  %v29 = vmul.f32 1.0, %v28
  %v30 = vrcp.pop %v26
  %v31 = vmul.f32 1.0, %v30
  %v32 = vrcp.pop %v27
  %v33 = vmul.f32 1.0, %v32
  %v35 = vcombine.high %v14, %v14
  %v37 = vadd.f32 %v29, %v14
  %v38 = vadd.f32 %v31, %v35
  %v39 = vadd.f32 %v33, %v15
  %v40 = vmul.f32 %v37, 4.0
  %v41 = vmul.f32 %v38, 4.0
  %v42 = vmul.f32 %v39, 4.0
  %43 = vst [vmem:[%s2] sm:$0x3] %v40
  %44 = vst [vmem:[%s2 + $0x8] sm:$0x3] %v41
  %45 = vst [vmem:[%s2 + $0x10] sm:$0x3] %v42
  %v46 = vmul.f32 %v11, 1.442695
  %v47 = vpow.pop %v46
  %v48 = vmul.f32 %v12, 1.442695
  %v49 = vpow.pop %v48
  %v50 = vmul.f32 %v13, 1.442695
  %v51 = vpow.pop %v50
  %v52 = vmul.f32 %v47, %v14
  %v53 = vmul.f32 %v49, %v35
  %v54 = vmul.f32 %v51, %v15
  %v55 = vmul.f32 %v52, 4.0
  %v56 = vmul.f32 %v53, 4.0
  %v57 = vmul.f32 %v54, 4.0
  %58 = vst [vmem:[%s2] sm:$0xc] %v55
  %59 = vst [vmem:[%s2 + $0x8] sm:$0xc] %v56
  %60 = vst [vmem:[%s2 + $0x10] sm:$0xc] %v57
  %v61 = vlaneseq
  %vm62 = vcmp.ge.s32.totalorder %v61, 0
  %vm63 = vcmp.lt.s32.totalorder %v61, 384
  %vm64 = vmand %vm62, %vm63
  %s65 = scalar_lea.vmem %s2, 4
  %66 = vst.msk [vmem:[%s65] ss:$8 sm:$0x7] %vm64, 0.0
  %67 = vst.msk [vmem:[%s65] ss:$8 sm:$0x0] %vm64, 0.0
  %68 = vst [vmem:[%s2] sm:$0xe0] %v29
  %69 = vst [vmem:[%s2 + $0x8] sm:$0xe0] %v31
  %70 = vst [vmem:[%s2 + $0x10] sm:$0xe0] %v33
  // Predicated region
  $region10: #{_lambda_.19} parent=0 // pred_check
    _
  $region11: #{_lambda_.19} parent=0 // pred_check_branch
    %72 = sbr.rel (0) target = $region13
  $region12: #{_lambda_.19} parent=0 // pred_region
    _
  $region13: #{_lambda_.19} parent=0 // pred_fallthru
    _
  // Predicated region
  $region14: #{_lambda_.19} parent=0 // pred_check
    _
  $region15: #{_lambda_.19} parent=0 // pred_check_branch
    %74 = sbr.rel (0) target = $region17
  $region16: #{_lambda_.19} parent=0 // pred_region
    _
  $region17: #{_lambda_.19} parent=0 // pred_fallthru
    _

</llo_original>
